<compile_context>
chip_gen: v6e
topology: v6e:2x2x1
jax: 0.10.0
libtpu: 0.0.40
codegen_flags: <defaults>
</compile_context>

<pallas_src>
import functools
import math

import jax
import jax.numpy as jnp
from jax.experimental import pallas as pl
from jax.experimental.pallas import tpu as pltpu

_SQRT_HALF = 0.7071067811865476
_GROUP = 8          # channels per GroupNorm group (module uses num_groups = C // 8)
_EPS = 1e-5


# ----------------------------------------------------------------------------
# In-kernel helpers
# ----------------------------------------------------------------------------
def _group_sum(v, c):
    """v: (1, c) per-channel values -> (1, c) where every channel holds the sum over
    its contiguous group of 8 channels.  Pure VPU/XLU work (no M=1 MXU matmuls)."""
    parts = []
    for g in range(c // _GROUP):
        s = jnp.sum(v[:, g * _GROUP:(g + 1) * _GROUP], axis=1, keepdims=True)
        parts.append(jnp.broadcast_to(s, (1, _GROUP)))
    return jnp.concatenate(parts, axis=-1)


def _conv_gn_gelu(xpad, w_ref, p_ref, h, w, c_in, c_out):
    """One WS-conv(3x3, pad=1) + GroupNorm(C/8 groups) + exact GELU.

    xpad : (h+2, w+2, c_in) f32 value (zero-padded input, already in VMEM/vregs)
    w_ref: (9*c_in, c_out)  bf16 ref -- weight standardized OUTSIDE the kernel
    p_ref: (3, c_out)       f32 ref -- rows = [conv bias, GN gamma, GN beta]
    returns (h*w, c_out) f32
    """
    hw = h * w

    # --- im2col built in VMEM (nothing 9x-materialized in HBM) ---------------
    cols = []
    for dy in range(3):
        for dx in range(3):
            cols.append(xpad[dy:dy + h, dx:dx + w, :].reshape(hw, c_in))
    patches = jnp.concatenate(cols, axis=-1).astype(jnp.bfloat16)   # (hw, 9*c_in)

    # --- conv as a single bf16 MXU matmul, f32 accumulation ------------------
    acc = jnp.dot(patches, w_ref[...], preferred_element_type=jnp.float32)  # (hw, c_out)

    b = p_ref[0:1, :]
    gamma = p_ref[1:2, :]
    beta = p_ref[2:3, :]

    # --- GroupNorm stats from per-channel moments.  The conv bias is folded
    #     analytically, so there is no separate full-tile bias-add pass. -------
    s = jnp.sum(acc, axis=0, keepdims=True)            # (1, c_out)  sum(acc)
    q = jnp.sum(acc * acc, axis=0, keepdims=True)      # (1, c_out)  sum(acc^2)
    sb = s + float(hw) * b                             # moments of (acc + bias)
    qb = q + 2.0 * b * s + float(hw) * (b * b)
    inv_n = 1.0 / float(hw * _GROUP)
    mean = _group_sum(sb, c_out) * inv_n               # (1, c_out), per-group stats
    var = _group_sum(qb, c_out) * inv_n - mean * mean  # biased var (nn.GroupNorm)
    scale = gamma * jax.lax.rsqrt(var + _EPS)
    shift = beta + (b - mean) * scale

    # --- single fused multiply-add + exact GELU over the big tile ------------
    y = acc * scale + shift
    return 0.5 * y * (1.0 + jax.lax.erf(y * _SQRT_HALF))


# ----------------------------------------------------------------------------
# Fused DoubleConv kernel (one batch element per grid step)
# ----------------------------------------------------------------------------
def _double_conv_kernel(xp_ref, w1_ref, p1_ref, w2_ref, p2_ref, o_ref, ypad_ref,
                        *, h, w, c_in, c_mid, c_out):
    # conv1 + GN + GELU
    y1 = _conv_gn_gelu(xp_ref[0], w1_ref, p1_ref, h, w, c_in, c_mid)   # (h*w, c_mid)

    # intermediate stays in VMEM: write into a zero-padded scratch for conv2
    ypad_ref[...] = jnp.zeros((h + 2, w + 2, c_mid), jnp.float32)
    ypad_ref[1:h + 1, 1:w + 1, :] = y1.reshape(h, w, c_mid)

    # conv2 + GN + GELU
    y2 = _conv_gn_gelu(ypad_ref[...], w2_ref, p2_ref, h, w, c_mid, c_out)
    o_ref[0] = y2


# ----------------------------------------------------------------------------
# Wrapper
# ----------------------------------------------------------------------------
def _standardize_weight(w):
    """PyTorch WS-Conv: per output channel, mean-center over (Cin*3*3) and divide by
    (unbiased std of the centered weight + 1e-5).  w: (9*Cin, Cout)."""
    mean = jnp.mean(w, axis=0, keepdims=True)
    cen = w - mean
    std = jnp.sqrt(jnp.sum(cen * cen, axis=0, keepdims=True)
                   / float(w.shape[0] - 1)) + 1e-5
    return cen / std


def _vmem_limit_bytes(h, w, c_in, c_mid, c_out):
    """Per-layer VMEM budget (double-buffered blocks + scratch + live temporaries),
    with headroom, capped below v7x's 64 MiB physical VMEM."""
    f32, bf16 = 4, 2
    hw = h * w
    est = (2 * (h + 2) * (w + 2) * c_in * f32                       # input block x2
           + 2 * hw * c_out * f32                                   # output block x2
           + 2 * (9 * c_in * c_mid + 9 * c_mid * c_out) * bf16      # bf16 weights
           + (h + 2) * (w + 2) * c_mid * f32                        # padded intermediate
           + hw * 9 * max(c_in, c_mid) * bf16                       # in-VMEM patches
           + 6 * hw * max(c_mid, c_out) * f32)                      # f32 temporaries
    return int(min(max(2 * est, 16 << 20), 40 << 20))


def double_conv_nhwc(x_nhwc, params):
    """Fused DoubleConv: (WS-conv3x3 -> GroupNorm(C/8 groups) -> GELU) x 2.  NHWC."""
    n, h, w, c_in = x_nhwc.shape
    c_mid = params["w1"].shape[1]
    c_out = params["w2"].shape[1]
    assert c_mid % _GROUP == 0 and c_out % _GROUP == 0
    assert w % 8 == 0, "W must be a multiple of 8 for layout-friendly in-VMEM im2col"

    # Hoisted weight standardization (once per call, not per batch/tile); bf16 to MXU.
    w1 = _standardize_weight(params["w1"].astype(jnp.float32)).astype(jnp.bfloat16)
    w2 = _standardize_weight(params["w2"].astype(jnp.float32)).astype(jnp.bfloat16)
    p1 = jnp.stack([params["b1"], params["g1"], params["be1"]]).astype(jnp.float32)
    p2 = jnp.stack([params["b2"], params["g2"], params["be2"]]).astype(jnp.float32)

    # Only a cheap (H+2, W+2) zero pad is materialized -- not a 9x im2col.
    xp = jnp.pad(x_nhwc.astype(jnp.float32), ((0, 0), (1, 1), (1, 1), (0, 0)))

    kernel = functools.partial(_double_conv_kernel, h=h, w=w,
                               c_in=c_in, c_mid=c_mid, c_out=c_out)
    out = pl.pallas_call(
        kernel,
        out_shape=jax.ShapeDtypeStruct((n, h * w, c_out), jnp.float32),
        grid=(n,),
        in_specs=[
            pl.BlockSpec((1, h + 2, w + 2, c_in), lambda b: (b, 0, 0, 0)),
            pl.BlockSpec((9 * c_in, c_mid), lambda b: (0, 0)),
            pl.BlockSpec((3, c_mid), lambda b: (0, 0)),
            pl.BlockSpec((9 * c_mid, c_out), lambda b: (0, 0)),
            pl.BlockSpec((3, c_out), lambda b: (0, 0)),
        ],
        out_specs=pl.BlockSpec((1, h * w, c_out), lambda b: (b, 0, 0)),
        scratch_shapes=[pltpu.VMEM((h + 2, w + 2, c_mid), jnp.float32)],
        compiler_params=pltpu.CompilerParams(
            dimension_semantics=("parallel",),   # batch steps -> both v7x TensorCores
            vmem_limit_bytes=_vmem_limit_bytes(h, w, c_in, c_mid, c_out),
        ),
    )(xp, w1, p1, w2, p2)
    # TODO(synk): for c_out < 128 the elementwise epilogue is lane-sparse; folding 4
    # spatial positions into the lane dim would need a group-aware GN remap.
    return out.reshape(n, h, w, c_out)


def double_conv_forward(x_nchw, params):
    x = jnp.transpose(x_nchw, (0, 2, 3, 1)).astype(jnp.float32)     # NCHW -> NHWC
    y = double_conv_nhwc(x, params)
    return jnp.transpose(y, (0, 3, 1, 2))                           # NHWC -> NCHW


# ----------------------------------------------------------------------------
# Pure-JAX (XLA, f32) reference for a structural sanity check
# ----------------------------------------------------------------------------
def _reference_forward(x_nchw, params):
    x = jnp.transpose(x_nchw, (0, 2, 3, 1)).astype(jnp.float32)

    def block(x, w_mat, b, g, be):
        c_i = x.shape[-1]
        c_o = w_mat.shape[1]
        w4 = _standardize_weight(w_mat.astype(jnp.float32)).reshape(3, 3, c_i, c_o)
        y = jax.lax.conv_general_dilated(
            x, w4, window_strides=(1, 1), padding="SAME",
            dimension_numbers=("NHWC", "HWIO", "NHWC"),
            precision=jax.lax.Precision.HIGHEST) + b
        n_, h_, w_, c_ = y.shape
        yg = y.reshape(n_, h_ * w_, c_ // _GROUP, _GROUP)
        mean = jnp.mean(yg, axis=(1, 3), keepdims=True)
        var = jnp.mean(jnp.square(yg - mean), axis=(1, 3), keepdims=True)
        yn = ((yg - mean) * jax.lax.rsqrt(var + _EPS)).reshape(n_, h_, w_, c_)
        yn = yn * g + be
        return 0.5 * yn * (1.0 + jax.lax.erf(yn * _SQRT_HALF))

    x = block(x, params["w1"], params["b1"], params["g1"], params["be1"])
    x = block(x, params["w2"], params["b2"], params["g2"], params["be2"])
    return jnp.transpose(x, (0, 3, 1, 2))


# ----------------------------------------------------------------------------
# Deterministic parameter init (shapes per the module: mid_channels = out_channels)
# ----------------------------------------------------------------------------
def init_double_conv_params(key, c_in, c_out, c_mid=None):
    c_mid = c_mid or c_out
    ks = jax.random.split(key, 8)

    def conv_w(k, ci, co):
        return jax.random.normal(k, (9 * ci, co), jnp.float32) / math.sqrt(9 * ci)

    return {
        "w1": conv_w(ks[0], c_in, c_mid),
        "b1": 0.01 * jax.random.normal(ks[1], (c_mid,), jnp.float32),
        "g1": 1.0 + 0.1 * jax.random.normal(ks[2], (c_mid,), jnp.float32),
        "be1": 0.1 * jax.random.normal(ks[3], (c_mid,), jnp.float32),
        "w2": conv_w(ks[4], c_mid, c_out),
        "b2": 0.01 * jax.random.normal(ks[5], (c_out,), jnp.float32),
        "g2": 1.0 + 0.1 * jax.random.normal(ks[6], (c_out,), jnp.float32),
        "be2": 0.1 * jax.random.normal(ks[7], (c_out,), jnp.float32),
    }


# ----------------------------------------------------------------------------
if __name__ == "__main__":
    key = jax.random.PRNGKey(0)
    kx, kp = jax.random.split(key)

    # DoubleConv(in_channels=4, out_channels=32); GroupNorm(32/8=4 groups, 32)
    n, c_in, spatial, c_out = 2, 4, 16, 32
    x = jax.random.normal(kx, (n, c_in, spatial, spatial), jnp.float32)   # NCHW
    params = init_double_conv_params(kp, c_in, c_out)

    fwd = jax.jit(double_conv_forward)
    out = fwd(x, params)
    jax.block_until_ready(out)
    assert out.shape == (n, c_out, spatial, spatial), out.shape
    assert bool(jnp.all(jnp.isfinite(out)))

    # Loose structural sanity bound vs. an f32 XLA reference (kernel matmuls are bf16).
    ref = _reference_forward(x, params)
    max_err = float(jnp.max(jnp.abs(out - ref)))
    assert max_err < 0.15, f"mismatch vs reference: max_err={max_err}"

    print("KERNEL_OK")
</pallas_src>

<mosaic_0001>
module attributes {stable_mosaic.version = 11 : i64} {
  func.func @_double_conv_kernel(%arg0: i32, %arg1: memref<1x18x18x4xf32, #tpu.memory_space<vmem>>, %arg2: memref<36x32xbf16, #tpu.memory_space<vmem>>, %arg3: memref<3x32xf32, #tpu.memory_space<vmem>>, %arg4: memref<288x32xbf16, #tpu.memory_space<vmem>>, %arg5: memref<3x32xf32, #tpu.memory_space<vmem>>, %arg6: memref<1x256x32xf32, #tpu.memory_space<vmem>>, %arg7: memref<18x18x32xf32, #tpu.memory_space<vmem>>) attributes {dimension_semantics = [#tpu.dimension_semantics<parallel>], iteration_bounds = array<i64: 2>, scalar_prefetch = 0 : i64, scratch_operands = 1 : i64, tpu.core_type = #tpu.core_type<tc>, window_params = [{transform_indices = @transform_0, window_bounds = array<i64: 1, 18, 18, 4>}, {pipeline_mode = #tpu.pipeline_mode<synchronous>, transform_indices = @transform_1, window_bounds = array<i64: 36, 32>}, {pipeline_mode = #tpu.pipeline_mode<synchronous>, transform_indices = @transform_2, window_bounds = array<i64: 3, 32>}, {pipeline_mode = #tpu.pipeline_mode<synchronous>, transform_indices = @transform_3, window_bounds = array<i64: 288, 32>}, {pipeline_mode = #tpu.pipeline_mode<synchronous>, transform_indices = @transform_4, window_bounds = array<i64: 3, 32>}, {transform_indices = @transform_5, window_bounds = array<i64: 1, 256, 32>}]} {
    %c0 = arith.constant 0 : index
    %c0_0 = arith.constant 0 : index
    %c0_1 = arith.constant 0 : index
    %c0_2 = arith.constant 0 : index
    %0 = vector.load %arg1[%c0, %c0_0, %c0_1, %c0_2] : memref<1x18x18x4xf32, #tpu.memory_space<vmem>>, vector<1x18x18x4xf32>
    %1 = vector.shape_cast %0 : vector<1x18x18x4xf32> to vector<18x18x4xf32>
    %2 = vector.extract_strided_slice %1 {offsets = [0, 0, 0], sizes = [16, 16, 4], strides = [1, 1, 1]} : vector<18x18x4xf32> to vector<16x16x4xf32>
    %3 = vector.shape_cast %2 : vector<16x16x4xf32> to vector<256x4xf32>
    %4 = vector.extract_strided_slice %1 {offsets = [0, 1, 0], sizes = [16, 16, 4], strides = [1, 1, 1]} : vector<18x18x4xf32> to vector<16x16x4xf32>
    %5 = vector.shape_cast %4 : vector<16x16x4xf32> to vector<256x4xf32>
    %6 = vector.extract_strided_slice %1 {offsets = [0, 2, 0], sizes = [16, 16, 4], strides = [1, 1, 1]} : vector<18x18x4xf32> to vector<16x16x4xf32>
    %7 = vector.shape_cast %6 : vector<16x16x4xf32> to vector<256x4xf32>
    %8 = vector.extract_strided_slice %1 {offsets = [1, 0, 0], sizes = [16, 16, 4], strides = [1, 1, 1]} : vector<18x18x4xf32> to vector<16x16x4xf32>
    %9 = vector.shape_cast %8 : vector<16x16x4xf32> to vector<256x4xf32>
    %10 = vector.extract_strided_slice %1 {offsets = [1, 1, 0], sizes = [16, 16, 4], strides = [1, 1, 1]} : vector<18x18x4xf32> to vector<16x16x4xf32>
    %11 = vector.shape_cast %10 : vector<16x16x4xf32> to vector<256x4xf32>
    %12 = vector.extract_strided_slice %1 {offsets = [1, 2, 0], sizes = [16, 16, 4], strides = [1, 1, 1]} : vector<18x18x4xf32> to vector<16x16x4xf32>
    %13 = vector.shape_cast %12 : vector<16x16x4xf32> to vector<256x4xf32>
    %14 = vector.extract_strided_slice %1 {offsets = [2, 0, 0], sizes = [16, 16, 4], strides = [1, 1, 1]} : vector<18x18x4xf32> to vector<16x16x4xf32>
    %15 = vector.shape_cast %14 : vector<16x16x4xf32> to vector<256x4xf32>
    %16 = vector.extract_strided_slice %1 {offsets = [2, 1, 0], sizes = [16, 16, 4], strides = [1, 1, 1]} : vector<18x18x4xf32> to vector<16x16x4xf32>
    %17 = vector.shape_cast %16 : vector<16x16x4xf32> to vector<256x4xf32>
    %18 = vector.extract_strided_slice %1 {offsets = [2, 2, 0], sizes = [16, 16, 4], strides = [1, 1, 1]} : vector<18x18x4xf32> to vector<16x16x4xf32>
    %19 = vector.shape_cast %18 : vector<16x16x4xf32> to vector<256x4xf32>
    %20 = tpu.concatenate %3, %5, %7, %9, %11, %13, %15, %17, %19 in 1 : vector<256x4xf32>, vector<256x4xf32>, vector<256x4xf32>, vector<256x4xf32>, vector<256x4xf32>, vector<256x4xf32>, vector<256x4xf32>, vector<256x4xf32>, vector<256x4xf32> -> vector<256x36xf32>
    %21 = arith.truncf %20 : vector<256x36xf32> to vector<256x36xbf16>
    %c0_3 = arith.constant 0 : index
    %c0_4 = arith.constant 0 : index
    %22 = vector.load %arg2[%c0_3, %c0_4] : memref<36x32xbf16, #tpu.memory_space<vmem>>, vector<36x32xbf16>
    %cst = arith.constant dense<0.000000e+00> : vector<256x32xf32>
    %23 = tpu.matmul %21, %22, %cst {dimension_numbers = #tpu.dot_dimension_numbers<[1], [0], [0], [1], [0, 0, 1, 1], [], []>} : vector<256x36xbf16>, vector<36x32xbf16>, vector<256x32xf32> -> vector<256x32xf32>
    %c0_5 = arith.constant 0 : index
    %c0_6 = arith.constant 0 : index
    %24 = vector.load %arg3[%c0_5, %c0_6] : memref<3x32xf32, #tpu.memory_space<vmem>>, vector<1x32xf32>
    %c1 = arith.constant 1 : index
    %c0_7 = arith.constant 0 : index
    %25 = vector.load %arg3[%c1, %c0_7] : memref<3x32xf32, #tpu.memory_space<vmem>>, vector<1x32xf32>
    %c2 = arith.constant 2 : index
    %c0_8 = arith.constant 0 : index
    %26 = vector.load %arg3[%c2, %c0_8] : memref<3x32xf32, #tpu.memory_space<vmem>>, vector<1x32xf32>
    %cst_9 = arith.constant dense<0.000000e+00> : vector<32xf32>
    %27 = vector.multi_reduction <add>, %23, %cst_9 [0] : vector<256x32xf32> to vector<32xf32>
    %28 = vector.shape_cast %27 : vector<32xf32> to vector<1x32xf32>
    %29 = arith.mulf %23, %23 : vector<256x32xf32>
    %cst_10 = arith.constant dense<0.000000e+00> : vector<32xf32>
    %30 = vector.multi_reduction <add>, %29, %cst_10 [0] : vector<256x32xf32> to vector<32xf32>
    %31 = vector.shape_cast %30 : vector<32xf32> to vector<1x32xf32>
    %cst_11 = arith.constant 2.560000e+02 : f32
    %32 = vector.broadcast %cst_11 : f32 to vector<1x32xf32>
    %33 = arith.mulf %32, %24 : vector<1x32xf32>
    %34 = arith.addf %28, %33 : vector<1x32xf32>
    %cst_12 = arith.constant 2.000000e+00 : f32
    %35 = vector.broadcast %cst_12 : f32 to vector<1x32xf32>
    %36 = arith.mulf %35, %24 : vector<1x32xf32>
    %37 = arith.mulf %36, %28 : vector<1x32xf32>
    %38 = arith.addf %31, %37 : vector<1x32xf32>
    %39 = arith.mulf %24, %24 : vector<1x32xf32>
    %cst_13 = arith.constant 2.560000e+02 : f32
    %40 = vector.broadcast %cst_13 : f32 to vector<1x32xf32>
    %41 = arith.mulf %40, %39 : vector<1x32xf32>
    %42 = arith.addf %38, %41 : vector<1x32xf32>
    %43 = vector.extract_strided_slice %34 {offsets = [0, 0], sizes = [1, 8], strides = [1, 1]} : vector<1x32xf32> to vector<1x8xf32>
    %cst_14 = arith.constant dense<0.000000e+00> : vector<1xf32>
    %44 = vector.multi_reduction <add>, %43, %cst_14 [1] : vector<1x8xf32> to vector<1xf32>
    %45 = vector.shape_cast %44 : vector<1xf32> to vector<1x1xf32>
    %46 = vector.shape_cast %45 : vector<1x1xf32> to vector<1x1xf32>
    %47 = vector.broadcast %46 : vector<1x1xf32> to vector<1x8xf32>
    %48 = vector.extract_strided_slice %34 {offsets = [0, 8], sizes = [1, 8], strides = [1, 1]} : vector<1x32xf32> to vector<1x8xf32>
    %cst_15 = arith.constant dense<0.000000e+00> : vector<1xf32>
    %49 = vector.multi_reduction <add>, %48, %cst_15 [1] : vector<1x8xf32> to vector<1xf32>
    %50 = vector.shape_cast %49 : vector<1xf32> to vector<1x1xf32>
    %51 = vector.shape_cast %50 : vector<1x1xf32> to vector<1x1xf32>
    %52 = vector.broadcast %51 : vector<1x1xf32> to vector<1x8xf32>
    %53 = vector.extract_strided_slice %34 {offsets = [0, 16], sizes = [1, 8], strides = [1, 1]} : vector<1x32xf32> to vector<1x8xf32>
    %cst_16 = arith.constant dense<0.000000e+00> : vector<1xf32>
    %54 = vector.multi_reduction <add>, %53, %cst_16 [1] : vector<1x8xf32> to vector<1xf32>
    %55 = vector.shape_cast %54 : vector<1xf32> to vector<1x1xf32>
    %56 = vector.shape_cast %55 : vector<1x1xf32> to vector<1x1xf32>
    %57 = vector.broadcast %56 : vector<1x1xf32> to vector<1x8xf32>
    %58 = vector.extract_strided_slice %34 {offsets = [0, 24], sizes = [1, 8], strides = [1, 1]} : vector<1x32xf32> to vector<1x8xf32>
    %cst_17 = arith.constant dense<0.000000e+00> : vector<1xf32>
    %59 = vector.multi_reduction <add>, %58, %cst_17 [1] : vector<1x8xf32> to vector<1xf32>
    %60 = vector.shape_cast %59 : vector<1xf32> to vector<1x1xf32>
    %61 = vector.shape_cast %60 : vector<1x1xf32> to vector<1x1xf32>
    %62 = vector.broadcast %61 : vector<1x1xf32> to vector<1x8xf32>
    %63 = tpu.concatenate %47, %52, %57, %62 in 1 : vector<1x8xf32>, vector<1x8xf32>, vector<1x8xf32>, vector<1x8xf32> -> vector<1x32xf32>
    %cst_18 = arith.constant 4.8828125E-4 : f32
    %64 = vector.broadcast %cst_18 : f32 to vector<1x32xf32>
    %65 = arith.mulf %63, %64 : vector<1x32xf32>
    %66 = vector.extract_strided_slice %42 {offsets = [0, 0], sizes = [1, 8], strides = [1, 1]} : vector<1x32xf32> to vector<1x8xf32>
    %cst_19 = arith.constant dense<0.000000e+00> : vector<1xf32>
    %67 = vector.multi_reduction <add>, %66, %cst_19 [1] : vector<1x8xf32> to vector<1xf32>
    %68 = vector.shape_cast %67 : vector<1xf32> to vector<1x1xf32>
    %69 = vector.shape_cast %68 : vector<1x1xf32> to vector<1x1xf32>
    %70 = vector.broadcast %69 : vector<1x1xf32> to vector<1x8xf32>
    %71 = vector.extract_strided_slice %42 {offsets = [0, 8], sizes = [1, 8], strides = [1, 1]} : vector<1x32xf32> to vector<1x8xf32>
    %cst_20 = arith.constant dense<0.000000e+00> : vector<1xf32>
    %72 = vector.multi_reduction <add>, %71, %cst_20 [1] : vector<1x8xf32> to vector<1xf32>
    %73 = vector.shape_cast %72 : vector<1xf32> to vector<1x1xf32>
    %74 = vector.shape_cast %73 : vector<1x1xf32> to vector<1x1xf32>
    %75 = vector.broadcast %74 : vector<1x1xf32> to vector<1x8xf32>
    %76 = vector.extract_strided_slice %42 {offsets = [0, 16], sizes = [1, 8], strides = [1, 1]} : vector<1x32xf32> to vector<1x8xf32>
    %cst_21 = arith.constant dense<0.000000e+00> : vector<1xf32>
    %77 = vector.multi_reduction <add>, %76, %cst_21 [1] : vector<1x8xf32> to vector<1xf32>
    %78 = vector.shape_cast %77 : vector<1xf32> to vector<1x1xf32>
    %79 = vector.shape_cast %78 : vector<1x1xf32> to vector<1x1xf32>
    %80 = vector.broadcast %79 : vector<1x1xf32> to vector<1x8xf32>
    %81 = vector.extract_strided_slice %42 {offsets = [0, 24], sizes = [1, 8], strides = [1, 1]} : vector<1x32xf32> to vector<1x8xf32>
    %cst_22 = arith.constant dense<0.000000e+00> : vector<1xf32>
    %82 = vector.multi_reduction <add>, %81, %cst_22 [1] : vector<1x8xf32> to vector<1xf32>
    %83 = vector.shape_cast %82 : vector<1xf32> to vector<1x1xf32>
    %84 = vector.shape_cast %83 : vector<1x1xf32> to vector<1x1xf32>
    %85 = vector.broadcast %84 : vector<1x1xf32> to vector<1x8xf32>
    %86 = tpu.concatenate %70, %75, %80, %85 in 1 : vector<1x8xf32>, vector<1x8xf32>, vector<1x8xf32>, vector<1x8xf32> -> vector<1x32xf32>
    %cst_23 = arith.constant 4.8828125E-4 : f32
    %87 = vector.broadcast %cst_23 : f32 to vector<1x32xf32>
    %88 = arith.mulf %86, %87 : vector<1x32xf32>
    %89 = arith.mulf %65, %65 : vector<1x32xf32>
    %90 = arith.subf %88, %89 : vector<1x32xf32>
    %cst_24 = arith.constant 9.99999974E-6 : f32
    %91 = vector.broadcast %cst_24 : f32 to vector<1x32xf32>
    %92 = arith.addf %90, %91 : vector<1x32xf32>
    %93 = math.rsqrt %92 : vector<1x32xf32>
    %94 = arith.mulf %25, %93 : vector<1x32xf32>
    %95 = arith.subf %24, %65 : vector<1x32xf32>
    %96 = arith.mulf %95, %94 : vector<1x32xf32>
    %97 = arith.addf %26, %96 : vector<1x32xf32>
    %98 = vector.broadcast %94 : vector<1x32xf32> to vector<256x32xf32>
    %99 = arith.mulf %23, %98 : vector<256x32xf32>
    %100 = vector.broadcast %97 : vector<1x32xf32> to vector<256x32xf32>
    %101 = arith.addf %99, %100 : vector<256x32xf32>
    %cst_25 = arith.constant 5.000000e-01 : f32
    %102 = vector.broadcast %cst_25 : f32 to vector<256x32xf32>
    %103 = arith.mulf %102, %101 : vector<256x32xf32>
    %cst_26 = arith.constant 0.707106769 : f32
    %104 = vector.broadcast %cst_26 : f32 to vector<256x32xf32>
    %105 = arith.mulf %101, %104 : vector<256x32xf32>
    %106 = math.erf %105 : vector<256x32xf32>
    %cst_27 = arith.constant 1.000000e+00 : f32
    %107 = vector.broadcast %cst_27 : f32 to vector<256x32xf32>
    %108 = arith.addf %107, %106 : vector<256x32xf32>
    %109 = arith.mulf %103, %108 : vector<256x32xf32>
    %cst_28 = arith.constant 0.000000e+00 : f32
    %110 = vector.broadcast %cst_28 : f32 to vector<18x18x32xf32>
    %c0_29 = arith.constant 0 : index
    %c0_30 = arith.constant 0 : index
    %c0_31 = arith.constant 0 : index
    %111 = vector.load %arg7[%c0_29, %c0_30, %c0_31] : memref<18x18x32xf32, #tpu.memory_space<vmem>>, vector<18x18x32xf32>
    tpu.vector_store %arg7[%c0_29, %c0_30, %c0_31], %110 {strides = array<i32>} : memref<18x18x32xf32, #tpu.memory_space<vmem>>, vector<18x18x32xf32>,
    %112 = vector.shape_cast %109 : vector<256x32xf32> to vector<16x16x32xf32>
    %c1_32 = arith.constant 1 : index
    %c1_33 = arith.constant 1 : index
    %c0_34 = arith.constant 0 : index
    %113 = vector.load %arg7[%c1_32, %c1_33, %c0_34] : memref<18x18x32xf32, #tpu.memory_space<vmem>>, vector<16x16x32xf32>
    tpu.vector_store %arg7[%c1_32, %c1_33, %c0_34], %112 {strides = array<i32>} : memref<18x18x32xf32, #tpu.memory_space<vmem>>, vector<16x16x32xf32>,
    %c0_35 = arith.constant 0 : index
    %c0_36 = arith.constant 0 : index
    %c0_37 = arith.constant 0 : index
    %114 = vector.load %arg7[%c0_35, %c0_36, %c0_37] : memref<18x18x32xf32, #tpu.memory_space<vmem>>, vector<18x18x32xf32>
    %115 = vector.extract_strided_slice %114 {offsets = [0, 0, 0], sizes = [16, 16, 32], strides = [1, 1, 1]} : vector<18x18x32xf32> to vector<16x16x32xf32>
    %116 = vector.shape_cast %115 : vector<16x16x32xf32> to vector<256x32xf32>
    %117 = vector.extract_strided_slice %114 {offsets = [0, 1, 0], sizes = [16, 16, 32], strides = [1, 1, 1]} : vector<18x18x32xf32> to vector<16x16x32xf32>
    %118 = vector.shape_cast %117 : vector<16x16x32xf32> to vector<256x32xf32>
    %119 = vector.extract_strided_slice %114 {offsets = [0, 2, 0], sizes = [16, 16, 32], strides = [1, 1, 1]} : vector<18x18x32xf32> to vector<16x16x32xf32>
    %120 = vector.shape_cast %119 : vector<16x16x32xf32> to vector<256x32xf32>
    %121 = vector.extract_strided_slice %114 {offsets = [1, 0, 0], sizes = [16, 16, 32], strides = [1, 1, 1]} : vector<18x18x32xf32> to vector<16x16x32xf32>
    %122 = vector.shape_cast %121 : vector<16x16x32xf32> to vector<256x32xf32>
    %123 = vector.extract_strided_slice %114 {offsets = [1, 1, 0], sizes = [16, 16, 32], strides = [1, 1, 1]} : vector<18x18x32xf32> to vector<16x16x32xf32>
    %124 = vector.shape_cast %123 : vector<16x16x32xf32> to vector<256x32xf32>
    %125 = vector.extract_strided_slice %114 {offsets = [1, 2, 0], sizes = [16, 16, 32], strides = [1, 1, 1]} : vector<18x18x32xf32> to vector<16x16x32xf32>
    %126 = vector.shape_cast %125 : vector<16x16x32xf32> to vector<256x32xf32>
    %127 = vector.extract_strided_slice %114 {offsets = [2, 0, 0], sizes = [16, 16, 32], strides = [1, 1, 1]} : vector<18x18x32xf32> to vector<16x16x32xf32>
    %128 = vector.shape_cast %127 : vector<16x16x32xf32> to vector<256x32xf32>
    %129 = vector.extract_strided_slice %114 {offsets = [2, 1, 0], sizes = [16, 16, 32], strides = [1, 1, 1]} : vector<18x18x32xf32> to vector<16x16x32xf32>
    %130 = vector.shape_cast %129 : vector<16x16x32xf32> to vector<256x32xf32>
    %131 = vector.extract_strided_slice %114 {offsets = [2, 2, 0], sizes = [16, 16, 32], strides = [1, 1, 1]} : vector<18x18x32xf32> to vector<16x16x32xf32>
    %132 = vector.shape_cast %131 : vector<16x16x32xf32> to vector<256x32xf32>
    %133 = tpu.concatenate %116, %118, %120, %122, %124, %126, %128, %130, %132 in 1 : vector<256x32xf32>, vector<256x32xf32>, vector<256x32xf32>, vector<256x32xf32>, vector<256x32xf32>, vector<256x32xf32>, vector<256x32xf32>, vector<256x32xf32>, vector<256x32xf32> -> vector<256x288xf32>
    %134 = arith.truncf %133 : vector<256x288xf32> to vector<256x288xbf16>
    %c0_38 = arith.constant 0 : index
    %c0_39 = arith.constant 0 : index
    %135 = vector.load %arg4[%c0_38, %c0_39] : memref<288x32xbf16, #tpu.memory_space<vmem>>, vector<288x32xbf16>
    %cst_40 = arith.constant dense<0.000000e+00> : vector<256x32xf32>
    %136 = tpu.matmul %134, %135, %cst_40 {dimension_numbers = #tpu.dot_dimension_numbers<[1], [0], [0], [1], [0, 0, 1, 1], [], []>} : vector<256x288xbf16>, vector<288x32xbf16>, vector<256x32xf32> -> vector<256x32xf32>
    %c0_41 = arith.constant 0 : index
    %c0_42 = arith.constant 0 : index
    %137 = vector.load %arg5[%c0_41, %c0_42] : memref<3x32xf32, #tpu.memory_space<vmem>>, vector<1x32xf32>
    %c1_43 = arith.constant 1 : index
    %c0_44 = arith.constant 0 : index
    %138 = vector.load %arg5[%c1_43, %c0_44] : memref<3x32xf32, #tpu.memory_space<vmem>>, vector<1x32xf32>
    %c2_45 = arith.constant 2 : index
    %c0_46 = arith.constant 0 : index
    %139 = vector.load %arg5[%c2_45, %c0_46] : memref<3x32xf32, #tpu.memory_space<vmem>>, vector<1x32xf32>
    %cst_47 = arith.constant dense<0.000000e+00> : vector<32xf32>
    %140 = vector.multi_reduction <add>, %136, %cst_47 [0] : vector<256x32xf32> to vector<32xf32>
    %141 = vector.shape_cast %140 : vector<32xf32> to vector<1x32xf32>
    %142 = arith.mulf %136, %136 : vector<256x32xf32>
    %cst_48 = arith.constant dense<0.000000e+00> : vector<32xf32>
    %143 = vector.multi_reduction <add>, %142, %cst_48 [0] : vector<256x32xf32> to vector<32xf32>
    %144 = vector.shape_cast %143 : vector<32xf32> to vector<1x32xf32>
    %cst_49 = arith.constant 2.560000e+02 : f32
    %145 = vector.broadcast %cst_49 : f32 to vector<1x32xf32>
    %146 = arith.mulf %145, %137 : vector<1x32xf32>
    %147 = arith.addf %141, %146 : vector<1x32xf32>
    %cst_50 = arith.constant 2.000000e+00 : f32
    %148 = vector.broadcast %cst_50 : f32 to vector<1x32xf32>
    %149 = arith.mulf %148, %137 : vector<1x32xf32>
    %150 = arith.mulf %149, %141 : vector<1x32xf32>
    %151 = arith.addf %144, %150 : vector<1x32xf32>
    %152 = arith.mulf %137, %137 : vector<1x32xf32>
    %cst_51 = arith.constant 2.560000e+02 : f32
    %153 = vector.broadcast %cst_51 : f32 to vector<1x32xf32>
    %154 = arith.mulf %153, %152 : vector<1x32xf32>
    %155 = arith.addf %151, %154 : vector<1x32xf32>
    %156 = vector.extract_strided_slice %147 {offsets = [0, 0], sizes = [1, 8], strides = [1, 1]} : vector<1x32xf32> to vector<1x8xf32>
    %cst_52 = arith.constant dense<0.000000e+00> : vector<1xf32>
    %157 = vector.multi_reduction <add>, %156, %cst_52 [1] : vector<1x8xf32> to vector<1xf32>
    %158 = vector.shape_cast %157 : vector<1xf32> to vector<1x1xf32>
    %159 = vector.shape_cast %158 : vector<1x1xf32> to vector<1x1xf32>
    %160 = vector.broadcast %159 : vector<1x1xf32> to vector<1x8xf32>
    %161 = vector.extract_strided_slice %147 {offsets = [0, 8], sizes = [1, 8], strides = [1, 1]} : vector<1x32xf32> to vector<1x8xf32>
    %cst_53 = arith.constant dense<0.000000e+00> : vector<1xf32>
    %162 = vector.multi_reduction <add>, %161, %cst_53 [1] : vector<1x8xf32> to vector<1xf32>
    %163 = vector.shape_cast %162 : vector<1xf32> to vector<1x1xf32>
    %164 = vector.shape_cast %163 : vector<1x1xf32> to vector<1x1xf32>
    %165 = vector.broadcast %164 : vector<1x1xf32> to vector<1x8xf32>
    %166 = vector.extract_strided_slice %147 {offsets = [0, 16], sizes = [1, 8], strides = [1, 1]} : vector<1x32xf32> to vector<1x8xf32>
    %cst_54 = arith.constant dense<0.000000e+00> : vector<1xf32>
    %167 = vector.multi_reduction <add>, %166, %cst_54 [1] : vector<1x8xf32> to vector<1xf32>
    %168 = vector.shape_cast %167 : vector<1xf32> to vector<1x1xf32>
    %169 = vector.shape_cast %168 : vector<1x1xf32> to vector<1x1xf32>
    %170 = vector.broadcast %169 : vector<1x1xf32> to vector<1x8xf32>
    %171 = vector.extract_strided_slice %147 {offsets = [0, 24], sizes = [1, 8], strides = [1, 1]} : vector<1x32xf32> to vector<1x8xf32>
    %cst_55 = arith.constant dense<0.000000e+00> : vector<1xf32>
    %172 = vector.multi_reduction <add>, %171, %cst_55 [1] : vector<1x8xf32> to vector<1xf32>
    %173 = vector.shape_cast %172 : vector<1xf32> to vector<1x1xf32>
    %174 = vector.shape_cast %173 : vector<1x1xf32> to vector<1x1xf32>
    %175 = vector.broadcast %174 : vector<1x1xf32> to vector<1x8xf32>
    %176 = tpu.concatenate %160, %165, %170, %175 in 1 : vector<1x8xf32>, vector<1x8xf32>, vector<1x8xf32>, vector<1x8xf32> -> vector<1x32xf32>
    %cst_56 = arith.constant 4.8828125E-4 : f32
    %177 = vector.broadcast %cst_56 : f32 to vector<1x32xf32>
    %178 = arith.mulf %176, %177 : vector<1x32xf32>
    %179 = vector.extract_strided_slice %155 {offsets = [0, 0], sizes = [1, 8], strides = [1, 1]} : vector<1x32xf32> to vector<1x8xf32>
    %cst_57 = arith.constant dense<0.000000e+00> : vector<1xf32>
    %180 = vector.multi_reduction <add>, %179, %cst_57 [1] : vector<1x8xf32> to vector<1xf32>
    %181 = vector.shape_cast %180 : vector<1xf32> to vector<1x1xf32>
    %182 = vector.shape_cast %181 : vector<1x1xf32> to vector<1x1xf32>
    %183 = vector.broadcast %182 : vector<1x1xf32> to vector<1x8xf32>
    %184 = vector.extract_strided_slice %155 {offsets = [0, 8], sizes = [1, 8], strides = [1, 1]} : vector<1x32xf32> to vector<1x8xf32>
    %cst_58 = arith.constant dense<0.000000e+00> : vector<1xf32>
    %185 = vector.multi_reduction <add>, %184, %cst_58 [1] : vector<1x8xf32> to vector<1xf32>
    %186 = vector.shape_cast %185 : vector<1xf32> to vector<1x1xf32>
    %187 = vector.shape_cast %186 : vector<1x1xf32> to vector<1x1xf32>
    %188 = vector.broadcast %187 : vector<1x1xf32> to vector<1x8xf32>
    %189 = vector.extract_strided_slice %155 {offsets = [0, 16], sizes = [1, 8], strides = [1, 1]} : vector<1x32xf32> to vector<1x8xf32>
    %cst_59 = arith.constant dense<0.000000e+00> : vector<1xf32>
    %190 = vector.multi_reduction <add>, %189, %cst_59 [1] : vector<1x8xf32> to vector<1xf32>
    %191 = vector.shape_cast %190 : vector<1xf32> to vector<1x1xf32>
    %192 = vector.shape_cast %191 : vector<1x1xf32> to vector<1x1xf32>
    %193 = vector.broadcast %192 : vector<1x1xf32> to vector<1x8xf32>
    %194 = vector.extract_strided_slice %155 {offsets = [0, 24], sizes = [1, 8], strides = [1, 1]} : vector<1x32xf32> to vector<1x8xf32>
    %cst_60 = arith.constant dense<0.000000e+00> : vector<1xf32>
    %195 = vector.multi_reduction <add>, %194, %cst_60 [1] : vector<1x8xf32> to vector<1xf32>
    %196 = vector.shape_cast %195 : vector<1xf32> to vector<1x1xf32>
    %197 = vector.shape_cast %196 : vector<1x1xf32> to vector<1x1xf32>
    %198 = vector.broadcast %197 : vector<1x1xf32> to vector<1x8xf32>
    %199 = tpu.concatenate %183, %188, %193, %198 in 1 : vector<1x8xf32>, vector<1x8xf32>, vector<1x8xf32>, vector<1x8xf32> -> vector<1x32xf32>
    %cst_61 = arith.constant 4.8828125E-4 : f32
    %200 = vector.broadcast %cst_61 : f32 to vector<1x32xf32>
    %201 = arith.mulf %199, %200 : vector<1x32xf32>
    %202 = arith.mulf %178, %178 : vector<1x32xf32>
    %203 = arith.subf %201, %202 : vector<1x32xf32>
    %cst_62 = arith.constant 9.99999974E-6 : f32
    %204 = vector.broadcast %cst_62 : f32 to vector<1x32xf32>
    %205 = arith.addf %203, %204 : vector<1x32xf32>
    %206 = math.rsqrt %205 : vector<1x32xf32>
    %207 = arith.mulf %138, %206 : vector<1x32xf32>
    %208 = arith.subf %137, %178 : vector<1x32xf32>
    %209 = arith.mulf %208, %207 : vector<1x32xf32>
    %210 = arith.addf %139, %209 : vector<1x32xf32>
    %211 = vector.broadcast %207 : vector<1x32xf32> to vector<256x32xf32>
    %212 = arith.mulf %136, %211 : vector<256x32xf32>
    %213 = vector.broadcast %210 : vector<1x32xf32> to vector<256x32xf32>
    %214 = arith.addf %212, %213 : vector<256x32xf32>
    %cst_63 = arith.constant 5.000000e-01 : f32
    %215 = vector.broadcast %cst_63 : f32 to vector<256x32xf32>
    %216 = arith.mulf %215, %214 : vector<256x32xf32>
    %cst_64 = arith.constant 0.707106769 : f32
    %217 = vector.broadcast %cst_64 : f32 to vector<256x32xf32>
    %218 = arith.mulf %214, %217 : vector<256x32xf32>
    %219 = math.erf %218 : vector<256x32xf32>
    %cst_65 = arith.constant 1.000000e+00 : f32
    %220 = vector.broadcast %cst_65 : f32 to vector<256x32xf32>
    %221 = arith.addf %220, %219 : vector<256x32xf32>
    %222 = arith.mulf %216, %221 : vector<256x32xf32>
    %c0_66 = arith.constant 0 : index
    %c0_67 = arith.constant 0 : index
    %c0_68 = arith.constant 0 : index
    %223 = vector.load %arg6[%c0_66, %c0_67, %c0_68] : memref<1x256x32xf32, #tpu.memory_space<vmem>>, vector<1x256x32xf32>
    %224 = vector.shape_cast %223 : vector<1x256x32xf32> to vector<256x32xf32>
    %225 = vector.shape_cast %222 : vector<256x32xf32> to vector<1x256x32xf32>
    tpu.vector_store %arg6[%c0_66, %c0_67, %c0_68], %225 {strides = array<i32>} : memref<1x256x32xf32, #tpu.memory_space<vmem>>, vector<1x256x32xf32>,
    return
  }
  func.func @transform_0(%arg0: i32) -> (i32, i32, i32, i32) {
    %c0_i32 = arith.constant 0 : i32
    %c0_i32_0 = arith.constant 0 : i32
    %c0_i32_1 = arith.constant 0 : i32
    %c0_i32_2 = arith.constant 0 : i32
    return %arg0, %c0_i32, %c0_i32_0, %c0_i32_1 : i32, i32, i32, i32
  }
  func.func @transform_1(%arg0: i32) -> (i32, i32) {
    %c0_i32 = arith.constant 0 : i32
    %c0_i32_0 = arith.constant 0 : i32
    %c0_i32_1 = arith.constant 0 : i32
    return %c0_i32, %c0_i32_0 : i32, i32
  }
  func.func @transform_2(%arg0: i32) -> (i32, i32) {
    %c0_i32 = arith.constant 0 : i32
    %c0_i32_0 = arith.constant 0 : i32
    %c0_i32_1 = arith.constant 0 : i32
    return %c0_i32, %c0_i32_0 : i32, i32
  }
  func.func @transform_3(%arg0: i32) -> (i32, i32) {
    %c0_i32 = arith.constant 0 : i32
    %c0_i32_0 = arith.constant 0 : i32
    %c0_i32_1 = arith.constant 0 : i32
    return %c0_i32, %c0_i32_0 : i32, i32
  }
  func.func @transform_4(%arg0: i32) -> (i32, i32) {
    %c0_i32 = arith.constant 0 : i32
    %c0_i32_0 = arith.constant 0 : i32
    %c0_i32_1 = arith.constant 0 : i32
    return %c0_i32, %c0_i32_0 : i32, i32
  }
  func.func @transform_5(%arg0: i32) -> (i32, i32, i32) {
    %c0_i32 = arith.constant 0 : i32
    %c0_i32_0 = arith.constant 0 : i32
    %c0_i32_1 = arith.constant 0 : i32
    return %arg0, %c0_i32, %c0_i32_0 : i32, i32, i32
  }
}

</mosaic_0001>

<llo_original>
// kernel: double_conv_forward.1
$region0: #{double_conv_forward.1}
  #allocation0 [shape = 'u32[]', space=smem, size = 0x4, offset = 0x4, fixed_abs, tag = 'smem constant byte address 0x4 - core index']
  #allocation1 [shape = 'u32[144,128]{1,0:T(1,128)}', space=vmem, size = 0x12000, scoped, tag = 'internal scratch']
  #allocation2 [shape = 'f32[18,18,32]{2,1,0:T(8,128)}', space=vmem, size = 0x36000, scoped, tag = 'scratch operand']
  %s0 = inlined_call_operand.vmem [shape: f32[2,18,18,4], index: 0, kind: input, shape index: {}]
  %s1 = inlined_call_operand.vmem [shape: bf16[36,32], index: 1, kind: input, shape index: {}]
  %s2 = inlined_call_operand.vmem [shape: f32[3,32], index: 2, kind: input, shape index: {}]
  %s3 = inlined_call_operand.vmem [shape: bf16[288,32], index: 3, kind: input, shape index: {}]
  %s4 = inlined_call_operand.vmem [shape: f32[3,32], index: 4, kind: input, shape index: {}]
  %s5 = inlined_call_operand.hbm [shape: f32[2,256,32], index: 5, kind: output, shape index: {}]
  %s6 = sld [smem:[#allocation0]]
  $region53: #{double_conv_forward.1} parent=0
    _
  %s8 = ssub.s32 1, %s6
  %s9 = scalar_select 0, %s8, %s6
  $region1: #{double_conv_forward.1} parent=0
    #allocation3 [shape = 'u8[262144]{0}', space=vmem, size = 0x40000, scoped, tag = 'output window, operand 0']
    #allocation4 [shape = 's32[2]{0}', space=sflag, size = 0x8, scoped, tag = 'scoped memory for double_conv_forward.1']
    %10 = vsyncpa [#allocation4], 0
    %s11 = scalar_lea.sflag [#allocation4], 1
    %12 = vsyncpa %s11, 0
    loop: start=0, step=1, limit=4
    $region2: #{double_conv_forward.1} parent=1 // loop_pre_header
      _
    $region3: #{double_conv_forward.1} parent=1 // loop_header
      %s14 = sphi 0, %s18
      %p15 = scmp.ge.s32.totalorder %s14, 4
      %s24 = sphi 0, %s26
      %s27 = sphi 0, %s24
      %s28 = sphi 0, %s27
      %s44 = sphi 0, %s28
      %s48 = sphi 0, %s48
      %s50 = sphi 0, %s48
      %s51 = sphi 0, %s50
      %s65 = sphi 0, %s51
      %s69 = sphi 0, %s69
      %s71 = sphi 0, %s69
      %s72 = sphi 0, %s71
      %s86 = sphi 0, %s72
      %s90 = sphi 0, %s90
      %s92 = sphi 0, %s90
      %s93 = sphi 0, %s92
      %s107 = sphi 0, %s93
      %s111 = sphi 0, %s111
      %s113 = sphi 0, %s111
      %s114 = sphi 0, %s113
      %s128 = sphi 0, %s114
      %s134 = sphi 0, %s136
      %s137 = sphi 0, %s134
      %s138 = sphi 0, %s137
      %s154 = sphi 0, %s138
    $region4: #{double_conv_forward.1} parent=1 // loop_header_branch
      %17 = sbr.rel (%p15) target = $region8
    $region5: #{double_conv_forward.1} parent=1 // loop_body
      %s19 = ssub.s32 %s14, 1
      %s20 = ssub.s32 %s14, 2
      %s21 = sadd.s32 %s14, 1
      %s22 = ssub.s32 %s14, %s21
      %p23 = scmp.eq.s32.totalorder %s22, 0
      %s25 = sadd.s32 %s24, 1
      %s26 = scalar_select %p23, %s24, %s25
      %p29 = pneg %p23
      %p30 = scmp.eq.s32.totalorder %s14, 1
      %p31 = por %p29, %p30
      %p32 = scmp.ne.s32.totalorder %s24, %s27
      %p33 = scmp.eq.s32.totalorder %s14, 0
      %p34 = por %p32, %p33
      %p35 = scmp.ne.s32.totalorder %s24, %s27
      %p36 = scmp.eq.s32.totalorder %s19, 1
      %p37 = por %p35, %p36
      %p38 = scmp.ne.s32.totalorder %s27, %s28
      %p39 = scmp.eq.s32.totalorder %s19, 0
      %p40 = por %p38, %p39
      %p41 = scmp.ne.s32.totalorder %s27, %s28
      %p42 = scmp.eq.s32.totalorder %s20, 1
      %p43 = por %p41, %p42
      %p45 = scmp.ne.s32.totalorder %s28, %s44
      %p46 = scmp.eq.s32.totalorder %s20, 0
      %p47 = por %p45, %p46
      %s49 = sadd.s32 %s48, 1
      %p52 = scmp.eq.s32.totalorder %s14, 1
      %p53 = scmp.ne.s32.totalorder %s48, %s50
      %p54 = scmp.eq.s32.totalorder %s14, 0
      %p55 = por %p53, %p54
      %p56 = scmp.ne.s32.totalorder %s48, %s50
      %p57 = scmp.eq.s32.totalorder %s19, 1
      %p58 = por %p56, %p57
      %p59 = scmp.ne.s32.totalorder %s50, %s51
      %p60 = scmp.eq.s32.totalorder %s19, 0
      %p61 = por %p59, %p60
      %p62 = scmp.ne.s32.totalorder %s50, %s51
      %p63 = scmp.eq.s32.totalorder %s20, 1
      %p64 = por %p62, %p63
      %p66 = scmp.ne.s32.totalorder %s51, %s65
      %p67 = scmp.eq.s32.totalorder %s20, 0
      %p68 = por %p66, %p67
      %s70 = sadd.s32 %s69, 1
      %p73 = scmp.eq.s32.totalorder %s14, 1
      %p74 = scmp.ne.s32.totalorder %s69, %s71
      %p75 = scmp.eq.s32.totalorder %s14, 0
      %p76 = por %p74, %p75
      %p77 = scmp.ne.s32.totalorder %s69, %s71
      %p78 = scmp.eq.s32.totalorder %s19, 1
      %p79 = por %p77, %p78
      %p80 = scmp.ne.s32.totalorder %s71, %s72
      %p81 = scmp.eq.s32.totalorder %s19, 0
      %p82 = por %p80, %p81
      %p83 = scmp.ne.s32.totalorder %s71, %s72
      %p84 = scmp.eq.s32.totalorder %s20, 1
      %p85 = por %p83, %p84
      %p87 = scmp.ne.s32.totalorder %s72, %s86
      %p88 = scmp.eq.s32.totalorder %s20, 0
      %p89 = por %p87, %p88
      %s91 = sadd.s32 %s90, 1
      %p94 = scmp.eq.s32.totalorder %s14, 1
      %p95 = scmp.ne.s32.totalorder %s90, %s92
      %p96 = scmp.eq.s32.totalorder %s14, 0
      %p97 = por %p95, %p96
      %p98 = scmp.ne.s32.totalorder %s90, %s92
      %p99 = scmp.eq.s32.totalorder %s19, 1
      %p100 = por %p98, %p99
      %p101 = scmp.ne.s32.totalorder %s92, %s93
      %p102 = scmp.eq.s32.totalorder %s19, 0
      %p103 = por %p101, %p102
      %p104 = scmp.ne.s32.totalorder %s92, %s93
      %p105 = scmp.eq.s32.totalorder %s20, 1
      %p106 = por %p104, %p105
      %p108 = scmp.ne.s32.totalorder %s93, %s107
      %p109 = scmp.eq.s32.totalorder %s20, 0
      %p110 = por %p108, %p109
      %s112 = sadd.s32 %s111, 1
      %p115 = scmp.eq.s32.totalorder %s14, 1
      %p116 = scmp.ne.s32.totalorder %s111, %s113
      %p117 = scmp.eq.s32.totalorder %s14, 0
      %p118 = por %p116, %p117
      %p119 = scmp.ne.s32.totalorder %s111, %s113
      %p120 = scmp.eq.s32.totalorder %s19, 1
      %p121 = por %p119, %p120
      %p122 = scmp.ne.s32.totalorder %s113, %s114
      %p123 = scmp.eq.s32.totalorder %s19, 0
      %p124 = por %p122, %p123
      %p125 = scmp.ne.s32.totalorder %s113, %s114
      %p126 = scmp.eq.s32.totalorder %s20, 1
      %p127 = por %p125, %p126
      %p129 = scmp.ne.s32.totalorder %s114, %s128
      %p130 = scmp.eq.s32.totalorder %s20, 0
      %p131 = por %p129, %p130
      %s132 = ssub.s32 %s14, %s21
      %p133 = scmp.eq.s32.totalorder %s132, 0
      %s135 = sadd.s32 %s134, 1
      %s136 = scalar_select %p133, %s134, %s135
      %p139 = pneg %p133
      %p140 = scmp.eq.s32.totalorder %s14, 1
      %p141 = por %p139, %p140
      %p142 = scmp.ne.s32.totalorder %s134, %s137
      %p143 = scmp.eq.s32.totalorder %s14, 0
      %p144 = por %p142, %p143
      %p145 = scmp.ne.s32.totalorder %s134, %s137
      %p146 = scmp.eq.s32.totalorder %s19, 1
      %p147 = por %p145, %p146
      %p148 = scmp.ne.s32.totalorder %s137, %s138
      %p149 = scmp.eq.s32.totalorder %s19, 0
      %p150 = por %p148, %p149
      %p151 = scmp.ne.s32.totalorder %s137, %s138
      %p152 = scmp.eq.s32.totalorder %s20, 1
      %p153 = por %p151, %p152
      %p155 = scmp.ne.s32.totalorder %s138, %s154
      %p156 = scmp.eq.s32.totalorder %s20, 0
      %p157 = por %p155, %p156
      %p158 = scmp.le.s32.totalorder 1, %s14
      %p159 = scmp.lt.s32.totalorder %s14, 3
      %p160 = pnand %p158, %p159
      %p161 = pneg %p160
      // Predicated region
      $region9: #{double_conv_forward.1} parent=5 // pred_check
        _
      $region10: #{double_conv_forward.1} parent=5 // pred_check_branch
        %163 = sbr.rel (%p160) target = $region12
      $region11: #{double_conv_forward.1} parent=5 // pred_region
        %s164 = ssub.s32 %s14, 1
        // Predicated region
        $region13: #{double_conv_forward.1} parent=11 // pred_check
          %p165 = pneg %p61
        $region14: #{double_conv_forward.1} parent=11 // pred_check_branch
          %167 = sbr.rel (%p165) target = $region16
        $region15: #{double_conv_forward.1} parent=11 // pred_region
          _
        $region16: #{double_conv_forward.1} parent=11 // pred_fallthru
          _
        // Predicated region
        $region17: #{double_conv_forward.1} parent=11 // pred_check
          %p168 = pneg %p82
        $region18: #{double_conv_forward.1} parent=11 // pred_check_branch
          %170 = sbr.rel (%p168) target = $region20
        $region19: #{double_conv_forward.1} parent=11 // pred_region
          _
        $region20: #{double_conv_forward.1} parent=11 // pred_fallthru
          _
        // Predicated region
        $region21: #{double_conv_forward.1} parent=11 // pred_check
          %p171 = pneg %p103
        $region22: #{double_conv_forward.1} parent=11 // pred_check_branch
          %173 = sbr.rel (%p171) target = $region24
        $region23: #{double_conv_forward.1} parent=11 // pred_region
          _
        $region24: #{double_conv_forward.1} parent=11 // pred_fallthru
          _
        // Predicated region
        $region25: #{double_conv_forward.1} parent=11 // pred_check
          %p174 = pneg %p124
        $region26: #{double_conv_forward.1} parent=11 // pred_check_branch
          %176 = sbr.rel (%p174) target = $region28
        $region27: #{double_conv_forward.1} parent=11 // pred_region
          _
        $region28: #{double_conv_forward.1} parent=11 // pred_fallthru
          _
      $region12: #{double_conv_forward.1} parent=5 // pred_fallthru
        _
      %p177 = scmp.lt.s32.totalorder %s14, 2
      // Predicated region
      $region29: #{double_conv_forward.1} parent=5 // pred_check
        %p178 = pneg %p177
      $region30: #{double_conv_forward.1} parent=5 // pred_check_branch
        %180 = sbr.rel (%p178) target = $region32
      $region31: #{double_conv_forward.1} parent=5 // pred_region
        // Predicated region
        $region33: #{double_conv_forward.1} parent=31 // pred_check
          %p181 = pneg %p34
        $region34: #{double_conv_forward.1} parent=31 // pred_check_branch
          %183 = sbr.rel (%p181) target = $region36
        $region35: #{double_conv_forward.1} parent=31 // pred_region
          %p184 = scmp.lt.s32.totalorder %s14, 1
          %s185 = scalar_select %p184, %s14, 1
          %s186 = smul.addr %s185, 54
          %s187 = smul.addr %s186, 8
          %s188 = scalar_lea.vmem %s0, %s187
        $region36: #{double_conv_forward.1} parent=31 // pred_fallthru
          _
      $region32: #{double_conv_forward.1} parent=5 // pred_fallthru
        _
      %p189 = scmp.le.s32.totalorder 1, %s14
      %p190 = scmp.lt.s32.totalorder %s14, 3
      %p191 = pnand %p189, %p190
      %p192 = pneg %p191
      // Predicated region
      $region37: #{double_conv_forward.1} parent=5 // pred_check
        _
      $region38: #{double_conv_forward.1} parent=5 // pred_check_branch
        %194 = sbr.rel (%p191) target = $region40
      $region39: #{double_conv_forward.1} parent=5 // pred_region
        %s195 = ssub.s32 %s14, 1
        %p196 = scmp.lt.s32.totalorder %s19, 1
        %s197 = scalar_select %p196, %s19, 1
        %s198 = smul.addr %s197, 54
        %s199 = smul.addr %s198, 8
        %s200 = scalar_lea.vmem %s0, %s199
        %p201 = pneg %p40
        %p202 = pneg %p37
        %p203 = pneg %p61
        %p204 = pneg %p58
        %p205 = pneg %p82
        %p206 = pneg %p79
        %p207 = pneg %p103
        %p208 = pneg %p100
        %p209 = pneg %p124
        %p210 = pneg %p121
        %p211 = pneg %p150
        %p212 = pneg %p147
        %s213 = sand.u32 %s137, 1
        %s214 = scalar_lea.sflag [#allocation4], %s213
        %s215 = sand.u32 %s137, 1
        %s216 = smul.addr %s215, 256
        %s217 = scalar_lea.vmem [#allocation3], %s216
        %p218 = scmp.lt.s32.totalorder %s19, 1
        %s219 = scalar_select %p218, %s19, 1
        %s220 = smul.addr %s219, 54
        %s221 = smul.addr %s220, 8
        %s222 = scalar_lea.vmem %s0, %s221
        %v224 = vld [vmem:[%s222] sm:$0xff]
        %v225 = vld [vmem:[%s222 + $0x8] sm:$0xff]
        %v226 = vld [vmem:[%s222 + $0x10] sm:$0x3]
        %v227 = vld [vmem:[%s222 + $0x18] sm:$0xff]
        %v228 = vld [vmem:[%s222 + $0x20] sm:$0xff]
        %v229 = vld [vmem:[%s222 + $0x28] sm:$0x3]
        %v230 = vld [vmem:[%s222 + $0x30] sm:$0xff]
        %v231 = vld [vmem:[%s222 + $0x38] sm:$0xff]
        %v232 = vld [vmem:[%s222 + $0x40] sm:$0x3]
        %v233 = vld [vmem:[%s222 + $0x48] sm:$0xff]
        %v234 = vld [vmem:[%s222 + $0x50] sm:$0xff]
        %v235 = vld [vmem:[%s222 + $0x58] sm:$0x3]
        %v236 = vld [vmem:[%s222 + $0x60] sm:$0xff]
        %v237 = vld [vmem:[%s222 + $0x68] sm:$0xff]
        %v238 = vld [vmem:[%s222 + $0x70] sm:$0x3]
        %v239 = vld [vmem:[%s222 + $0x78] sm:$0xff]
        %v240 = vld [vmem:[%s222 + $0x80] sm:$0xff]
        %v241 = vld [vmem:[%s222 + $0x88] sm:$0x3]
        %v242 = vld [vmem:[%s222 + $0x90] sm:$0xff]
        %v243 = vld [vmem:[%s222 + $0x98] sm:$0xff]
        %v244 = vld [vmem:[%s222 + $0xa0] sm:$0x3]
        %v245 = vld [vmem:[%s222 + $0xa8] sm:$0xff]
        %v246 = vld [vmem:[%s222 + $0xb0] sm:$0xff]
        %v247 = vld [vmem:[%s222 + $0xb8] sm:$0x3]
        %v248 = vld [vmem:[%s222 + $0xc0] sm:$0xff]
        %v249 = vld [vmem:[%s222 + $0xc8] sm:$0xff]
        %v250 = vld [vmem:[%s222 + $0xd0] sm:$0x3]
        %v251 = vld [vmem:[%s222 + $0xd8] sm:$0xff]
        %v252 = vld [vmem:[%s222 + $0xe0] sm:$0xff]
        %v253 = vld [vmem:[%s222 + $0xe8] sm:$0x3]
        %v254 = vld [vmem:[%s222 + $0xf0] sm:$0xff]
        %v255 = vld [vmem:[%s222 + $0xf8] sm:$0xff]
        %v256 = vld [vmem:[%s222 + $0x100] sm:$0x3]
        %v257 = vld [vmem:[%s222 + $0x108] sm:$0xff]
        %v258 = vld [vmem:[%s222 + $0x110] sm:$0xff]
        %v259 = vld [vmem:[%s222 + $0x118] sm:$0x3]
        %v260 = vld [vmem:[%s222 + $0x120] sm:$0xff]
        %v261 = vld [vmem:[%s222 + $0x128] sm:$0xff]
        %v262 = vld [vmem:[%s222 + $0x130] sm:$0x3]
        %v263 = vld [vmem:[%s222 + $0x138] sm:$0xff]
        %v264 = vld [vmem:[%s222 + $0x140] sm:$0xff]
        %v265 = vld [vmem:[%s222 + $0x148] sm:$0x3]
        %v266 = vld [vmem:[%s222 + $0x150] sm:$0xff]
        %v267 = vld [vmem:[%s222 + $0x158] sm:$0xff]
        %v268 = vld [vmem:[%s222 + $0x160] sm:$0x3]
        %v269 = vld [vmem:[%s222 + $0x168] sm:$0xff]
        %v270 = vld [vmem:[%s222 + $0x170] sm:$0xff]
        %v271 = vld [vmem:[%s222 + $0x178] sm:$0x3]
        %v272 = vld [vmem:[%s222 + $0x180] sm:$0xff]
        %v273 = vld [vmem:[%s222 + $0x188] sm:$0xff]
        %v274 = vld [vmem:[%s222 + $0x190] sm:$0x3]
        %v275 = vld [vmem:[%s222 + $0x198] sm:$0xff]
        %v276 = vld [vmem:[%s222 + $0x1a0] sm:$0xff]
        %v277 = vld [vmem:[%s222 + $0x1a8] sm:$0x3]
        %vm326 = vcmask 1046528
        %v327 = vrot.slane %v224, 1
        %v328 = vrot.slane %v225, 1
        %v329 = vsel %vm326, %v327, %v328
        %v330 = vrot.slane %v226, 1
        %v331 = vsel %vm326, %v328, %v330
        %v332 = vrot.slane %v227, 1
        %v333 = vrot.slane %v228, 1
        %v334 = vsel %vm326, %v332, %v333
        %v335 = vrot.slane %v229, 1
        %v336 = vsel %vm326, %v333, %v335
        %v337 = vrot.slane %v230, 1
        %v338 = vrot.slane %v231, 1
        %v339 = vsel %vm326, %v337, %v338
        %v340 = vrot.slane %v232, 1
        %v341 = vsel %vm326, %v338, %v340
        %v342 = vrot.slane %v233, 1
        %v343 = vrot.slane %v234, 1
        %v344 = vsel %vm326, %v342, %v343
        %v345 = vrot.slane %v235, 1
        %v346 = vsel %vm326, %v343, %v345
        %v347 = vrot.slane %v236, 1
        %v348 = vrot.slane %v237, 1
        %v349 = vsel %vm326, %v347, %v348
        %v350 = vrot.slane %v238, 1
        %v351 = vsel %vm326, %v348, %v350
        %v352 = vrot.slane %v239, 1
        %v353 = vrot.slane %v240, 1
        %v354 = vsel %vm326, %v352, %v353
        %v355 = vrot.slane %v241, 1
        %v356 = vsel %vm326, %v353, %v355
        %v357 = vrot.slane %v242, 1
        %v358 = vrot.slane %v243, 1
        %v359 = vsel %vm326, %v357, %v358
        %v360 = vrot.slane %v244, 1
        %v361 = vsel %vm326, %v358, %v360
        %v362 = vrot.slane %v245, 1
        %v363 = vrot.slane %v246, 1
        %v364 = vsel %vm326, %v362, %v363
        %v365 = vrot.slane %v247, 1
        %v366 = vsel %vm326, %v363, %v365
        %v367 = vrot.slane %v248, 1
        %v368 = vrot.slane %v249, 1
        %v369 = vsel %vm326, %v367, %v368
        %v370 = vrot.slane %v250, 1
        %v371 = vsel %vm326, %v368, %v370
        %v372 = vrot.slane %v251, 1
        %v373 = vrot.slane %v252, 1
        %v374 = vsel %vm326, %v372, %v373
        %v375 = vrot.slane %v253, 1
        %v376 = vsel %vm326, %v373, %v375
        %v377 = vrot.slane %v254, 1
        %v378 = vrot.slane %v255, 1
        %v379 = vsel %vm326, %v377, %v378
        %v380 = vrot.slane %v256, 1
        %v381 = vsel %vm326, %v378, %v380
        %v382 = vrot.slane %v257, 1
        %v383 = vrot.slane %v258, 1
        %v384 = vsel %vm326, %v382, %v383
        %v385 = vrot.slane %v259, 1
        %v386 = vsel %vm326, %v383, %v385
        %v387 = vrot.slane %v260, 1
        %v388 = vrot.slane %v261, 1
        %v389 = vsel %vm326, %v387, %v388
        %v390 = vrot.slane %v262, 1
        %v391 = vsel %vm326, %v388, %v390
        %v392 = vrot.slane %v263, 1
        %v393 = vrot.slane %v264, 1
        %v394 = vsel %vm326, %v392, %v393
        %v395 = vrot.slane %v265, 1
        %v396 = vsel %vm326, %v393, %v395
        %v397 = vrot.slane %v266, 1
        %v398 = vrot.slane %v267, 1
        %v399 = vsel %vm326, %v397, %v398
        %v400 = vrot.slane %v268, 1
        %v401 = vsel %vm326, %v398, %v400
        %v402 = vrot.slane %v269, 1
        %v403 = vrot.slane %v270, 1
        %v404 = vsel %vm326, %v402, %v403
        %v405 = vrot.slane %v271, 1
        %v406 = vsel %vm326, %v403, %v405
        %vm407 = vcmask 1045504
        %v408 = vrot.slane %v224, 2
        %v409 = vrot.slane %v225, 2
        %v410 = vsel %vm407, %v408, %v409
        %v411 = vrot.slane %v226, 2
        %v412 = vsel %vm407, %v409, %v411
        %v413 = vrot.slane %v227, 2
        %v414 = vrot.slane %v228, 2
        %v415 = vsel %vm407, %v413, %v414
        %v416 = vrot.slane %v229, 2
        %v417 = vsel %vm407, %v414, %v416
        %v418 = vrot.slane %v230, 2
        %v419 = vrot.slane %v231, 2
        %v420 = vsel %vm407, %v418, %v419
        %v421 = vrot.slane %v232, 2
        %v422 = vsel %vm407, %v419, %v421
        %v423 = vrot.slane %v233, 2
        %v424 = vrot.slane %v234, 2
        %v425 = vsel %vm407, %v423, %v424
        %v426 = vrot.slane %v235, 2
        %v427 = vsel %vm407, %v424, %v426
        %v428 = vrot.slane %v236, 2
        %v429 = vrot.slane %v237, 2
        %v430 = vsel %vm407, %v428, %v429
        %v431 = vrot.slane %v238, 2
        %v432 = vsel %vm407, %v429, %v431
        %v433 = vrot.slane %v239, 2
        %v434 = vrot.slane %v240, 2
        %v435 = vsel %vm407, %v433, %v434
        %v436 = vrot.slane %v241, 2
        %v437 = vsel %vm407, %v434, %v436
        %v438 = vrot.slane %v242, 2
        %v439 = vrot.slane %v243, 2
        %v440 = vsel %vm407, %v438, %v439
        %v441 = vrot.slane %v244, 2
        %v442 = vsel %vm407, %v439, %v441
        %v443 = vrot.slane %v245, 2
        %v444 = vrot.slane %v246, 2
        %v445 = vsel %vm407, %v443, %v444
        %v446 = vrot.slane %v247, 2
        %v447 = vsel %vm407, %v444, %v446
        %v448 = vrot.slane %v248, 2
        %v449 = vrot.slane %v249, 2
        %v450 = vsel %vm407, %v448, %v449
        %v451 = vrot.slane %v250, 2
        %v452 = vsel %vm407, %v449, %v451
        %v453 = vrot.slane %v251, 2
        %v454 = vrot.slane %v252, 2
        %v455 = vsel %vm407, %v453, %v454
        %v456 = vrot.slane %v253, 2
        %v457 = vsel %vm407, %v454, %v456
        %v458 = vrot.slane %v254, 2
        %v459 = vrot.slane %v255, 2
        %v460 = vsel %vm407, %v458, %v459
        %v461 = vrot.slane %v256, 2
        %v462 = vsel %vm407, %v459, %v461
        %v463 = vrot.slane %v257, 2
        %v464 = vrot.slane %v258, 2
        %v465 = vsel %vm407, %v463, %v464
        %v466 = vrot.slane %v259, 2
        %v467 = vsel %vm407, %v464, %v466
        %v468 = vrot.slane %v260, 2
        %v469 = vrot.slane %v261, 2
        %v470 = vsel %vm407, %v468, %v469
        %v471 = vrot.slane %v262, 2
        %v472 = vsel %vm407, %v469, %v471
        %v473 = vrot.slane %v263, 2
        %v474 = vrot.slane %v264, 2
        %v475 = vsel %vm407, %v473, %v474
        %v476 = vrot.slane %v265, 2
        %v477 = vsel %vm407, %v474, %v476
        %v478 = vrot.slane %v266, 2
        %v479 = vrot.slane %v267, 2
        %v480 = vsel %vm407, %v478, %v479
        %v481 = vrot.slane %v268, 2
        %v482 = vsel %vm407, %v479, %v481
        %v483 = vrot.slane %v269, 2
        %v484 = vrot.slane %v270, 2
        %v485 = vsel %vm407, %v483, %v484
        %v486 = vrot.slane %v271, 2
        %v487 = vsel %vm407, %v484, %v486
        %v491 = vrot.slane %v272, 1
        %v492 = vrot.slane %v273, 1
        %v493 = vsel %vm326, %v491, %v492
        %v494 = vrot.slane %v274, 1
        %v495 = vsel %vm326, %v492, %v494
        %v496 = vrot.slane %v272, 2
        %v497 = vrot.slane %v273, 2
        %v498 = vsel %vm407, %v496, %v497
        %v499 = vrot.slane %v274, 2
        %v500 = vsel %vm407, %v497, %v499
        %v504 = vrot.slane %v275, 1
        %v505 = vrot.slane %v276, 1
        %v506 = vsel %vm326, %v504, %v505
        %v507 = vrot.slane %v277, 1
        %v508 = vsel %vm326, %v505, %v507
        %v509 = vrot.slane %v275, 2
        %v510 = vrot.slane %v276, 2
        %v511 = vsel %vm407, %v509, %v510
        %v512 = vrot.slane %v277, 2
        %v513 = vsel %vm407, %v510, %v512
        %514 = vrot.lane.b32.xlu0 %v329, 4
        %v515 = vpop.permute.xlu0 %514
        %516 = vrot.lane.b32.xlu0 %v331, 4
        %v517 = vpop.permute.xlu0 %516
        %518 = vrot.lane.b32.xlu0 %v334, 4
        %v519 = vpop.permute.xlu0 %518
        %520 = vrot.lane.b32.xlu0 %v336, 4
        %v521 = vpop.permute.xlu0 %520
        %522 = vrot.lane.b32.xlu0 %v339, 4
        %v523 = vpop.permute.xlu0 %522
        %524 = vrot.lane.b32.xlu0 %v341, 4
        %v525 = vpop.permute.xlu0 %524
        %526 = vrot.lane.b32.xlu0 %v344, 4
        %v527 = vpop.permute.xlu0 %526
        %528 = vrot.lane.b32.xlu0 %v346, 4
        %v529 = vpop.permute.xlu0 %528
        %530 = vrot.lane.b32.xlu0 %v349, 4
        %v531 = vpop.permute.xlu0 %530
        %532 = vrot.lane.b32.xlu0 %v351, 4
        %v533 = vpop.permute.xlu0 %532
        %534 = vrot.lane.b32.xlu0 %v354, 4
        %v535 = vpop.permute.xlu0 %534
        %536 = vrot.lane.b32.xlu0 %v356, 4
        %v537 = vpop.permute.xlu0 %536
        %538 = vrot.lane.b32.xlu0 %v359, 4
        %v539 = vpop.permute.xlu0 %538
        %540 = vrot.lane.b32.xlu0 %v361, 4
        %v541 = vpop.permute.xlu0 %540
        %542 = vrot.lane.b32.xlu0 %v364, 4
        %v543 = vpop.permute.xlu0 %542
        %544 = vrot.lane.b32.xlu0 %v366, 4
        %v545 = vpop.permute.xlu0 %544
        %546 = vrot.lane.b32.xlu0 %v369, 4
        %v547 = vpop.permute.xlu0 %546
        %548 = vrot.lane.b32.xlu0 %v371, 4
        %v549 = vpop.permute.xlu0 %548
        %550 = vrot.lane.b32.xlu0 %v374, 4
        %v551 = vpop.permute.xlu0 %550
        %552 = vrot.lane.b32.xlu0 %v376, 4
        %v553 = vpop.permute.xlu0 %552
        %554 = vrot.lane.b32.xlu0 %v379, 4
        %v555 = vpop.permute.xlu0 %554
        %556 = vrot.lane.b32.xlu0 %v381, 4
        %v557 = vpop.permute.xlu0 %556
        %558 = vrot.lane.b32.xlu0 %v384, 4
        %v559 = vpop.permute.xlu0 %558
        %560 = vrot.lane.b32.xlu0 %v386, 4
        %v561 = vpop.permute.xlu0 %560
        %562 = vrot.lane.b32.xlu0 %v389, 4
        %v563 = vpop.permute.xlu0 %562
        %564 = vrot.lane.b32.xlu0 %v391, 4
        %v565 = vpop.permute.xlu0 %564
        %566 = vrot.lane.b32.xlu0 %v394, 4
        %v567 = vpop.permute.xlu0 %566
        %568 = vrot.lane.b32.xlu0 %v396, 4
        %v569 = vpop.permute.xlu0 %568
        %570 = vrot.lane.b32.xlu0 %v399, 4
        %v571 = vpop.permute.xlu0 %570
        %572 = vrot.lane.b32.xlu0 %v401, 4
        %v573 = vpop.permute.xlu0 %572
        %574 = vrot.lane.b32.xlu0 %v404, 4
        %v575 = vpop.permute.xlu0 %574
        %576 = vrot.lane.b32.xlu0 %v406, 4
        %v577 = vpop.permute.xlu0 %576
        %610 = vrot.lane.b32.xlu0 %v410, 8
        %v611 = vpop.permute.xlu0 %610
        %612 = vrot.lane.b32.xlu0 %v412, 8
        %v613 = vpop.permute.xlu0 %612
        %614 = vrot.lane.b32.xlu0 %v415, 8
        %v615 = vpop.permute.xlu0 %614
        %616 = vrot.lane.b32.xlu0 %v417, 8
        %v617 = vpop.permute.xlu0 %616
        %618 = vrot.lane.b32.xlu0 %v420, 8
        %v619 = vpop.permute.xlu0 %618
        %620 = vrot.lane.b32.xlu0 %v422, 8
        %v621 = vpop.permute.xlu0 %620
        %622 = vrot.lane.b32.xlu0 %v425, 8
        %v623 = vpop.permute.xlu0 %622
        %624 = vrot.lane.b32.xlu0 %v427, 8
        %v625 = vpop.permute.xlu0 %624
        %626 = vrot.lane.b32.xlu0 %v430, 8
        %v627 = vpop.permute.xlu0 %626
        %628 = vrot.lane.b32.xlu0 %v432, 8
        %v629 = vpop.permute.xlu0 %628
        %630 = vrot.lane.b32.xlu0 %v435, 8
        %v631 = vpop.permute.xlu0 %630
        %632 = vrot.lane.b32.xlu0 %v437, 8
        %v633 = vpop.permute.xlu0 %632
        %634 = vrot.lane.b32.xlu0 %v440, 8
        %v635 = vpop.permute.xlu0 %634
        %636 = vrot.lane.b32.xlu0 %v442, 8
        %v637 = vpop.permute.xlu0 %636
        %638 = vrot.lane.b32.xlu0 %v445, 8
        %v639 = vpop.permute.xlu0 %638
        %640 = vrot.lane.b32.xlu0 %v447, 8
        %v641 = vpop.permute.xlu0 %640
        %642 = vrot.lane.b32.xlu0 %v450, 8
        %v643 = vpop.permute.xlu0 %642
        %644 = vrot.lane.b32.xlu0 %v452, 8
        %v645 = vpop.permute.xlu0 %644
        %646 = vrot.lane.b32.xlu0 %v455, 8
        %v647 = vpop.permute.xlu0 %646
        %648 = vrot.lane.b32.xlu0 %v457, 8
        %v649 = vpop.permute.xlu0 %648
        %650 = vrot.lane.b32.xlu0 %v460, 8
        %v651 = vpop.permute.xlu0 %650
        %652 = vrot.lane.b32.xlu0 %v462, 8
        %v653 = vpop.permute.xlu0 %652
        %654 = vrot.lane.b32.xlu0 %v465, 8
        %v655 = vpop.permute.xlu0 %654
        %656 = vrot.lane.b32.xlu0 %v467, 8
        %v657 = vpop.permute.xlu0 %656
        %658 = vrot.lane.b32.xlu0 %v470, 8
        %v659 = vpop.permute.xlu0 %658
        %660 = vrot.lane.b32.xlu0 %v472, 8
        %v661 = vpop.permute.xlu0 %660
        %662 = vrot.lane.b32.xlu0 %v475, 8
        %v663 = vpop.permute.xlu0 %662
        %664 = vrot.lane.b32.xlu0 %v477, 8
        %v665 = vpop.permute.xlu0 %664
        %666 = vrot.lane.b32.xlu0 %v480, 8
        %v667 = vpop.permute.xlu0 %666
        %668 = vrot.lane.b32.xlu0 %v482, 8
        %v669 = vpop.permute.xlu0 %668
        %670 = vrot.lane.b32.xlu0 %v485, 8
        %v671 = vpop.permute.xlu0 %670
        %672 = vrot.lane.b32.xlu0 %v487, 8
        %v673 = vpop.permute.xlu0 %672
        %706 = vrot.lane.b32.xlu0 %v227, 12
        %v707 = vpop.permute.xlu0 %706
        %708 = vrot.lane.b32.xlu0 %v228, 12
        %v709 = vpop.permute.xlu0 %708
        %710 = vrot.lane.b32.xlu0 %v230, 12
        %v711 = vpop.permute.xlu0 %710
        %712 = vrot.lane.b32.xlu0 %v231, 12
        %v713 = vpop.permute.xlu0 %712
        %714 = vrot.lane.b32.xlu0 %v233, 12
        %v715 = vpop.permute.xlu0 %714
        %716 = vrot.lane.b32.xlu0 %v234, 12
        %v717 = vpop.permute.xlu0 %716
        %718 = vrot.lane.b32.xlu0 %v236, 12
        %v719 = vpop.permute.xlu0 %718
        %720 = vrot.lane.b32.xlu0 %v237, 12
        %v721 = vpop.permute.xlu0 %720
        %722 = vrot.lane.b32.xlu0 %v239, 12
        %v723 = vpop.permute.xlu0 %722
        %724 = vrot.lane.b32.xlu0 %v240, 12
        %v725 = vpop.permute.xlu0 %724
        %726 = vrot.lane.b32.xlu0 %v242, 12
        %v727 = vpop.permute.xlu0 %726
        %728 = vrot.lane.b32.xlu0 %v243, 12
        %v729 = vpop.permute.xlu0 %728
        %730 = vrot.lane.b32.xlu0 %v245, 12
        %v731 = vpop.permute.xlu0 %730
        %732 = vrot.lane.b32.xlu0 %v246, 12
        %v733 = vpop.permute.xlu0 %732
        %734 = vrot.lane.b32.xlu0 %v248, 12
        %v735 = vpop.permute.xlu0 %734
        %736 = vrot.lane.b32.xlu0 %v249, 12
        %v737 = vpop.permute.xlu0 %736
        %738 = vrot.lane.b32.xlu0 %v251, 12
        %v739 = vpop.permute.xlu0 %738
        %740 = vrot.lane.b32.xlu0 %v252, 12
        %v741 = vpop.permute.xlu0 %740
        %742 = vrot.lane.b32.xlu0 %v254, 12
        %v743 = vpop.permute.xlu0 %742
        %744 = vrot.lane.b32.xlu0 %v255, 12
        %v745 = vpop.permute.xlu0 %744
        %746 = vrot.lane.b32.xlu0 %v257, 12
        %v747 = vpop.permute.xlu0 %746
        %748 = vrot.lane.b32.xlu0 %v258, 12
        %v749 = vpop.permute.xlu0 %748
        %750 = vrot.lane.b32.xlu0 %v260, 12
        %v751 = vpop.permute.xlu0 %750
        %752 = vrot.lane.b32.xlu0 %v261, 12
        %v753 = vpop.permute.xlu0 %752
        %754 = vrot.lane.b32.xlu0 %v263, 12
        %v755 = vpop.permute.xlu0 %754
        %756 = vrot.lane.b32.xlu0 %v264, 12
        %v757 = vpop.permute.xlu0 %756
        %758 = vrot.lane.b32.xlu0 %v266, 12
        %v759 = vpop.permute.xlu0 %758
        %760 = vrot.lane.b32.xlu0 %v267, 12
        %v761 = vpop.permute.xlu0 %760
        %762 = vrot.lane.b32.xlu0 %v269, 12
        %v763 = vpop.permute.xlu0 %762
        %764 = vrot.lane.b32.xlu0 %v270, 12
        %v765 = vpop.permute.xlu0 %764
        %766 = vrot.lane.b32.xlu0 %v272, 12
        %v767 = vpop.permute.xlu0 %766
        %768 = vrot.lane.b32.xlu0 %v273, 12
        %v769 = vpop.permute.xlu0 %768
        %802 = vrot.lane.b32.xlu0 %v334, 16
        %v803 = vpop.permute.xlu0 %802
        %804 = vrot.lane.b32.xlu0 %v336, 16
        %v805 = vpop.permute.xlu0 %804
        %806 = vrot.lane.b32.xlu0 %v339, 16
        %v807 = vpop.permute.xlu0 %806
        %808 = vrot.lane.b32.xlu0 %v341, 16
        %v809 = vpop.permute.xlu0 %808
        %810 = vrot.lane.b32.xlu0 %v344, 16
        %v811 = vpop.permute.xlu0 %810
        %812 = vrot.lane.b32.xlu0 %v346, 16
        %v813 = vpop.permute.xlu0 %812
        %814 = vrot.lane.b32.xlu0 %v349, 16
        %v815 = vpop.permute.xlu0 %814
        %816 = vrot.lane.b32.xlu0 %v351, 16
        %v817 = vpop.permute.xlu0 %816
        %818 = vrot.lane.b32.xlu0 %v354, 16
        %v819 = vpop.permute.xlu0 %818
        %820 = vrot.lane.b32.xlu0 %v356, 16
        %v821 = vpop.permute.xlu0 %820
        %822 = vrot.lane.b32.xlu0 %v359, 16
        %v823 = vpop.permute.xlu0 %822
        %824 = vrot.lane.b32.xlu0 %v361, 16
        %v825 = vpop.permute.xlu0 %824
        %826 = vrot.lane.b32.xlu0 %v364, 16
        %v827 = vpop.permute.xlu0 %826
        %828 = vrot.lane.b32.xlu0 %v366, 16
        %v829 = vpop.permute.xlu0 %828
        %830 = vrot.lane.b32.xlu0 %v369, 16
        %v831 = vpop.permute.xlu0 %830
        %832 = vrot.lane.b32.xlu0 %v371, 16
        %v833 = vpop.permute.xlu0 %832
        %834 = vrot.lane.b32.xlu0 %v374, 16
        %v835 = vpop.permute.xlu0 %834
        %836 = vrot.lane.b32.xlu0 %v376, 16
        %v837 = vpop.permute.xlu0 %836
        %838 = vrot.lane.b32.xlu0 %v379, 16
        %v839 = vpop.permute.xlu0 %838
        %840 = vrot.lane.b32.xlu0 %v381, 16
        %v841 = vpop.permute.xlu0 %840
        %842 = vrot.lane.b32.xlu0 %v384, 16
        %v843 = vpop.permute.xlu0 %842
        %844 = vrot.lane.b32.xlu0 %v386, 16
        %v845 = vpop.permute.xlu0 %844
        %846 = vrot.lane.b32.xlu0 %v389, 16
        %v847 = vpop.permute.xlu0 %846
        %848 = vrot.lane.b32.xlu0 %v391, 16
        %v849 = vpop.permute.xlu0 %848
        %850 = vrot.lane.b32.xlu0 %v394, 16
        %v851 = vpop.permute.xlu0 %850
        %852 = vrot.lane.b32.xlu0 %v396, 16
        %v853 = vpop.permute.xlu0 %852
        %854 = vrot.lane.b32.xlu0 %v399, 16
        %v855 = vpop.permute.xlu0 %854
        %856 = vrot.lane.b32.xlu0 %v401, 16
        %v857 = vpop.permute.xlu0 %856
        %858 = vrot.lane.b32.xlu0 %v404, 16
        %v859 = vpop.permute.xlu0 %858
        %860 = vrot.lane.b32.xlu0 %v406, 16
        %v861 = vpop.permute.xlu0 %860
        %862 = vrot.lane.b32.xlu0 %v493, 16
        %v863 = vpop.permute.xlu0 %862
        %864 = vrot.lane.b32.xlu0 %v495, 16
        %v865 = vpop.permute.xlu0 %864
        %898 = vrot.lane.b32.xlu0 %v415, 20
        %v899 = vpop.permute.xlu0 %898
        %900 = vrot.lane.b32.xlu0 %v417, 20
        %v901 = vpop.permute.xlu0 %900
        %902 = vrot.lane.b32.xlu0 %v420, 20
        %v903 = vpop.permute.xlu0 %902
        %904 = vrot.lane.b32.xlu0 %v422, 20
        %v905 = vpop.permute.xlu0 %904
        %906 = vrot.lane.b32.xlu0 %v425, 20
        %v907 = vpop.permute.xlu0 %906
        %908 = vrot.lane.b32.xlu0 %v427, 20
        %v909 = vpop.permute.xlu0 %908
        %910 = vrot.lane.b32.xlu0 %v430, 20
        %v911 = vpop.permute.xlu0 %910
        %912 = vrot.lane.b32.xlu0 %v432, 20
        %v913 = vpop.permute.xlu0 %912
        %914 = vrot.lane.b32.xlu0 %v435, 20
        %v915 = vpop.permute.xlu0 %914
        %916 = vrot.lane.b32.xlu0 %v437, 20
        %v917 = vpop.permute.xlu0 %916
        %918 = vrot.lane.b32.xlu0 %v440, 20
        %v919 = vpop.permute.xlu0 %918
        %920 = vrot.lane.b32.xlu0 %v442, 20
        %v921 = vpop.permute.xlu0 %920
        %922 = vrot.lane.b32.xlu0 %v445, 20
        %v923 = vpop.permute.xlu0 %922
        %924 = vrot.lane.b32.xlu0 %v447, 20
        %v925 = vpop.permute.xlu0 %924
        %926 = vrot.lane.b32.xlu0 %v450, 20
        %v927 = vpop.permute.xlu0 %926
        %928 = vrot.lane.b32.xlu0 %v452, 20
        %v929 = vpop.permute.xlu0 %928
        %930 = vrot.lane.b32.xlu0 %v455, 20
        %v931 = vpop.permute.xlu0 %930
        %932 = vrot.lane.b32.xlu0 %v457, 20
        %v933 = vpop.permute.xlu0 %932
        %934 = vrot.lane.b32.xlu0 %v460, 20
        %v935 = vpop.permute.xlu0 %934
        %936 = vrot.lane.b32.xlu0 %v462, 20
        %v937 = vpop.permute.xlu0 %936
        %938 = vrot.lane.b32.xlu0 %v465, 20
        %v939 = vpop.permute.xlu0 %938
        %940 = vrot.lane.b32.xlu0 %v467, 20
        %v941 = vpop.permute.xlu0 %940
        %942 = vrot.lane.b32.xlu0 %v470, 20
        %v943 = vpop.permute.xlu0 %942
        %944 = vrot.lane.b32.xlu0 %v472, 20
        %v945 = vpop.permute.xlu0 %944
        %946 = vrot.lane.b32.xlu0 %v475, 20
        %v947 = vpop.permute.xlu0 %946
        %948 = vrot.lane.b32.xlu0 %v477, 20
        %v949 = vpop.permute.xlu0 %948
        %950 = vrot.lane.b32.xlu0 %v480, 20
        %v951 = vpop.permute.xlu0 %950
        %952 = vrot.lane.b32.xlu0 %v482, 20
        %v953 = vpop.permute.xlu0 %952
        %954 = vrot.lane.b32.xlu0 %v485, 20
        %v955 = vpop.permute.xlu0 %954
        %956 = vrot.lane.b32.xlu0 %v487, 20
        %v957 = vpop.permute.xlu0 %956
        %958 = vrot.lane.b32.xlu0 %v498, 20
        %v959 = vpop.permute.xlu0 %958
        %960 = vrot.lane.b32.xlu0 %v500, 20
        %v961 = vpop.permute.xlu0 %960
        %994 = vrot.lane.b32.xlu0 %v230, 24
        %v995 = vpop.permute.xlu0 %994
        %996 = vrot.lane.b32.xlu0 %v231, 24
        %v997 = vpop.permute.xlu0 %996
        %998 = vrot.lane.b32.xlu0 %v233, 24
        %v999 = vpop.permute.xlu0 %998
        %1000 = vrot.lane.b32.xlu0 %v234, 24
        %v1001 = vpop.permute.xlu0 %1000
        %1002 = vrot.lane.b32.xlu0 %v236, 24
        %v1003 = vpop.permute.xlu0 %1002
        %1004 = vrot.lane.b32.xlu0 %v237, 24
        %v1005 = vpop.permute.xlu0 %1004
        %1006 = vrot.lane.b32.xlu0 %v239, 24
        %v1007 = vpop.permute.xlu0 %1006
        %1008 = vrot.lane.b32.xlu0 %v240, 24
        %v1009 = vpop.permute.xlu0 %1008
        %1010 = vrot.lane.b32.xlu0 %v242, 24
        %v1011 = vpop.permute.xlu0 %1010
        %1012 = vrot.lane.b32.xlu0 %v243, 24
        %v1013 = vpop.permute.xlu0 %1012
        %1014 = vrot.lane.b32.xlu0 %v245, 24
        %v1015 = vpop.permute.xlu0 %1014
        %1016 = vrot.lane.b32.xlu0 %v246, 24
        %v1017 = vpop.permute.xlu0 %1016
        %1018 = vrot.lane.b32.xlu0 %v248, 24
        %v1019 = vpop.permute.xlu0 %1018
        %1020 = vrot.lane.b32.xlu0 %v249, 24
        %v1021 = vpop.permute.xlu0 %1020
        %1022 = vrot.lane.b32.xlu0 %v251, 24
        %v1023 = vpop.permute.xlu0 %1022
        %1024 = vrot.lane.b32.xlu0 %v252, 24
        %v1025 = vpop.permute.xlu0 %1024
        %1026 = vrot.lane.b32.xlu0 %v254, 24
        %v1027 = vpop.permute.xlu0 %1026
        %1028 = vrot.lane.b32.xlu0 %v255, 24
        %v1029 = vpop.permute.xlu0 %1028
        %1030 = vrot.lane.b32.xlu0 %v257, 24
        %v1031 = vpop.permute.xlu0 %1030
        %1032 = vrot.lane.b32.xlu0 %v258, 24
        %v1033 = vpop.permute.xlu0 %1032
        %1034 = vrot.lane.b32.xlu0 %v260, 24
        %v1035 = vpop.permute.xlu0 %1034
        %1036 = vrot.lane.b32.xlu0 %v261, 24
        %v1037 = vpop.permute.xlu0 %1036
        %1038 = vrot.lane.b32.xlu0 %v263, 24
        %v1039 = vpop.permute.xlu0 %1038
        %1040 = vrot.lane.b32.xlu0 %v264, 24
        %v1041 = vpop.permute.xlu0 %1040
        %1042 = vrot.lane.b32.xlu0 %v266, 24
        %v1043 = vpop.permute.xlu0 %1042
        %1044 = vrot.lane.b32.xlu0 %v267, 24
        %v1045 = vpop.permute.xlu0 %1044
        %1046 = vrot.lane.b32.xlu0 %v269, 24
        %v1047 = vpop.permute.xlu0 %1046
        %1048 = vrot.lane.b32.xlu0 %v270, 24
        %v1049 = vpop.permute.xlu0 %1048
        %1050 = vrot.lane.b32.xlu0 %v272, 24
        %v1051 = vpop.permute.xlu0 %1050
        %1052 = vrot.lane.b32.xlu0 %v273, 24
        %v1053 = vpop.permute.xlu0 %1052
        %1054 = vrot.lane.b32.xlu0 %v275, 24
        %v1055 = vpop.permute.xlu0 %1054
        %1056 = vrot.lane.b32.xlu0 %v276, 24
        %v1057 = vpop.permute.xlu0 %1056
        %1090 = vrot.lane.b32.xlu0 %v339, 28
        %v1091 = vpop.permute.xlu0 %1090
        %1092 = vrot.lane.b32.xlu0 %v341, 28
        %v1093 = vpop.permute.xlu0 %1092
        %1094 = vrot.lane.b32.xlu0 %v344, 28
        %v1095 = vpop.permute.xlu0 %1094
        %1096 = vrot.lane.b32.xlu0 %v346, 28
        %v1097 = vpop.permute.xlu0 %1096
        %1098 = vrot.lane.b32.xlu0 %v349, 28
        %v1099 = vpop.permute.xlu0 %1098
        %1100 = vrot.lane.b32.xlu0 %v351, 28
        %v1101 = vpop.permute.xlu0 %1100
        %1102 = vrot.lane.b32.xlu0 %v354, 28
        %v1103 = vpop.permute.xlu0 %1102
        %1104 = vrot.lane.b32.xlu0 %v356, 28
        %v1105 = vpop.permute.xlu0 %1104
        %1106 = vrot.lane.b32.xlu0 %v359, 28
        %v1107 = vpop.permute.xlu0 %1106
        %1108 = vrot.lane.b32.xlu0 %v361, 28
        %v1109 = vpop.permute.xlu0 %1108
        %1110 = vrot.lane.b32.xlu0 %v364, 28
        %v1111 = vpop.permute.xlu0 %1110
        %1112 = vrot.lane.b32.xlu0 %v366, 28
        %v1113 = vpop.permute.xlu0 %1112
        %1114 = vrot.lane.b32.xlu0 %v369, 28
        %v1115 = vpop.permute.xlu0 %1114
        %1116 = vrot.lane.b32.xlu0 %v371, 28
        %v1117 = vpop.permute.xlu0 %1116
        %1118 = vrot.lane.b32.xlu0 %v374, 28
        %v1119 = vpop.permute.xlu0 %1118
        %1120 = vrot.lane.b32.xlu0 %v376, 28
        %v1121 = vpop.permute.xlu0 %1120
        %1122 = vrot.lane.b32.xlu0 %v379, 28
        %v1123 = vpop.permute.xlu0 %1122
        %1124 = vrot.lane.b32.xlu0 %v381, 28
        %v1125 = vpop.permute.xlu0 %1124
        %1126 = vrot.lane.b32.xlu0 %v384, 28
        %v1127 = vpop.permute.xlu0 %1126
        %1128 = vrot.lane.b32.xlu0 %v386, 28
        %v1129 = vpop.permute.xlu0 %1128
        %1130 = vrot.lane.b32.xlu0 %v389, 28
        %v1131 = vpop.permute.xlu0 %1130
        %1132 = vrot.lane.b32.xlu0 %v391, 28
        %v1133 = vpop.permute.xlu0 %1132
        %1134 = vrot.lane.b32.xlu0 %v394, 28
        %v1135 = vpop.permute.xlu0 %1134
        %1136 = vrot.lane.b32.xlu0 %v396, 28
        %v1137 = vpop.permute.xlu0 %1136
        %1138 = vrot.lane.b32.xlu0 %v399, 28
        %v1139 = vpop.permute.xlu0 %1138
        %1140 = vrot.lane.b32.xlu0 %v401, 28
        %v1141 = vpop.permute.xlu0 %1140
        %1142 = vrot.lane.b32.xlu0 %v404, 28
        %v1143 = vpop.permute.xlu0 %1142
        %1144 = vrot.lane.b32.xlu0 %v406, 28
        %v1145 = vpop.permute.xlu0 %1144
        %1146 = vrot.lane.b32.xlu0 %v493, 28
        %v1147 = vpop.permute.xlu0 %1146
        %1148 = vrot.lane.b32.xlu0 %v495, 28
        %v1149 = vpop.permute.xlu0 %1148
        %1150 = vrot.lane.b32.xlu0 %v506, 28
        %v1151 = vpop.permute.xlu0 %1150
        %1152 = vrot.lane.b32.xlu0 %v508, 28
        %v1153 = vpop.permute.xlu0 %1152
        %1186 = vrot.lane.b32.xlu0 %v420, 32
        %v1187 = vpop.permute.xlu0 %1186
        %1188 = vrot.lane.b32.xlu0 %v422, 32
        %v1189 = vpop.permute.xlu0 %1188
        %1190 = vrot.lane.b32.xlu0 %v425, 32
        %v1191 = vpop.permute.xlu0 %1190
        %1192 = vrot.lane.b32.xlu0 %v427, 32
        %v1193 = vpop.permute.xlu0 %1192
        %1194 = vrot.lane.b32.xlu0 %v430, 32
        %v1195 = vpop.permute.xlu0 %1194
        %1196 = vrot.lane.b32.xlu0 %v432, 32
        %v1197 = vpop.permute.xlu0 %1196
        %1198 = vrot.lane.b32.xlu0 %v435, 32
        %v1199 = vpop.permute.xlu0 %1198
        %1200 = vrot.lane.b32.xlu0 %v437, 32
        %v1201 = vpop.permute.xlu0 %1200
        %1202 = vrot.lane.b32.xlu0 %v440, 32
        %v1203 = vpop.permute.xlu0 %1202
        %1204 = vrot.lane.b32.xlu0 %v442, 32
        %v1205 = vpop.permute.xlu0 %1204
        %1206 = vrot.lane.b32.xlu0 %v445, 32
        %v1207 = vpop.permute.xlu0 %1206
        %1208 = vrot.lane.b32.xlu0 %v447, 32
        %v1209 = vpop.permute.xlu0 %1208
        %1210 = vrot.lane.b32.xlu0 %v450, 32
        %v1211 = vpop.permute.xlu0 %1210
        %1212 = vrot.lane.b32.xlu0 %v452, 32
        %v1213 = vpop.permute.xlu0 %1212
        %1214 = vrot.lane.b32.xlu0 %v455, 32
        %v1215 = vpop.permute.xlu0 %1214
        %1216 = vrot.lane.b32.xlu0 %v457, 32
        %v1217 = vpop.permute.xlu0 %1216
        %1218 = vrot.lane.b32.xlu0 %v460, 32
        %v1219 = vpop.permute.xlu0 %1218
        %1220 = vrot.lane.b32.xlu0 %v462, 32
        %v1221 = vpop.permute.xlu0 %1220
        %1222 = vrot.lane.b32.xlu0 %v465, 32
        %v1223 = vpop.permute.xlu0 %1222
        %1224 = vrot.lane.b32.xlu0 %v467, 32
        %v1225 = vpop.permute.xlu0 %1224
        %1226 = vrot.lane.b32.xlu0 %v470, 32
        %v1227 = vpop.permute.xlu0 %1226
        %1228 = vrot.lane.b32.xlu0 %v472, 32
        %v1229 = vpop.permute.xlu0 %1228
        %1230 = vrot.lane.b32.xlu0 %v475, 32
        %v1231 = vpop.permute.xlu0 %1230
        %1232 = vrot.lane.b32.xlu0 %v477, 32
        %v1233 = vpop.permute.xlu0 %1232
        %1234 = vrot.lane.b32.xlu0 %v480, 32
        %v1235 = vpop.permute.xlu0 %1234
        %1236 = vrot.lane.b32.xlu0 %v482, 32
        %v1237 = vpop.permute.xlu0 %1236
        %1238 = vrot.lane.b32.xlu0 %v485, 32
        %v1239 = vpop.permute.xlu0 %1238
        %1240 = vrot.lane.b32.xlu0 %v487, 32
        %v1241 = vpop.permute.xlu0 %1240
        %1242 = vrot.lane.b32.xlu0 %v498, 32
        %v1243 = vpop.permute.xlu0 %1242
        %1244 = vrot.lane.b32.xlu0 %v500, 32
        %v1245 = vpop.permute.xlu0 %1244
        %1246 = vrot.lane.b32.xlu0 %v511, 32
        %v1247 = vpop.permute.xlu0 %1246
        %1248 = vrot.lane.b32.xlu0 %v513, 32
        %v1249 = vpop.permute.xlu0 %1248
        %vm1282 = vcmask 31744
        %v1283 = vsel %vm1282, %v224, %v515
        %v1284 = vsel %vm1282, %v225, %v517
        %v1285 = vsel %vm1282, %v227, %v519
        %v1286 = vsel %vm1282, %v228, %v521
        %v1287 = vsel %vm1282, %v230, %v523
        %v1288 = vsel %vm1282, %v231, %v525
        %v1289 = vsel %vm1282, %v233, %v527
        %v1290 = vsel %vm1282, %v234, %v529
        %v1291 = vsel %vm1282, %v236, %v531
        %v1292 = vsel %vm1282, %v237, %v533
        %v1293 = vsel %vm1282, %v239, %v535
        %v1294 = vsel %vm1282, %v240, %v537
        %v1295 = vsel %vm1282, %v242, %v539
        %v1296 = vsel %vm1282, %v243, %v541
        %v1297 = vsel %vm1282, %v245, %v543
        %v1298 = vsel %vm1282, %v246, %v545
        %v1299 = vsel %vm1282, %v248, %v547
        %v1300 = vsel %vm1282, %v249, %v549
        %v1301 = vsel %vm1282, %v251, %v551
        %v1302 = vsel %vm1282, %v252, %v553
        %v1303 = vsel %vm1282, %v254, %v555
        %v1304 = vsel %vm1282, %v255, %v557
        %v1305 = vsel %vm1282, %v257, %v559
        %v1306 = vsel %vm1282, %v258, %v561
        %v1307 = vsel %vm1282, %v260, %v563
        %v1308 = vsel %vm1282, %v261, %v565
        %v1309 = vsel %vm1282, %v263, %v567
        %v1310 = vsel %vm1282, %v264, %v569
        %v1311 = vsel %vm1282, %v266, %v571
        %v1312 = vsel %vm1282, %v267, %v573
        %v1313 = vsel %vm1282, %v269, %v575
        %v1314 = vsel %vm1282, %v270, %v577
        %vm1315 = vcmask 64512
        %v1316 = vsel %vm1315, %v1283, %v611
        %v1317 = vsel %vm1315, %v1284, %v613
        %v1318 = vsel %vm1315, %v1285, %v615
        %v1319 = vsel %vm1315, %v1286, %v617
        %v1320 = vsel %vm1315, %v1287, %v619
        %v1321 = vsel %vm1315, %v1288, %v621
        %v1322 = vsel %vm1315, %v1289, %v623
        %v1323 = vsel %vm1315, %v1290, %v625
        %v1324 = vsel %vm1315, %v1291, %v627
        %v1325 = vsel %vm1315, %v1292, %v629
        %v1326 = vsel %vm1315, %v1293, %v631
        %v1327 = vsel %vm1315, %v1294, %v633
        %v1328 = vsel %vm1315, %v1295, %v635
        %v1329 = vsel %vm1315, %v1296, %v637
        %v1330 = vsel %vm1315, %v1297, %v639
        %v1331 = vsel %vm1315, %v1298, %v641
        %v1332 = vsel %vm1315, %v1299, %v643
        %v1333 = vsel %vm1315, %v1300, %v645
        %v1334 = vsel %vm1315, %v1301, %v647
        %v1335 = vsel %vm1315, %v1302, %v649
        %v1336 = vsel %vm1315, %v1303, %v651
        %v1337 = vsel %vm1315, %v1304, %v653
        %v1338 = vsel %vm1315, %v1305, %v655
        %v1339 = vsel %vm1315, %v1306, %v657
        %v1340 = vsel %vm1315, %v1307, %v659
        %v1341 = vsel %vm1315, %v1308, %v661
        %v1342 = vsel %vm1315, %v1309, %v663
        %v1343 = vsel %vm1315, %v1310, %v665
        %v1344 = vsel %vm1315, %v1311, %v667
        %v1345 = vsel %vm1315, %v1312, %v669
        %v1346 = vsel %vm1315, %v1313, %v671
        %v1347 = vsel %vm1315, %v1314, %v673
        %vm1348 = vcmask 97280
        %v1349 = vsel %vm1348, %v1316, %v707
        %v1350 = vsel %vm1348, %v1317, %v709
        %v1351 = vsel %vm1348, %v1318, %v711
        %v1352 = vsel %vm1348, %v1319, %v713
        %v1353 = vsel %vm1348, %v1320, %v715
        %v1354 = vsel %vm1348, %v1321, %v717
        %v1355 = vsel %vm1348, %v1322, %v719
        %v1356 = vsel %vm1348, %v1323, %v721
        %v1357 = vsel %vm1348, %v1324, %v723
        %v1358 = vsel %vm1348, %v1325, %v725
        %v1359 = vsel %vm1348, %v1326, %v727
        %v1360 = vsel %vm1348, %v1327, %v729
        %v1361 = vsel %vm1348, %v1328, %v731
        %v1362 = vsel %vm1348, %v1329, %v733
        %v1363 = vsel %vm1348, %v1330, %v735
        %v1364 = vsel %vm1348, %v1331, %v737
        %v1365 = vsel %vm1348, %v1332, %v739
        %v1366 = vsel %vm1348, %v1333, %v741
        %v1367 = vsel %vm1348, %v1334, %v743
        %v1368 = vsel %vm1348, %v1335, %v745
        %v1369 = vsel %vm1348, %v1336, %v747
        %v1370 = vsel %vm1348, %v1337, %v749
        %v1371 = vsel %vm1348, %v1338, %v751
        %v1372 = vsel %vm1348, %v1339, %v753
        %v1373 = vsel %vm1348, %v1340, %v755
        %v1374 = vsel %vm1348, %v1341, %v757
        %v1375 = vsel %vm1348, %v1342, %v759
        %v1376 = vsel %vm1348, %v1343, %v761
        %v1377 = vsel %vm1348, %v1344, %v763
        %v1378 = vsel %vm1348, %v1345, %v765
        %v1379 = vsel %vm1348, %v1346, %v767
        %v1380 = vsel %vm1348, %v1347, %v769
        %vm1381 = vcmask 130048
        %v1382 = vsel %vm1381, %v1349, %v803
        %v1383 = vsel %vm1381, %v1350, %v805
        %v1384 = vsel %vm1381, %v1351, %v807
        %v1385 = vsel %vm1381, %v1352, %v809
        %v1386 = vsel %vm1381, %v1353, %v811
        %v1387 = vsel %vm1381, %v1354, %v813
        %v1388 = vsel %vm1381, %v1355, %v815
        %v1389 = vsel %vm1381, %v1356, %v817
        %v1390 = vsel %vm1381, %v1357, %v819
        %v1391 = vsel %vm1381, %v1358, %v821
        %v1392 = vsel %vm1381, %v1359, %v823
        %v1393 = vsel %vm1381, %v1360, %v825
        %v1394 = vsel %vm1381, %v1361, %v827
        %v1395 = vsel %vm1381, %v1362, %v829
        %v1396 = vsel %vm1381, %v1363, %v831
        %v1397 = vsel %vm1381, %v1364, %v833
        %v1398 = vsel %vm1381, %v1365, %v835
        %v1399 = vsel %vm1381, %v1366, %v837
        %v1400 = vsel %vm1381, %v1367, %v839
        %v1401 = vsel %vm1381, %v1368, %v841
        %v1402 = vsel %vm1381, %v1369, %v843
        %v1403 = vsel %vm1381, %v1370, %v845
        %v1404 = vsel %vm1381, %v1371, %v847
        %v1405 = vsel %vm1381, %v1372, %v849
        %v1406 = vsel %vm1381, %v1373, %v851
        %v1407 = vsel %vm1381, %v1374, %v853
        %v1408 = vsel %vm1381, %v1375, %v855
        %v1409 = vsel %vm1381, %v1376, %v857
        %v1410 = vsel %vm1381, %v1377, %v859
        %v1411 = vsel %vm1381, %v1378, %v861
        %v1412 = vsel %vm1381, %v1379, %v863
        %v1413 = vsel %vm1381, %v1380, %v865
        %vm1414 = vcmask 162816
        %v1415 = vsel %vm1414, %v1382, %v899
        %v1416 = vsel %vm1414, %v1383, %v901
        %v1417 = vsel %vm1414, %v1384, %v903
        %v1418 = vsel %vm1414, %v1385, %v905
        %v1419 = vsel %vm1414, %v1386, %v907
        %v1420 = vsel %vm1414, %v1387, %v909
        %v1421 = vsel %vm1414, %v1388, %v911
        %v1422 = vsel %vm1414, %v1389, %v913
        %v1423 = vsel %vm1414, %v1390, %v915
        %v1424 = vsel %vm1414, %v1391, %v917
        %v1425 = vsel %vm1414, %v1392, %v919
        %v1426 = vsel %vm1414, %v1393, %v921
        %v1427 = vsel %vm1414, %v1394, %v923
        %v1428 = vsel %vm1414, %v1395, %v925
        %v1429 = vsel %vm1414, %v1396, %v927
        %v1430 = vsel %vm1414, %v1397, %v929
        %v1431 = vsel %vm1414, %v1398, %v931
        %v1432 = vsel %vm1414, %v1399, %v933
        %v1433 = vsel %vm1414, %v1400, %v935
        %v1434 = vsel %vm1414, %v1401, %v937
        %v1435 = vsel %vm1414, %v1402, %v939
        %v1436 = vsel %vm1414, %v1403, %v941
        %v1437 = vsel %vm1414, %v1404, %v943
        %v1438 = vsel %vm1414, %v1405, %v945
        %v1439 = vsel %vm1414, %v1406, %v947
        %v1440 = vsel %vm1414, %v1407, %v949
        %v1441 = vsel %vm1414, %v1408, %v951
        %v1442 = vsel %vm1414, %v1409, %v953
        %v1443 = vsel %vm1414, %v1410, %v955
        %v1444 = vsel %vm1414, %v1411, %v957
        %v1445 = vsel %vm1414, %v1412, %v959
        %v1446 = vsel %vm1414, %v1413, %v961
        %vm1447 = vcmask 195584
        %v1448 = vsel %vm1447, %v1415, %v995
        %v1449 = vsel %vm1447, %v1416, %v997
        %v1450 = vsel %vm1447, %v1417, %v999
        %v1451 = vsel %vm1447, %v1418, %v1001
        %v1452 = vsel %vm1447, %v1419, %v1003
        %v1453 = vsel %vm1447, %v1420, %v1005
        %v1454 = vsel %vm1447, %v1421, %v1007
        %v1455 = vsel %vm1447, %v1422, %v1009
        %v1456 = vsel %vm1447, %v1423, %v1011
        %v1457 = vsel %vm1447, %v1424, %v1013
        %v1458 = vsel %vm1447, %v1425, %v1015
        %v1459 = vsel %vm1447, %v1426, %v1017
        %v1460 = vsel %vm1447, %v1427, %v1019
        %v1461 = vsel %vm1447, %v1428, %v1021
        %v1462 = vsel %vm1447, %v1429, %v1023
        %v1463 = vsel %vm1447, %v1430, %v1025
        %v1464 = vsel %vm1447, %v1431, %v1027
        %v1465 = vsel %vm1447, %v1432, %v1029
        %v1466 = vsel %vm1447, %v1433, %v1031
        %v1467 = vsel %vm1447, %v1434, %v1033
        %v1468 = vsel %vm1447, %v1435, %v1035
        %v1469 = vsel %vm1447, %v1436, %v1037
        %v1470 = vsel %vm1447, %v1437, %v1039
        %v1471 = vsel %vm1447, %v1438, %v1041
        %v1472 = vsel %vm1447, %v1439, %v1043
        %v1473 = vsel %vm1447, %v1440, %v1045
        %v1474 = vsel %vm1447, %v1441, %v1047
        %v1475 = vsel %vm1447, %v1442, %v1049
        %v1476 = vsel %vm1447, %v1443, %v1051
        %v1477 = vsel %vm1447, %v1444, %v1053
        %v1478 = vsel %vm1447, %v1445, %v1055
        %v1479 = vsel %vm1447, %v1446, %v1057
        %vm1480 = vcmask 228352
        %v1481 = vsel %vm1480, %v1448, %v1091
        %v1482 = vsel %vm1480, %v1449, %v1093
        %v1483 = vsel %vm1480, %v1450, %v1095
        %v1484 = vsel %vm1480, %v1451, %v1097
        %v1485 = vsel %vm1480, %v1452, %v1099
        %v1486 = vsel %vm1480, %v1453, %v1101
        %v1487 = vsel %vm1480, %v1454, %v1103
        %v1488 = vsel %vm1480, %v1455, %v1105
        %v1489 = vsel %vm1480, %v1456, %v1107
        %v1490 = vsel %vm1480, %v1457, %v1109
        %v1491 = vsel %vm1480, %v1458, %v1111
        %v1492 = vsel %vm1480, %v1459, %v1113
        %v1493 = vsel %vm1480, %v1460, %v1115
        %v1494 = vsel %vm1480, %v1461, %v1117
        %v1495 = vsel %vm1480, %v1462, %v1119
        %v1496 = vsel %vm1480, %v1463, %v1121
        %v1497 = vsel %vm1480, %v1464, %v1123
        %v1498 = vsel %vm1480, %v1465, %v1125
        %v1499 = vsel %vm1480, %v1466, %v1127
        %v1500 = vsel %vm1480, %v1467, %v1129
        %v1501 = vsel %vm1480, %v1468, %v1131
        %v1502 = vsel %vm1480, %v1469, %v1133
        %v1503 = vsel %vm1480, %v1470, %v1135
        %v1504 = vsel %vm1480, %v1471, %v1137
        %v1505 = vsel %vm1480, %v1472, %v1139
        %v1506 = vsel %vm1480, %v1473, %v1141
        %v1507 = vsel %vm1480, %v1474, %v1143
        %v1508 = vsel %vm1480, %v1475, %v1145
        %v1509 = vsel %vm1480, %v1476, %v1147
        %v1510 = vsel %vm1480, %v1477, %v1149
        %v1511 = vsel %vm1480, %v1478, %v1151
        %v1512 = vsel %vm1480, %v1479, %v1153
        %vm1513 = vcmask 261120
        %v1514 = vsel %vm1513, %v1481, %v1187
        %v1515 = vsel %vm1513, %v1482, %v1189
        %v1516 = vsel %vm1513, %v1483, %v1191
        %v1517 = vsel %vm1513, %v1484, %v1193
        %v1518 = vsel %vm1513, %v1485, %v1195
        %v1519 = vsel %vm1513, %v1486, %v1197
        %v1520 = vsel %vm1513, %v1487, %v1199
        %v1521 = vsel %vm1513, %v1488, %v1201
        %v1522 = vsel %vm1513, %v1489, %v1203
        %v1523 = vsel %vm1513, %v1490, %v1205
        %v1524 = vsel %vm1513, %v1491, %v1207
        %v1525 = vsel %vm1513, %v1492, %v1209
        %v1526 = vsel %vm1513, %v1493, %v1211
        %v1527 = vsel %vm1513, %v1494, %v1213
        %v1528 = vsel %vm1513, %v1495, %v1215
        %v1529 = vsel %vm1513, %v1496, %v1217
        %v1530 = vsel %vm1513, %v1497, %v1219
        %v1531 = vsel %vm1513, %v1498, %v1221
        %v1532 = vsel %vm1513, %v1499, %v1223
        %v1533 = vsel %vm1513, %v1500, %v1225
        %v1534 = vsel %vm1513, %v1501, %v1227
        %v1535 = vsel %vm1513, %v1502, %v1229
        %v1536 = vsel %vm1513, %v1503, %v1231
        %v1537 = vsel %vm1513, %v1504, %v1233
        %v1538 = vsel %vm1513, %v1505, %v1235
        %v1539 = vsel %vm1513, %v1506, %v1237
        %v1540 = vsel %vm1513, %v1507, %v1239
        %v1541 = vsel %vm1513, %v1508, %v1241
        %v1542 = vsel %vm1513, %v1509, %v1243
        %v1543 = vsel %vm1513, %v1510, %v1245
        %v1544 = vsel %vm1513, %v1511, %v1247
        %v1545 = vsel %vm1513, %v1512, %v1249
        %v1546 = vpack.c.bf16 %v1515, %v1514
        %v1547 = vpack.c.bf16 %v1517, %v1516
        %v1548 = vpack.c.bf16 %v1519, %v1518
        %v1549 = vpack.c.bf16 %v1521, %v1520
        %v1550 = vpack.c.bf16 %v1523, %v1522
        %v1551 = vpack.c.bf16 %v1525, %v1524
        %v1552 = vpack.c.bf16 %v1527, %v1526
        %v1553 = vpack.c.bf16 %v1529, %v1528
        %v1554 = vpack.c.bf16 %v1531, %v1530
        %v1555 = vpack.c.bf16 %v1533, %v1532
        %v1556 = vpack.c.bf16 %v1535, %v1534
        %v1557 = vpack.c.bf16 %v1537, %v1536
        %v1558 = vpack.c.bf16 %v1539, %v1538
        %v1559 = vpack.c.bf16 %v1541, %v1540
        %v1560 = vpack.c.bf16 %v1543, %v1542
        %v1561 = vpack.c.bf16 %v1545, %v1544
        %v1562 = vld [vmem:[%s1] sm:$0xf]
        %v1563 = vld [vmem:[%s1 + $0x4] sm:$0xf]
        %v1564 = vld [vmem:[%s1 + $0x8] sm:$0xf]
        %v1565 = vld [vmem:[%s1 + $0xc] sm:$0xf]
        %v1566 = vld [vmem:[%s1 + $0x10] sm:$0x3]
        %v1572 = vunpack.c.l.b16 %v1562
        %v1573 = vunpack.c.l.b16 %v1563
        %v1574 = vunpack.c.l.b16 %v1564
        %v1575 = vunpack.c.l.b16 %v1565
        %v1576 = vunpack.c.l.b16 %v1566
        %v1577 = vpack.c.b16 %v1573, %v1572
        %v1578 = vpack.c.b16 %v1575, %v1574
        %v1579 = vpack.c.b16 %v1576, %v1576
        %vm1582 = vcmask 293888
        %v1584 = vsel %vm1582, %v1546, 0
        %v1587 = vsel %vm1582, %v1547, 0
        %v1590 = vsel %vm1582, %v1548, 0
        %v1593 = vsel %vm1582, %v1549, 0
        %v1596 = vsel %vm1582, %v1550, 0
        %v1599 = vsel %vm1582, %v1551, 0
        %v1602 = vsel %vm1582, %v1552, 0
        %v1605 = vsel %vm1582, %v1553, 0
        %v1608 = vsel %vm1582, %v1554, 0
        %v1611 = vsel %vm1582, %v1555, 0
        %v1614 = vsel %vm1582, %v1556, 0
        %v1617 = vsel %vm1582, %v1557, 0
        %v1620 = vsel %vm1582, %v1558, 0
        %v1623 = vsel %vm1582, %v1559, 0
        %v1626 = vsel %vm1582, %v1560, 0
        %v1629 = vsel %vm1582, %v1561, 0
        %vm1631 = vcmask 1041408
        %v1633 = vsel %vm1631, %v1579, 0
        %1635 = vmatprep.subr.bf16.mxu0 0
        %1636 = vmatpush1.bf16.msra.mxu0 0
        %1637 = vmatprep.subr.bf16.mxu0 0
        %1638 = vmatpush1.bf16.msra.mxu0 0
        %1639 = vmatprep.subr.bf16.mxu0 0
        %1640 = vmatpush1.bf16.msra.mxu0 0
        %1641 = vmatprep.subr.bf16.mxu0 0
        %1642 = vmatpush1.bf16.msra.mxu0 0
        %1643 = vmatprep.subr.bf16.mxu0 0
        %1644 = vmatpush1.bf16.msra.mxu0 0
        %1645 = vmatprep.subr.bf16.mxu0 0
        %1646 = vmatpush1.bf16.msra.mxu0 %v1633
        %1647 = vmatprep.subr.bf16.mxu0 0
        %1648 = vmatpush1.bf16.msra.mxu0 %v1578
        %1649 = vmatprep.subr.bf16.mxu0 0
        %1650 = vmatpush1.bf16.msra.mxu0 %v1577
        %1651 = vmatprep.subr.bf16.mxu0 0
        %1652 = vmatpush2.bf16.msra.mxu0 0
        %1653 = vmatprep.subr.bf16.mxu0 0
        %1654 = vmatpush2.bf16.msra.mxu0 0
        %1655 = vmatprep.subr.bf16.mxu0 0
        %1656 = vmatpush2.bf16.msra.mxu0 0
        %1657 = vmatprep.subr.bf16.mxu0 0
        %1658 = vmatpush2.bf16.msra.mxu0 0
        %1659 = vmatprep.subr.bf16.mxu0 0
        %1660 = vmatpush2.bf16.msra.mxu0 0
        %1661 = vmatprep.subr.bf16.mxu0 0
        %1662 = vmatpush2.bf16.msra.mxu0 0
        %1663 = vmatprep.subr.bf16.mxu0 0
        %1664 = vmatpush2.bf16.msra.mxu0 0
        %1665 = vmatprep.subr.bf16.mxu0 0
        %1666 = vmatpush2.bf16.msra.mxu0 0
        %1667 = vmatprep.mubr.bf16.mxu0 0
        %1668 = vmatmul.mubr.bf16.gmra.mxu0 %v1584
        %v1669 = vpop.f32.mrf.mxu0
        %v1670 = vadd.f32 0.0, %v1669
        %v1671 = vpop.f32.mrf.mxu0
        %v1672 = vpop.f32.mrf.mxu0
        %v1673 = vadd.f32 0.0, %v1672
        %v1674 = vpop.f32.mrf.mxu0
        %1675 = vmatprep.mubr.bf16.mxu0 0
        %1676 = vmatmul.mubr.bf16.gmra.mxu0 %v1587
        %v1677 = vpop.f32.mrf.mxu0
        %v1678 = vadd.f32 0.0, %v1677
        %v1679 = vpop.f32.mrf.mxu0
        %v1680 = vpop.f32.mrf.mxu0
        %v1681 = vadd.f32 0.0, %v1680
        %v1682 = vpop.f32.mrf.mxu0
        %1683 = vmatprep.mubr.bf16.mxu0 0
        %1684 = vmatmul.mubr.bf16.gmra.mxu0 %v1590
        %v1685 = vpop.f32.mrf.mxu0
        %v1686 = vadd.f32 0.0, %v1685
        %v1687 = vpop.f32.mrf.mxu0
        %v1688 = vpop.f32.mrf.mxu0
        %v1689 = vadd.f32 0.0, %v1688
        %v1690 = vpop.f32.mrf.mxu0
        %1691 = vmatprep.mubr.bf16.mxu0 0
        %1692 = vmatmul.mubr.bf16.gmra.mxu0 %v1593
        %v1693 = vpop.f32.mrf.mxu0
        %v1694 = vadd.f32 0.0, %v1693
        %v1695 = vpop.f32.mrf.mxu0
        %v1696 = vpop.f32.mrf.mxu0
        %v1697 = vadd.f32 0.0, %v1696
        %v1698 = vpop.f32.mrf.mxu0
        %1699 = vmatprep.mubr.bf16.mxu0 0
        %1700 = vmatmul.mubr.bf16.gmra.mxu0 %v1596
        %v1701 = vpop.f32.mrf.mxu0
        %v1702 = vadd.f32 0.0, %v1701
        %v1703 = vpop.f32.mrf.mxu0
        %v1704 = vpop.f32.mrf.mxu0
        %v1705 = vadd.f32 0.0, %v1704
        %v1706 = vpop.f32.mrf.mxu0
        %1707 = vmatprep.mubr.bf16.mxu0 0
        %1708 = vmatmul.mubr.bf16.gmra.mxu0 %v1599
        %v1709 = vpop.f32.mrf.mxu0
        %v1710 = vadd.f32 0.0, %v1709
        %v1711 = vpop.f32.mrf.mxu0
        %v1712 = vpop.f32.mrf.mxu0
        %v1713 = vadd.f32 0.0, %v1712
        %v1714 = vpop.f32.mrf.mxu0
        %1715 = vmatprep.mubr.bf16.mxu0 0
        %1716 = vmatmul.mubr.bf16.gmra.mxu0 %v1602
        %v1717 = vpop.f32.mrf.mxu0
        %v1718 = vadd.f32 0.0, %v1717
        %v1719 = vpop.f32.mrf.mxu0
        %v1720 = vpop.f32.mrf.mxu0
        %v1721 = vadd.f32 0.0, %v1720
        %v1722 = vpop.f32.mrf.mxu0
        %1723 = vmatprep.mubr.bf16.mxu0 0
        %1724 = vmatmul.mubr.bf16.gmra.mxu0 %v1605
        %v1725 = vpop.f32.mrf.mxu0
        %v1726 = vadd.f32 0.0, %v1725
        %v1727 = vpop.f32.mrf.mxu0
        %v1728 = vpop.f32.mrf.mxu0
        %v1729 = vadd.f32 0.0, %v1728
        %v1730 = vpop.f32.mrf.mxu0
        %1731 = vmatprep.mubr.bf16.mxu0 0
        %1732 = vmatmul.mubr.bf16.gmra.mxu0 %v1608
        %v1733 = vpop.f32.mrf.mxu0
        %v1734 = vadd.f32 0.0, %v1733
        %v1735 = vpop.f32.mrf.mxu0
        %v1736 = vpop.f32.mrf.mxu0
        %v1737 = vadd.f32 0.0, %v1736
        %v1738 = vpop.f32.mrf.mxu0
        %1739 = vmatprep.mubr.bf16.mxu0 0
        %1740 = vmatmul.mubr.bf16.gmra.mxu0 %v1611
        %v1741 = vpop.f32.mrf.mxu0
        %v1742 = vadd.f32 0.0, %v1741
        %v1743 = vpop.f32.mrf.mxu0
        %v1744 = vpop.f32.mrf.mxu0
        %v1745 = vadd.f32 0.0, %v1744
        %v1746 = vpop.f32.mrf.mxu0
        %1747 = vmatprep.mubr.bf16.mxu0 0
        %1748 = vmatmul.mubr.bf16.gmra.mxu0 %v1614
        %v1749 = vpop.f32.mrf.mxu0
        %v1750 = vadd.f32 0.0, %v1749
        %v1751 = vpop.f32.mrf.mxu0
        %v1752 = vpop.f32.mrf.mxu0
        %v1753 = vadd.f32 0.0, %v1752
        %v1754 = vpop.f32.mrf.mxu0
        %1755 = vmatprep.mubr.bf16.mxu0 0
        %1756 = vmatmul.mubr.bf16.gmra.mxu0 %v1617
        %v1757 = vpop.f32.mrf.mxu0
        %v1758 = vadd.f32 0.0, %v1757
        %v1759 = vpop.f32.mrf.mxu0
        %v1760 = vpop.f32.mrf.mxu0
        %v1761 = vadd.f32 0.0, %v1760
        %v1762 = vpop.f32.mrf.mxu0
        %1763 = vmatprep.mubr.bf16.mxu0 0
        %1764 = vmatmul.mubr.bf16.gmra.mxu0 %v1620
        %v1765 = vpop.f32.mrf.mxu0
        %v1766 = vadd.f32 0.0, %v1765
        %v1767 = vpop.f32.mrf.mxu0
        %v1768 = vpop.f32.mrf.mxu0
        %v1769 = vadd.f32 0.0, %v1768
        %v1770 = vpop.f32.mrf.mxu0
        %1771 = vmatprep.mubr.bf16.mxu0 0
        %1772 = vmatmul.mubr.bf16.gmra.mxu0 %v1623
        %v1773 = vpop.f32.mrf.mxu0
        %v1774 = vadd.f32 0.0, %v1773
        %v1775 = vpop.f32.mrf.mxu0
        %v1776 = vpop.f32.mrf.mxu0
        %v1777 = vadd.f32 0.0, %v1776
        %v1778 = vpop.f32.mrf.mxu0
        %1779 = vmatprep.mubr.bf16.mxu0 0
        %1780 = vmatmul.mubr.bf16.gmra.mxu0 %v1626
        %v1781 = vpop.f32.mrf.mxu0
        %v1782 = vadd.f32 0.0, %v1781
        %v1783 = vpop.f32.mrf.mxu0
        %v1784 = vpop.f32.mrf.mxu0
        %v1785 = vadd.f32 0.0, %v1784
        %v1786 = vpop.f32.mrf.mxu0
        %1787 = vmatprep.mubr.bf16.mxu0 0
        %1788 = vmatmul.mubr.bf16.gmra.mxu0 %v1629
        %v1789 = vpop.f32.mrf.mxu0
        %v1790 = vadd.f32 0.0, %v1789
        %v1791 = vpop.f32.mrf.mxu0
        %v1792 = vpop.f32.mrf.mxu0
        %v1793 = vadd.f32 0.0, %v1792
        %v1794 = vpop.f32.mrf.mxu0
        %1795 = vdwg.mxu0
        %v1796 = vld [vmem:[%s2] sm:$0x1]
        %v1797 = vld [vmem:[%s2 + $0x1] sm:$0x1]
        %v1798 = vld [vmem:[%s2 + $0x2] sm:$0x1]
        %v1799 = vsel %vm1513, %v1670, 0.0
        %v1800 = vsel %vm1513, %v1673, 0.0
        %v1801 = vadd.f32 %v1799, %v1800
        %v1802 = vsel %vm1513, %v1678, 0.0
        %v1803 = vadd.f32 %v1801, %v1802
        %v1804 = vsel %vm1513, %v1681, 0.0
        %v1805 = vadd.f32 %v1803, %v1804
        %v1806 = vsel %vm1513, %v1686, 0.0
        %v1807 = vadd.f32 %v1805, %v1806
        %v1808 = vsel %vm1513, %v1689, 0.0
        %v1809 = vadd.f32 %v1807, %v1808
        %v1810 = vsel %vm1513, %v1694, 0.0
        %v1811 = vadd.f32 %v1809, %v1810
        %v1812 = vsel %vm1513, %v1697, 0.0
        %v1813 = vadd.f32 %v1811, %v1812
        %v1814 = vsel %vm1513, %v1702, 0.0
        %v1815 = vadd.f32 %v1813, %v1814
        %v1816 = vsel %vm1513, %v1705, 0.0
        %v1817 = vadd.f32 %v1815, %v1816
        %v1818 = vsel %vm1513, %v1710, 0.0
        %v1819 = vadd.f32 %v1817, %v1818
        %v1820 = vsel %vm1513, %v1713, 0.0
        %v1821 = vadd.f32 %v1819, %v1820
        %v1822 = vsel %vm1513, %v1718, 0.0
        %v1823 = vadd.f32 %v1821, %v1822
        %v1824 = vsel %vm1513, %v1721, 0.0
        %v1825 = vadd.f32 %v1823, %v1824
        %v1826 = vsel %vm1513, %v1726, 0.0
        %v1827 = vadd.f32 %v1825, %v1826
        %v1828 = vsel %vm1513, %v1729, 0.0
        %v1829 = vadd.f32 %v1827, %v1828
        %v1830 = vsel %vm1513, %v1734, 0.0
        %v1831 = vadd.f32 %v1829, %v1830
        %v1832 = vsel %vm1513, %v1737, 0.0
        %v1833 = vadd.f32 %v1831, %v1832
        %v1834 = vsel %vm1513, %v1742, 0.0
        %v1835 = vadd.f32 %v1833, %v1834
        %v1836 = vsel %vm1513, %v1745, 0.0
        %v1837 = vadd.f32 %v1835, %v1836
        %v1838 = vsel %vm1513, %v1750, 0.0
        %v1839 = vadd.f32 %v1837, %v1838
        %v1840 = vsel %vm1513, %v1753, 0.0
        %v1841 = vadd.f32 %v1839, %v1840
        %v1842 = vsel %vm1513, %v1758, 0.0
        %v1843 = vadd.f32 %v1841, %v1842
        %v1844 = vsel %vm1513, %v1761, 0.0
        %v1845 = vadd.f32 %v1843, %v1844
        %v1846 = vsel %vm1513, %v1766, 0.0
        %v1847 = vadd.f32 %v1845, %v1846
        %v1848 = vsel %vm1513, %v1769, 0.0
        %v1849 = vadd.f32 %v1847, %v1848
        %v1850 = vsel %vm1513, %v1774, 0.0
        %v1851 = vadd.f32 %v1849, %v1850
        %v1852 = vsel %vm1513, %v1777, 0.0
        %v1853 = vadd.f32 %v1851, %v1852
        %v1854 = vsel %vm1513, %v1782, 0.0
        %v1855 = vadd.f32 %v1853, %v1854
        %v1856 = vsel %vm1513, %v1785, 0.0
        %v1857 = vadd.f32 %v1855, %v1856
        %v1858 = vsel %vm1513, %v1790, 0.0
        %v1859 = vadd.f32 %v1857, %v1858
        %v1860 = vsel %vm1513, %v1793, 0.0
        %v1861 = vadd.f32 %v1859, %v1860
        %v1862 = vrot.slane %v1861, 4
        %v1863 = vadd.f32 %v1861, %v1862
        %v1864 = vrot.slane %v1863, 2
        %v1865 = vadd.f32 %v1863, %v1864
        %v1866 = vrot.slane %v1865, 1
        %v1867 = vadd.f32 %v1865, %v1866
        %v1868 = vmul.f32 %v1670, %v1670
        %v1869 = vmul.f32 %v1673, %v1673
        %v1870 = vmul.f32 %v1678, %v1678
        %v1871 = vmul.f32 %v1681, %v1681
        %v1872 = vmul.f32 %v1686, %v1686
        %v1873 = vmul.f32 %v1689, %v1689
        %v1874 = vmul.f32 %v1694, %v1694
        %v1875 = vmul.f32 %v1697, %v1697
        %v1876 = vmul.f32 %v1702, %v1702
        %v1877 = vmul.f32 %v1705, %v1705
        %v1878 = vmul.f32 %v1710, %v1710
        %v1879 = vmul.f32 %v1713, %v1713
        %v1880 = vmul.f32 %v1718, %v1718
        %v1881 = vmul.f32 %v1721, %v1721
        %v1882 = vmul.f32 %v1726, %v1726
        %v1883 = vmul.f32 %v1729, %v1729
        %v1884 = vmul.f32 %v1734, %v1734
        %v1885 = vmul.f32 %v1737, %v1737
        %v1886 = vmul.f32 %v1742, %v1742
        %v1887 = vmul.f32 %v1745, %v1745
        %v1888 = vmul.f32 %v1750, %v1750
        %v1889 = vmul.f32 %v1753, %v1753
        %v1890 = vmul.f32 %v1758, %v1758
        %v1891 = vmul.f32 %v1761, %v1761
        %v1892 = vmul.f32 %v1766, %v1766
        %v1893 = vmul.f32 %v1769, %v1769
        %v1894 = vmul.f32 %v1774, %v1774
        %v1895 = vmul.f32 %v1777, %v1777
        %v1896 = vmul.f32 %v1782, %v1782
        %v1897 = vmul.f32 %v1785, %v1785
        %v1898 = vmul.f32 %v1790, %v1790
        %v1899 = vmul.f32 %v1793, %v1793
        %v1900 = vsel %vm1513, %v1868, 0.0
        %v1901 = vsel %vm1513, %v1869, 0.0
        %v1902 = vadd.f32 %v1900, %v1901
        %v1903 = vsel %vm1513, %v1870, 0.0
        %v1904 = vadd.f32 %v1902, %v1903
        %v1905 = vsel %vm1513, %v1871, 0.0
        %v1906 = vadd.f32 %v1904, %v1905
        %v1907 = vsel %vm1513, %v1872, 0.0
        %v1908 = vadd.f32 %v1906, %v1907
        %v1909 = vsel %vm1513, %v1873, 0.0
        %v1910 = vadd.f32 %v1908, %v1909
        %v1911 = vsel %vm1513, %v1874, 0.0
        %v1912 = vadd.f32 %v1910, %v1911
        %v1913 = vsel %vm1513, %v1875, 0.0
        %v1914 = vadd.f32 %v1912, %v1913
        %v1915 = vsel %vm1513, %v1876, 0.0
        %v1916 = vadd.f32 %v1914, %v1915
        %v1917 = vsel %vm1513, %v1877, 0.0
        %v1918 = vadd.f32 %v1916, %v1917
        %v1919 = vsel %vm1513, %v1878, 0.0
        %v1920 = vadd.f32 %v1918, %v1919
        %v1921 = vsel %vm1513, %v1879, 0.0
        %v1922 = vadd.f32 %v1920, %v1921
        %v1923 = vsel %vm1513, %v1880, 0.0
        %v1924 = vadd.f32 %v1922, %v1923
        %v1925 = vsel %vm1513, %v1881, 0.0
        %v1926 = vadd.f32 %v1924, %v1925
        %v1927 = vsel %vm1513, %v1882, 0.0
        %v1928 = vadd.f32 %v1926, %v1927
        %v1929 = vsel %vm1513, %v1883, 0.0
        %v1930 = vadd.f32 %v1928, %v1929
        %v1931 = vsel %vm1513, %v1884, 0.0
        %v1932 = vadd.f32 %v1930, %v1931
        %v1933 = vsel %vm1513, %v1885, 0.0
        %v1934 = vadd.f32 %v1932, %v1933
        %v1935 = vsel %vm1513, %v1886, 0.0
        %v1936 = vadd.f32 %v1934, %v1935
        %v1937 = vsel %vm1513, %v1887, 0.0
        %v1938 = vadd.f32 %v1936, %v1937
        %v1939 = vsel %vm1513, %v1888, 0.0
        %v1940 = vadd.f32 %v1938, %v1939
        %v1941 = vsel %vm1513, %v1889, 0.0
        %v1942 = vadd.f32 %v1940, %v1941
        %v1943 = vsel %vm1513, %v1890, 0.0
        %v1944 = vadd.f32 %v1942, %v1943
        %v1945 = vsel %vm1513, %v1891, 0.0
        %v1946 = vadd.f32 %v1944, %v1945
        %v1947 = vsel %vm1513, %v1892, 0.0
        %v1948 = vadd.f32 %v1946, %v1947
        %v1949 = vsel %vm1513, %v1893, 0.0
        %v1950 = vadd.f32 %v1948, %v1949
        %v1951 = vsel %vm1513, %v1894, 0.0
        %v1952 = vadd.f32 %v1950, %v1951
        %v1953 = vsel %vm1513, %v1895, 0.0
        %v1954 = vadd.f32 %v1952, %v1953
        %v1955 = vsel %vm1513, %v1896, 0.0
        %v1956 = vadd.f32 %v1954, %v1955
        %v1957 = vsel %vm1513, %v1897, 0.0
        %v1958 = vadd.f32 %v1956, %v1957
        %v1959 = vsel %vm1513, %v1898, 0.0
        %v1960 = vadd.f32 %v1958, %v1959
        %v1961 = vsel %vm1513, %v1899, 0.0
        %v1962 = vadd.f32 %v1960, %v1961
        %v1963 = vrot.slane %v1962, 4
        %v1964 = vadd.f32 %v1962, %v1963
        %v1965 = vrot.slane %v1964, 2
        %v1966 = vadd.f32 %v1964, %v1965
        %v1967 = vrot.slane %v1966, 1
        %v1968 = vadd.f32 %v1966, %v1967
        %v1969 = vmul.f32 %v1796, 256.0
        %v1970 = vadd.f32 %v1867, %v1969
        %v1971 = vmul.f32 %v1796, 2.0
        %v1972 = vmul.f32 %v1971, %v1867
        %v1973 = vadd.f32 %v1968, %v1972
        %v1974 = vmul.f32 %v1796, %v1796
        %v1975 = vmul.f32 %v1974, 256.0
        %v1976 = vadd.f32 %v1973, %v1975
        %vm1977 = vcmask 57344
        %v1978 = vsel %vm1977, %v1970, 0.0
        %1979 = vadd.xlane.f32.xlu0 %v1978
        %v1980 = vpop.xlane.xlu0 %1979
        %1982 = vrot.lane.b32.xlu0 %v1970, 120
        %v1983 = vpop.permute.xlu0 %1982
        %v1985 = vsel %vm1977, %v1983, 0.0
        %1986 = vadd.xlane.f32.xlu0 %v1985
        %v1987 = vpop.xlane.xlu0 %1986
        %1988 = vrot.lane.b32.xlu0 %v1970, 112
        %v1989 = vpop.permute.xlu0 %1988
        %v1991 = vsel %vm1977, %v1989, 0.0
        %1992 = vadd.xlane.f32.xlu0 %v1991
        %v1993 = vpop.xlane.xlu0 %1992
        %1994 = vrot.lane.b32.xlu0 %v1970, 104
        %v1995 = vpop.permute.xlu0 %1994
        %v1997 = vsel %vm1977, %v1995, 0.0
        %1998 = vadd.xlane.f32.xlu0 %v1997
        %v1999 = vpop.xlane.xlu0 %1998
        %v2000 = vsel %vm1315, %v1980, %v1987
        %v2001 = vsel %vm1381, %v2000, %v1993
        %v2002 = vsel %vm1447, %v2001, %v1999
        %v2003 = vmul.f32 %v2002, 0.00048828125
        %v2004 = vsel %vm1977, %v1976, 0.0
        %2005 = vadd.xlane.f32.xlu0 %v2004
        %v2006 = vpop.xlane.xlu0 %2005
        %2008 = vrot.lane.b32.xlu0 %v1976, 120
        %v2009 = vpop.permute.xlu0 %2008
        %v2011 = vsel %vm1977, %v2009, 0.0
        %2012 = vadd.xlane.f32.xlu0 %v2011
        %v2013 = vpop.xlane.xlu0 %2012
        %2014 = vrot.lane.b32.xlu0 %v1976, 112
        %v2015 = vpop.permute.xlu0 %2014
        %v2017 = vsel %vm1977, %v2015, 0.0
        %2018 = vadd.xlane.f32.xlu0 %v2017
        %v2019 = vpop.xlane.xlu0 %2018
        %2020 = vrot.lane.b32.xlu0 %v1976, 104
        %v2021 = vpop.permute.xlu0 %2020
        %v2023 = vsel %vm1977, %v2021, 0.0
        %2024 = vadd.xlane.f32.xlu0 %v2023
        %v2025 = vpop.xlane.xlu0 %2024
        %v2026 = vsel %vm1315, %v2006, %v2013
        %v2027 = vsel %vm1381, %v2026, %v2019
        %v2028 = vsel %vm1447, %v2027, %v2025
        %v2029 = vmul.f32 %v2028, 0.00048828125
        %v2030 = vmul.f32 %v2003, %v2003
        %v2031 = vsub.f32 %v2029, %v2030
        %v2032 = vadd.f32 %v2031, 1e-05
        %v2033 = vrsqrt.pop %v2032
        %v2034 = vmul.f32 %v1797, %v2033
        %v2035 = vsub.f32 %v1796, %v2003
        %v2036 = vmul.f32 %v2035, %v2034
        %v2037 = vadd.f32 %v1798, %v2036
        %v2038 = vlaneseq
        %v2039 = vshrl.u32 %v2038, 7
        %v2040 = vsub.s32 0, %v2039
        %v2041 = vrot.slane %v2034, %v2040
        %v2042 = vmul.f32 %v1670, %v2041
        %v2043 = vmul.f32 %v1673, %v2041
        %v2044 = vmul.f32 %v1678, %v2041
        %v2045 = vmul.f32 %v1681, %v2041
        %v2046 = vmul.f32 %v1686, %v2041
        %v2047 = vmul.f32 %v1689, %v2041
        %v2048 = vmul.f32 %v1694, %v2041
        %v2049 = vmul.f32 %v1697, %v2041
        %v2050 = vmul.f32 %v1702, %v2041
        %v2051 = vmul.f32 %v1705, %v2041
        %v2052 = vmul.f32 %v1710, %v2041
        %v2053 = vmul.f32 %v1713, %v2041
        %v2054 = vmul.f32 %v1718, %v2041
        %v2055 = vmul.f32 %v1721, %v2041
        %v2056 = vmul.f32 %v1726, %v2041
        %v2057 = vmul.f32 %v1729, %v2041
        %v2058 = vmul.f32 %v1734, %v2041
        %v2059 = vmul.f32 %v1737, %v2041
        %v2060 = vmul.f32 %v1742, %v2041
        %v2061 = vmul.f32 %v1745, %v2041
        %v2062 = vmul.f32 %v1750, %v2041
        %v2063 = vmul.f32 %v1753, %v2041
        %v2064 = vmul.f32 %v1758, %v2041
        %v2065 = vmul.f32 %v1761, %v2041
        %v2066 = vmul.f32 %v1766, %v2041
        %v2067 = vmul.f32 %v1769, %v2041
        %v2068 = vmul.f32 %v1774, %v2041
        %v2069 = vmul.f32 %v1777, %v2041
        %v2070 = vmul.f32 %v1782, %v2041
        %v2071 = vmul.f32 %v1785, %v2041
        %v2072 = vmul.f32 %v1790, %v2041
        %v2073 = vmul.f32 %v1793, %v2041
        %v2074 = vlaneseq
        %v2075 = vshrl.u32 %v2074, 7
        %v2076 = vsub.s32 0, %v2075
        %v2077 = vrot.slane %v2037, %v2076
        %v2078 = vadd.f32 %v2042, %v2077
        %v2079 = vadd.f32 %v2043, %v2077
        %v2080 = vadd.f32 %v2044, %v2077
        %v2081 = vadd.f32 %v2045, %v2077
        %v2082 = vadd.f32 %v2046, %v2077
        %v2083 = vadd.f32 %v2047, %v2077
        %v2084 = vadd.f32 %v2048, %v2077
        %v2085 = vadd.f32 %v2049, %v2077
        %v2086 = vadd.f32 %v2050, %v2077
        %v2087 = vadd.f32 %v2051, %v2077
        %v2088 = vadd.f32 %v2052, %v2077
        %v2089 = vadd.f32 %v2053, %v2077
        %v2090 = vadd.f32 %v2054, %v2077
        %v2091 = vadd.f32 %v2055, %v2077
        %v2092 = vadd.f32 %v2056, %v2077
        %v2093 = vadd.f32 %v2057, %v2077
        %v2094 = vadd.f32 %v2058, %v2077
        %v2095 = vadd.f32 %v2059, %v2077
        %v2096 = vadd.f32 %v2060, %v2077
        %v2097 = vadd.f32 %v2061, %v2077
        %v2098 = vadd.f32 %v2062, %v2077
        %v2099 = vadd.f32 %v2063, %v2077
        %v2100 = vadd.f32 %v2064, %v2077
        %v2101 = vadd.f32 %v2065, %v2077
        %v2102 = vadd.f32 %v2066, %v2077
        %v2103 = vadd.f32 %v2067, %v2077
        %v2104 = vadd.f32 %v2068, %v2077
        %v2105 = vadd.f32 %v2069, %v2077
        %v2106 = vadd.f32 %v2070, %v2077
        %v2107 = vadd.f32 %v2071, %v2077
        %v2108 = vadd.f32 %v2072, %v2077
        %v2109 = vadd.f32 %v2073, %v2077
        %v2110 = vmul.f32 %v2078, 0.5
        %v2111 = vmul.f32 %v2079, 0.5
        %v2112 = vmul.f32 %v2080, 0.5
        %v2113 = vmul.f32 %v2081, 0.5
        %v2114 = vmul.f32 %v2082, 0.5
        %v2115 = vmul.f32 %v2083, 0.5
        %v2116 = vmul.f32 %v2084, 0.5
        %v2117 = vmul.f32 %v2085, 0.5
        %v2118 = vmul.f32 %v2086, 0.5
        %v2119 = vmul.f32 %v2087, 0.5
        %v2120 = vmul.f32 %v2088, 0.5
        %v2121 = vmul.f32 %v2089, 0.5
        %v2122 = vmul.f32 %v2090, 0.5
        %v2123 = vmul.f32 %v2091, 0.5
        %v2124 = vmul.f32 %v2092, 0.5
        %v2125 = vmul.f32 %v2093, 0.5
        %v2126 = vmul.f32 %v2094, 0.5
        %v2127 = vmul.f32 %v2095, 0.5
        %v2128 = vmul.f32 %v2096, 0.5
        %v2129 = vmul.f32 %v2097, 0.5
        %v2130 = vmul.f32 %v2098, 0.5
        %v2131 = vmul.f32 %v2099, 0.5
        %v2132 = vmul.f32 %v2100, 0.5
        %v2133 = vmul.f32 %v2101, 0.5
        %v2134 = vmul.f32 %v2102, 0.5
        %v2135 = vmul.f32 %v2103, 0.5
        %v2136 = vmul.f32 %v2104, 0.5
        %v2137 = vmul.f32 %v2105, 0.5
        %v2138 = vmul.f32 %v2106, 0.5
        %v2139 = vmul.f32 %v2107, 0.5
        %v2140 = vmul.f32 %v2108, 0.5
        %v2141 = vmul.f32 %v2109, 0.5
        %v2142 = vmul.f32 %v2078, 0.70710677
        %v2143 = vmul.f32 %v2079, 0.70710677
        %v2144 = vmul.f32 %v2080, 0.70710677
        %v2145 = vmul.f32 %v2081, 0.70710677
        %v2146 = vmul.f32 %v2082, 0.70710677
        %v2147 = vmul.f32 %v2083, 0.70710677
        %v2148 = vmul.f32 %v2084, 0.70710677
        %v2149 = vmul.f32 %v2085, 0.70710677
        %v2150 = vmul.f32 %v2086, 0.70710677
        %v2151 = vmul.f32 %v2087, 0.70710677
        %v2152 = vmul.f32 %v2088, 0.70710677
        %v2153 = vmul.f32 %v2089, 0.70710677
        %v2154 = vmul.f32 %v2090, 0.70710677
        %v2155 = vmul.f32 %v2091, 0.70710677
        %v2156 = vmul.f32 %v2092, 0.70710677
        %v2157 = vmul.f32 %v2093, 0.70710677
        %v2158 = vmul.f32 %v2094, 0.70710677
        %v2159 = vmul.f32 %v2095, 0.70710677
        %v2160 = vmul.f32 %v2096, 0.70710677
        %v2161 = vmul.f32 %v2097, 0.70710677
        %v2162 = vmul.f32 %v2098, 0.70710677
        %v2163 = vmul.f32 %v2099, 0.70710677
        %v2164 = vmul.f32 %v2100, 0.70710677
        %v2165 = vmul.f32 %v2101, 0.70710677
        %v2166 = vmul.f32 %v2102, 0.70710677
        %v2167 = vmul.f32 %v2103, 0.70710677
        %v2168 = vmul.f32 %v2104, 0.70710677
        %v2169 = vmul.f32 %v2105, 0.70710677
        %v2170 = vmul.f32 %v2106, 0.70710677
        %v2171 = vmul.f32 %v2107, 0.70710677
        %v2172 = vmul.f32 %v2108, 0.70710677
        %v2173 = vmul.f32 %v2109, 0.70710677
        %v2174 = verf.f32.pop %v2142
        %v2175 = verf.f32.pop %v2143
        %v2176 = verf.f32.pop %v2144
        %v2177 = verf.f32.pop %v2145
        %v2178 = verf.f32.pop %v2146
        %v2179 = verf.f32.pop %v2147
        %v2180 = verf.f32.pop %v2148
        %v2181 = verf.f32.pop %v2149
        %v2182 = verf.f32.pop %v2150
        %v2183 = verf.f32.pop %v2151
        %v2184 = verf.f32.pop %v2152
        %v2185 = verf.f32.pop %v2153
        %v2186 = verf.f32.pop %v2154
        %v2187 = verf.f32.pop %v2155
        %v2188 = verf.f32.pop %v2156
        %v2189 = verf.f32.pop %v2157
        %v2190 = verf.f32.pop %v2158
        %v2191 = verf.f32.pop %v2159
        %v2192 = verf.f32.pop %v2160
        %v2193 = verf.f32.pop %v2161
        %v2194 = verf.f32.pop %v2162
        %v2195 = verf.f32.pop %v2163
        %v2196 = verf.f32.pop %v2164
        %v2197 = verf.f32.pop %v2165
        %v2198 = verf.f32.pop %v2166
        %v2199 = verf.f32.pop %v2167
        %v2200 = verf.f32.pop %v2168
        %v2201 = verf.f32.pop %v2169
        %v2202 = verf.f32.pop %v2170
        %v2203 = verf.f32.pop %v2171
        %v2204 = verf.f32.pop %v2172
        %v2205 = verf.f32.pop %v2173
        %v2206 = vadd.f32 %v2174, 1.0
        %v2207 = vadd.f32 %v2175, 1.0
        %v2208 = vadd.f32 %v2176, 1.0
        %v2209 = vadd.f32 %v2177, 1.0
        %v2210 = vadd.f32 %v2178, 1.0
        %v2211 = vadd.f32 %v2179, 1.0
        %v2212 = vadd.f32 %v2180, 1.0
        %v2213 = vadd.f32 %v2181, 1.0
        %v2214 = vadd.f32 %v2182, 1.0
        %v2215 = vadd.f32 %v2183, 1.0
        %v2216 = vadd.f32 %v2184, 1.0
        %v2217 = vadd.f32 %v2185, 1.0
        %v2218 = vadd.f32 %v2186, 1.0
        %v2219 = vadd.f32 %v2187, 1.0
        %v2220 = vadd.f32 %v2188, 1.0
        %v2221 = vadd.f32 %v2189, 1.0
        %v2222 = vadd.f32 %v2190, 1.0
        %v2223 = vadd.f32 %v2191, 1.0
        %v2224 = vadd.f32 %v2192, 1.0
        %v2225 = vadd.f32 %v2193, 1.0
        %v2226 = vadd.f32 %v2194, 1.0
        %v2227 = vadd.f32 %v2195, 1.0
        %v2228 = vadd.f32 %v2196, 1.0
        %v2229 = vadd.f32 %v2197, 1.0
        %v2230 = vadd.f32 %v2198, 1.0
        %v2231 = vadd.f32 %v2199, 1.0
        %v2232 = vadd.f32 %v2200, 1.0
        %v2233 = vadd.f32 %v2201, 1.0
        %v2234 = vadd.f32 %v2202, 1.0
        %v2235 = vadd.f32 %v2203, 1.0
        %v2236 = vadd.f32 %v2204, 1.0
        %v2237 = vadd.f32 %v2205, 1.0
        %v2238 = vmul.f32 %v2110, %v2206
        %v2239 = vmul.f32 %v2111, %v2207
        %v2240 = vmul.f32 %v2112, %v2208
        %v2241 = vmul.f32 %v2113, %v2209
        %v2242 = vmul.f32 %v2114, %v2210
        %v2243 = vmul.f32 %v2115, %v2211
        %v2244 = vmul.f32 %v2116, %v2212
        %v2245 = vmul.f32 %v2117, %v2213
        %v2246 = vmul.f32 %v2118, %v2214
        %v2247 = vmul.f32 %v2119, %v2215
        %v2248 = vmul.f32 %v2120, %v2216
        %v2249 = vmul.f32 %v2121, %v2217
        %v2250 = vmul.f32 %v2122, %v2218
        %v2251 = vmul.f32 %v2123, %v2219
        %v2252 = vmul.f32 %v2124, %v2220
        %v2253 = vmul.f32 %v2125, %v2221
        %v2254 = vmul.f32 %v2126, %v2222
        %v2255 = vmul.f32 %v2127, %v2223
        %v2256 = vmul.f32 %v2128, %v2224
        %v2257 = vmul.f32 %v2129, %v2225
        %v2258 = vmul.f32 %v2130, %v2226
        %v2259 = vmul.f32 %v2131, %v2227
        %v2260 = vmul.f32 %v2132, %v2228
        %v2261 = vmul.f32 %v2133, %v2229
        %v2262 = vmul.f32 %v2134, %v2230
        %v2263 = vmul.f32 %v2135, %v2231
        %v2264 = vmul.f32 %v2136, %v2232
        %v2265 = vmul.f32 %v2137, %v2233
        %v2266 = vmul.f32 %v2138, %v2234
        %v2267 = vmul.f32 %v2139, %v2235
        %v2268 = vmul.f32 %v2140, %v2236
        %v2269 = vmul.f32 %v2141, %v2237
        %2270 = vst.msk [vmem:[#allocation2] sm:$0xff] %vm1513, 0.0
        %2271 = vst.msk [vmem:[#allocation2 + $0x8] sm:$0xff] %vm1513, 0.0
        %vm2272 = vcmask 254976
        %2273 = vst.msk [vmem:[#allocation2 + $0x10] sm:$0x3] %vm2272, 0.0
        %2274 = vst.msk [vmem:[#allocation2 + $0x18] sm:$0xff] %vm1513, 0.0
        %2275 = vst.msk [vmem:[#allocation2 + $0x20] sm:$0xff] %vm1513, 0.0
        %2276 = vst.msk [vmem:[#allocation2 + $0x28] sm:$0x3] %vm2272, 0.0
        %2277 = vst.msk [vmem:[#allocation2 + $0x30] sm:$0xff] %vm1513, 0.0
        %2278 = vst.msk [vmem:[#allocation2 + $0x38] sm:$0xff] %vm1513, 0.0
        %2279 = vst.msk [vmem:[#allocation2 + $0x40] sm:$0x3] %vm2272, 0.0
        %2280 = vst.msk [vmem:[#allocation2 + $0x48] sm:$0xff] %vm1513, 0.0
        %2281 = vst.msk [vmem:[#allocation2 + $0x50] sm:$0xff] %vm1513, 0.0
        %2282 = vst.msk [vmem:[#allocation2 + $0x58] sm:$0x3] %vm2272, 0.0
        %2283 = vst.msk [vmem:[#allocation2 + $0x60] sm:$0xff] %vm1513, 0.0
        %2284 = vst.msk [vmem:[#allocation2 + $0x68] sm:$0xff] %vm1513, 0.0
        %2285 = vst.msk [vmem:[#allocation2 + $0x70] sm:$0x3] %vm2272, 0.0
        %2286 = vst.msk [vmem:[#allocation2 + $0x78] sm:$0xff] %vm1513, 0.0
        %2287 = vst.msk [vmem:[#allocation2 + $0x80] sm:$0xff] %vm1513, 0.0
        %2288 = vst.msk [vmem:[#allocation2 + $0x88] sm:$0x3] %vm2272, 0.0
        %2289 = vst.msk [vmem:[#allocation2 + $0x90] sm:$0xff] %vm1513, 0.0
        %2290 = vst.msk [vmem:[#allocation2 + $0x98] sm:$0xff] %vm1513, 0.0
        %2291 = vst.msk [vmem:[#allocation2 + $0xa0] sm:$0x3] %vm2272, 0.0
        %2292 = vst.msk [vmem:[#allocation2 + $0xa8] sm:$0xff] %vm1513, 0.0
        %2293 = vst.msk [vmem:[#allocation2 + $0xb0] sm:$0xff] %vm1513, 0.0
        %2294 = vst.msk [vmem:[#allocation2 + $0xb8] sm:$0x3] %vm2272, 0.0
        %2295 = vst.msk [vmem:[#allocation2 + $0xc0] sm:$0xff] %vm1513, 0.0
        %2296 = vst.msk [vmem:[#allocation2 + $0xc8] sm:$0xff] %vm1513, 0.0
        %2297 = vst.msk [vmem:[#allocation2 + $0xd0] sm:$0x3] %vm2272, 0.0
        %2298 = vst.msk [vmem:[#allocation2 + $0xd8] sm:$0xff] %vm1513, 0.0
        %2299 = vst.msk [vmem:[#allocation2 + $0xe0] sm:$0xff] %vm1513, 0.0
        %2300 = vst.msk [vmem:[#allocation2 + $0xe8] sm:$0x3] %vm2272, 0.0
        %2301 = vst.msk [vmem:[#allocation2 + $0xf0] sm:$0xff] %vm1513, 0.0
        %2302 = vst.msk [vmem:[#allocation2 + $0xf8] sm:$0xff] %vm1513, 0.0
        %2303 = vst.msk [vmem:[#allocation2 + $0x100] sm:$0x3] %vm2272, 0.0
        %2304 = vst.msk [vmem:[#allocation2 + $0x108] sm:$0xff] %vm1513, 0.0
        %2305 = vst.msk [vmem:[#allocation2 + $0x110] sm:$0xff] %vm1513, 0.0
        %2306 = vst.msk [vmem:[#allocation2 + $0x118] sm:$0x3] %vm2272, 0.0
        %2307 = vst.msk [vmem:[#allocation2 + $0x120] sm:$0xff] %vm1513, 0.0
        %2308 = vst.msk [vmem:[#allocation2 + $0x128] sm:$0xff] %vm1513, 0.0
        %2309 = vst.msk [vmem:[#allocation2 + $0x130] sm:$0x3] %vm2272, 0.0
        %2310 = vst.msk [vmem:[#allocation2 + $0x138] sm:$0xff] %vm1513, 0.0
        %2311 = vst.msk [vmem:[#allocation2 + $0x140] sm:$0xff] %vm1513, 0.0
        %2312 = vst.msk [vmem:[#allocation2 + $0x148] sm:$0x3] %vm2272, 0.0
        %2313 = vst.msk [vmem:[#allocation2 + $0x150] sm:$0xff] %vm1513, 0.0
        %2314 = vst.msk [vmem:[#allocation2 + $0x158] sm:$0xff] %vm1513, 0.0
        %2315 = vst.msk [vmem:[#allocation2 + $0x160] sm:$0x3] %vm2272, 0.0
        %2316 = vst.msk [vmem:[#allocation2 + $0x168] sm:$0xff] %vm1513, 0.0
        %2317 = vst.msk [vmem:[#allocation2 + $0x170] sm:$0xff] %vm1513, 0.0
        %2318 = vst.msk [vmem:[#allocation2 + $0x178] sm:$0x3] %vm2272, 0.0
        %2319 = vst.msk [vmem:[#allocation2 + $0x180] sm:$0xff] %vm1513, 0.0
        %2320 = vst.msk [vmem:[#allocation2 + $0x188] sm:$0xff] %vm1513, 0.0
        %2321 = vst.msk [vmem:[#allocation2 + $0x190] sm:$0x3] %vm2272, 0.0
        %2322 = vst.msk [vmem:[#allocation2 + $0x198] sm:$0xff] %vm1513, 0.0
        %2323 = vst.msk [vmem:[#allocation2 + $0x1a0] sm:$0xff] %vm1513, 0.0
        %2324 = vst.msk [vmem:[#allocation2 + $0x1a8] sm:$0x3] %vm2272, 0.0
        %s2325 = scalar_lea.vmem [#allocation2], 24
        %2326 = vst.msk [vmem:[%s2325 + $0x1] sm:$0xff] %vm1513, %v2238
        %2327 = vst.msk [vmem:[%s2325 + $0x9] sm:$0xff] %vm1513, %v2239
        %2328 = vst.msk [vmem:[%s2325 + $0x19] sm:$0xff] %vm1513, %v2240
        %2329 = vst.msk [vmem:[%s2325 + $0x21] sm:$0xff] %vm1513, %v2241
        %2330 = vst.msk [vmem:[%s2325 + $0x31] sm:$0xff] %vm1513, %v2242
        %2331 = vst.msk [vmem:[%s2325 + $0x39] sm:$0xff] %vm1513, %v2243
        %2332 = vst.msk [vmem:[%s2325 + $0x49] sm:$0xff] %vm1513, %v2244
        %2333 = vst.msk [vmem:[%s2325 + $0x51] sm:$0xff] %vm1513, %v2245
        %2334 = vst.msk [vmem:[%s2325 + $0x61] sm:$0xff] %vm1513, %v2246
        %2335 = vst.msk [vmem:[%s2325 + $0x69] sm:$0xff] %vm1513, %v2247
        %2336 = vst.msk [vmem:[%s2325 + $0x79] sm:$0xff] %vm1513, %v2248
        %2337 = vst.msk [vmem:[%s2325 + $0x81] sm:$0xff] %vm1513, %v2249
        %2338 = vst.msk [vmem:[%s2325 + $0x91] sm:$0xff] %vm1513, %v2250
        %2339 = vst.msk [vmem:[%s2325 + $0x99] sm:$0xff] %vm1513, %v2251
        %2340 = vst.msk [vmem:[%s2325 + $0xa9] sm:$0xff] %vm1513, %v2252
        %2341 = vst.msk [vmem:[%s2325 + $0xb1] sm:$0xff] %vm1513, %v2253
        %2342 = vst.msk [vmem:[%s2325 + $0xc1] sm:$0xff] %vm1513, %v2254
        %2343 = vst.msk [vmem:[%s2325 + $0xc9] sm:$0xff] %vm1513, %v2255
        %2344 = vst.msk [vmem:[%s2325 + $0xd9] sm:$0xff] %vm1513, %v2256
        %2345 = vst.msk [vmem:[%s2325 + $0xe1] sm:$0xff] %vm1513, %v2257
        %2346 = vst.msk [vmem:[%s2325 + $0xf1] sm:$0xff] %vm1513, %v2258
        %2347 = vst.msk [vmem:[%s2325 + $0xf9] sm:$0xff] %vm1513, %v2259
        %2348 = vst.msk [vmem:[%s2325 + $0x109] sm:$0xff] %vm1513, %v2260
        %2349 = vst.msk [vmem:[%s2325 + $0x111] sm:$0xff] %vm1513, %v2261
        %2350 = vst.msk [vmem:[%s2325 + $0x121] sm:$0xff] %vm1513, %v2262
        %2351 = vst.msk [vmem:[%s2325 + $0x129] sm:$0xff] %vm1513, %v2263
        %2352 = vst.msk [vmem:[%s2325 + $0x139] sm:$0xff] %vm1513, %v2264
        %2353 = vst.msk [vmem:[%s2325 + $0x141] sm:$0xff] %vm1513, %v2265
        %2354 = vst.msk [vmem:[%s2325 + $0x151] sm:$0xff] %vm1513, %v2266
        %2355 = vst.msk [vmem:[%s2325 + $0x159] sm:$0xff] %vm1513, %v2267
        %2356 = vst.msk [vmem:[%s2325 + $0x169] sm:$0xff] %vm1513, %v2268
        %2357 = vst.msk [vmem:[%s2325 + $0x171] sm:$0xff] %vm1513, %v2269
        %v2358 = vld [vmem:[#allocation2] sm:$0xff]
        %v2359 = vld [vmem:[#allocation2 + $0x8] sm:$0xff]
        %v2360 = vld [vmem:[#allocation2 + $0x10] sm:$0x3]
        %v2361 = vld [vmem:[#allocation2 + $0x18] sm:$0xff]
        %v2362 = vld [vmem:[#allocation2 + $0x20] sm:$0xff]
        %v2363 = vld [vmem:[#allocation2 + $0x28] sm:$0x3]
        %v2364 = vld [vmem:[#allocation2 + $0x30] sm:$0xff]
        %v2365 = vld [vmem:[#allocation2 + $0x38] sm:$0xff]
        %v2366 = vld [vmem:[#allocation2 + $0x40] sm:$0x3]
        %v2367 = vld [vmem:[#allocation2 + $0x48] sm:$0xff]
        %v2368 = vld [vmem:[#allocation2 + $0x50] sm:$0xff]
        %v2369 = vld [vmem:[#allocation2 + $0x58] sm:$0x3]
        %v2370 = vld [vmem:[#allocation2 + $0x60] sm:$0xff]
        %v2371 = vld [vmem:[#allocation2 + $0x68] sm:$0xff]
        %v2372 = vld [vmem:[#allocation2 + $0x70] sm:$0x3]
        %v2373 = vld [vmem:[#allocation2 + $0x78] sm:$0xff]
        %v2374 = vld [vmem:[#allocation2 + $0x80] sm:$0xff]
        %v2375 = vld [vmem:[#allocation2 + $0x88] sm:$0x3]
        %v2376 = vld [vmem:[#allocation2 + $0x90] sm:$0xff]
        %v2377 = vld [vmem:[#allocation2 + $0x98] sm:$0xff]
        %v2378 = vld [vmem:[#allocation2 + $0xa0] sm:$0x3]
        %v2379 = vld [vmem:[#allocation2 + $0xa8] sm:$0xff]
        %v2380 = vld [vmem:[#allocation2 + $0xb0] sm:$0xff]
        %v2381 = vld [vmem:[#allocation2 + $0xb8] sm:$0x3]
        %v2382 = vld [vmem:[#allocation2 + $0xc0] sm:$0xff]
        %v2383 = vld [vmem:[#allocation2 + $0xc8] sm:$0xff]
        %v2384 = vld [vmem:[#allocation2 + $0xd0] sm:$0x3]
        %v2385 = vld [vmem:[#allocation2 + $0xd8] sm:$0xff]
        %v2386 = vld [vmem:[#allocation2 + $0xe0] sm:$0xff]
        %v2387 = vld [vmem:[#allocation2 + $0xe8] sm:$0x3]
        %v2388 = vld [vmem:[#allocation2 + $0xf0] sm:$0xff]
        %v2389 = vld [vmem:[#allocation2 + $0xf8] sm:$0xff]
        %v2390 = vld [vmem:[#allocation2 + $0x100] sm:$0x3]
        %v2391 = vld [vmem:[#allocation2 + $0x108] sm:$0xff]
        %v2392 = vld [vmem:[#allocation2 + $0x110] sm:$0xff]
        %v2393 = vld [vmem:[#allocation2 + $0x118] sm:$0x3]
        %v2394 = vld [vmem:[#allocation2 + $0x120] sm:$0xff]
        %v2395 = vld [vmem:[#allocation2 + $0x128] sm:$0xff]
        %v2396 = vld [vmem:[#allocation2 + $0x130] sm:$0x3]
        %v2397 = vld [vmem:[#allocation2 + $0x138] sm:$0xff]
        %v2398 = vld [vmem:[#allocation2 + $0x140] sm:$0xff]
        %v2399 = vld [vmem:[#allocation2 + $0x148] sm:$0x3]
        %v2400 = vld [vmem:[#allocation2 + $0x150] sm:$0xff]
        %v2401 = vld [vmem:[#allocation2 + $0x158] sm:$0xff]
        %v2402 = vld [vmem:[#allocation2 + $0x160] sm:$0x3]
        %v2403 = vld [vmem:[#allocation2 + $0x168] sm:$0xff]
        %v2404 = vld [vmem:[#allocation2 + $0x170] sm:$0xff]
        %v2405 = vld [vmem:[#allocation2 + $0x178] sm:$0x3]
        %v2406 = vld [vmem:[#allocation2 + $0x180] sm:$0xff]
        %v2407 = vld [vmem:[#allocation2 + $0x188] sm:$0xff]
        %v2408 = vld [vmem:[#allocation2 + $0x190] sm:$0x3]
        %v2409 = vld [vmem:[#allocation2 + $0x198] sm:$0xff]
        %v2410 = vld [vmem:[#allocation2 + $0x1a0] sm:$0xff]
        %v2411 = vld [vmem:[#allocation2 + $0x1a8] sm:$0x3]
        %v2460 = vrot.slane %v2358, 1
        %v2461 = vrot.slane %v2359, 1
        %v2462 = vsel %vm326, %v2460, %v2461
        %v2463 = vrot.slane %v2360, 1
        %v2464 = vsel %vm326, %v2461, %v2463
        %v2465 = vrot.slane %v2361, 1
        %v2466 = vrot.slane %v2362, 1
        %v2467 = vsel %vm326, %v2465, %v2466
        %v2468 = vrot.slane %v2363, 1
        %v2469 = vsel %vm326, %v2466, %v2468
        %v2470 = vrot.slane %v2364, 1
        %v2471 = vrot.slane %v2365, 1
        %v2472 = vsel %vm326, %v2470, %v2471
        %v2473 = vrot.slane %v2366, 1
        %v2474 = vsel %vm326, %v2471, %v2473
        %v2475 = vrot.slane %v2367, 1
        %v2476 = vrot.slane %v2368, 1
        %v2477 = vsel %vm326, %v2475, %v2476
        %v2478 = vrot.slane %v2369, 1
        %v2479 = vsel %vm326, %v2476, %v2478
        %v2480 = vrot.slane %v2370, 1
        %v2481 = vrot.slane %v2371, 1
        %v2482 = vsel %vm326, %v2480, %v2481
        %v2483 = vrot.slane %v2372, 1
        %v2484 = vsel %vm326, %v2481, %v2483
        %v2485 = vrot.slane %v2373, 1
        %v2486 = vrot.slane %v2374, 1
        %v2487 = vsel %vm326, %v2485, %v2486
        %v2488 = vrot.slane %v2375, 1
        %v2489 = vsel %vm326, %v2486, %v2488
        %v2490 = vrot.slane %v2376, 1
        %v2491 = vrot.slane %v2377, 1
        %v2492 = vsel %vm326, %v2490, %v2491
        %v2493 = vrot.slane %v2378, 1
        %v2494 = vsel %vm326, %v2491, %v2493
        %v2495 = vrot.slane %v2379, 1
        %v2496 = vrot.slane %v2380, 1
        %v2497 = vsel %vm326, %v2495, %v2496
        %v2498 = vrot.slane %v2381, 1
        %v2499 = vsel %vm326, %v2496, %v2498
        %v2500 = vrot.slane %v2382, 1
        %v2501 = vrot.slane %v2383, 1
        %v2502 = vsel %vm326, %v2500, %v2501
        %v2503 = vrot.slane %v2384, 1
        %v2504 = vsel %vm326, %v2501, %v2503
        %v2505 = vrot.slane %v2385, 1
        %v2506 = vrot.slane %v2386, 1
        %v2507 = vsel %vm326, %v2505, %v2506
        %v2508 = vrot.slane %v2387, 1
        %v2509 = vsel %vm326, %v2506, %v2508
        %v2510 = vrot.slane %v2388, 1
        %v2511 = vrot.slane %v2389, 1
        %v2512 = vsel %vm326, %v2510, %v2511
        %v2513 = vrot.slane %v2390, 1
        %v2514 = vsel %vm326, %v2511, %v2513
        %v2515 = vrot.slane %v2391, 1
        %v2516 = vrot.slane %v2392, 1
        %v2517 = vsel %vm326, %v2515, %v2516
        %v2518 = vrot.slane %v2393, 1
        %v2519 = vsel %vm326, %v2516, %v2518
        %v2520 = vrot.slane %v2394, 1
        %v2521 = vrot.slane %v2395, 1
        %v2522 = vsel %vm326, %v2520, %v2521
        %v2523 = vrot.slane %v2396, 1
        %v2524 = vsel %vm326, %v2521, %v2523
        %v2525 = vrot.slane %v2397, 1
        %v2526 = vrot.slane %v2398, 1
        %v2527 = vsel %vm326, %v2525, %v2526
        %v2528 = vrot.slane %v2399, 1
        %v2529 = vsel %vm326, %v2526, %v2528
        %v2530 = vrot.slane %v2400, 1
        %v2531 = vrot.slane %v2401, 1
        %v2532 = vsel %vm326, %v2530, %v2531
        %v2533 = vrot.slane %v2402, 1
        %v2534 = vsel %vm326, %v2531, %v2533
        %v2535 = vrot.slane %v2403, 1
        %v2536 = vrot.slane %v2404, 1
        %v2537 = vsel %vm326, %v2535, %v2536
        %v2538 = vrot.slane %v2405, 1
        %v2539 = vsel %vm326, %v2536, %v2538
        %v2540 = vrot.slane %v2358, 2
        %v2541 = vrot.slane %v2359, 2
        %v2542 = vsel %vm407, %v2540, %v2541
        %v2543 = vrot.slane %v2360, 2
        %v2544 = vsel %vm407, %v2541, %v2543
        %v2545 = vrot.slane %v2361, 2
        %v2546 = vrot.slane %v2362, 2
        %v2547 = vsel %vm407, %v2545, %v2546
        %v2548 = vrot.slane %v2363, 2
        %v2549 = vsel %vm407, %v2546, %v2548
        %v2550 = vrot.slane %v2364, 2
        %v2551 = vrot.slane %v2365, 2
        %v2552 = vsel %vm407, %v2550, %v2551
        %v2553 = vrot.slane %v2366, 2
        %v2554 = vsel %vm407, %v2551, %v2553
        %v2555 = vrot.slane %v2367, 2
        %v2556 = vrot.slane %v2368, 2
        %v2557 = vsel %vm407, %v2555, %v2556
        %v2558 = vrot.slane %v2369, 2
        %v2559 = vsel %vm407, %v2556, %v2558
        %v2560 = vrot.slane %v2370, 2
        %v2561 = vrot.slane %v2371, 2
        %v2562 = vsel %vm407, %v2560, %v2561
        %v2563 = vrot.slane %v2372, 2
        %v2564 = vsel %vm407, %v2561, %v2563
        %v2565 = vrot.slane %v2373, 2
        %v2566 = vrot.slane %v2374, 2
        %v2567 = vsel %vm407, %v2565, %v2566
        %v2568 = vrot.slane %v2375, 2
        %v2569 = vsel %vm407, %v2566, %v2568
        %v2570 = vrot.slane %v2376, 2
        %v2571 = vrot.slane %v2377, 2
        %v2572 = vsel %vm407, %v2570, %v2571
        %v2573 = vrot.slane %v2378, 2
        %v2574 = vsel %vm407, %v2571, %v2573
        %v2575 = vrot.slane %v2379, 2
        %v2576 = vrot.slane %v2380, 2
        %v2577 = vsel %vm407, %v2575, %v2576
        %v2578 = vrot.slane %v2381, 2
        %v2579 = vsel %vm407, %v2576, %v2578
        %v2580 = vrot.slane %v2382, 2
        %v2581 = vrot.slane %v2383, 2
        %v2582 = vsel %vm407, %v2580, %v2581
        %v2583 = vrot.slane %v2384, 2
        %v2584 = vsel %vm407, %v2581, %v2583
        %v2585 = vrot.slane %v2385, 2
        %v2586 = vrot.slane %v2386, 2
        %v2587 = vsel %vm407, %v2585, %v2586
        %v2588 = vrot.slane %v2387, 2
        %v2589 = vsel %vm407, %v2586, %v2588
        %v2590 = vrot.slane %v2388, 2
        %v2591 = vrot.slane %v2389, 2
        %v2592 = vsel %vm407, %v2590, %v2591
        %v2593 = vrot.slane %v2390, 2
        %v2594 = vsel %vm407, %v2591, %v2593
        %v2595 = vrot.slane %v2391, 2
        %v2596 = vrot.slane %v2392, 2
        %v2597 = vsel %vm407, %v2595, %v2596
        %v2598 = vrot.slane %v2393, 2
        %v2599 = vsel %vm407, %v2596, %v2598
        %v2600 = vrot.slane %v2394, 2
        %v2601 = vrot.slane %v2395, 2
        %v2602 = vsel %vm407, %v2600, %v2601
        %v2603 = vrot.slane %v2396, 2
        %v2604 = vsel %vm407, %v2601, %v2603
        %v2605 = vrot.slane %v2397, 2
        %v2606 = vrot.slane %v2398, 2
        %v2607 = vsel %vm407, %v2605, %v2606
        %v2608 = vrot.slane %v2399, 2
        %v2609 = vsel %vm407, %v2606, %v2608
        %v2610 = vrot.slane %v2400, 2
        %v2611 = vrot.slane %v2401, 2
        %v2612 = vsel %vm407, %v2610, %v2611
        %v2613 = vrot.slane %v2402, 2
        %v2614 = vsel %vm407, %v2611, %v2613
        %v2615 = vrot.slane %v2403, 2
        %v2616 = vrot.slane %v2404, 2
        %v2617 = vsel %vm407, %v2615, %v2616
        %v2618 = vrot.slane %v2405, 2
        %v2619 = vsel %vm407, %v2616, %v2618
        %v2623 = vrot.slane %v2406, 1
        %v2624 = vrot.slane %v2407, 1
        %v2625 = vsel %vm326, %v2623, %v2624
        %v2626 = vrot.slane %v2408, 1
        %v2627 = vsel %vm326, %v2624, %v2626
        %v2660 = vrot.slane %v2406, 2
        %v2661 = vrot.slane %v2407, 2
        %v2662 = vsel %vm407, %v2660, %v2661
        %v2663 = vrot.slane %v2408, 2
        %v2664 = vsel %vm407, %v2661, %v2663
        %v2668 = vrot.slane %v2409, 1
        %v2669 = vrot.slane %v2410, 1
        %v2670 = vsel %vm326, %v2668, %v2669
        %v2671 = vrot.slane %v2411, 1
        %v2672 = vsel %vm326, %v2669, %v2671
        %v2673 = vrot.slane %v2409, 2
        %v2674 = vrot.slane %v2410, 2
        %v2675 = vsel %vm407, %v2673, %v2674
        %v2676 = vrot.slane %v2411, 2
        %v2677 = vsel %vm407, %v2674, %v2676
        %2710 = vrot.lane.b32.xlu0 %v2462, 32
        %v2711 = vpop.permute.xlu0 %2710
        %2712 = vrot.lane.b32.xlu0 %v2464, 32
        %v2713 = vpop.permute.xlu0 %2712
        %2714 = vrot.lane.b32.xlu0 %v2467, 32
        %v2715 = vpop.permute.xlu0 %2714
        %2716 = vrot.lane.b32.xlu0 %v2469, 32
        %v2717 = vpop.permute.xlu0 %2716
        %2718 = vrot.lane.b32.xlu0 %v2472, 32
        %v2719 = vpop.permute.xlu0 %2718
        %2720 = vrot.lane.b32.xlu0 %v2474, 32
        %v2721 = vpop.permute.xlu0 %2720
        %2722 = vrot.lane.b32.xlu0 %v2477, 32
        %v2723 = vpop.permute.xlu0 %2722
        %2724 = vrot.lane.b32.xlu0 %v2479, 32
        %v2725 = vpop.permute.xlu0 %2724
        %2726 = vrot.lane.b32.xlu0 %v2482, 32
        %v2727 = vpop.permute.xlu0 %2726
        %2728 = vrot.lane.b32.xlu0 %v2484, 32
        %v2729 = vpop.permute.xlu0 %2728
        %2730 = vrot.lane.b32.xlu0 %v2487, 32
        %v2731 = vpop.permute.xlu0 %2730
        %2732 = vrot.lane.b32.xlu0 %v2489, 32
        %v2733 = vpop.permute.xlu0 %2732
        %2734 = vrot.lane.b32.xlu0 %v2492, 32
        %v2735 = vpop.permute.xlu0 %2734
        %2736 = vrot.lane.b32.xlu0 %v2494, 32
        %v2737 = vpop.permute.xlu0 %2736
        %2738 = vrot.lane.b32.xlu0 %v2497, 32
        %v2739 = vpop.permute.xlu0 %2738
        %2740 = vrot.lane.b32.xlu0 %v2499, 32
        %v2741 = vpop.permute.xlu0 %2740
        %2742 = vrot.lane.b32.xlu0 %v2502, 32
        %v2743 = vpop.permute.xlu0 %2742
        %2744 = vrot.lane.b32.xlu0 %v2504, 32
        %v2745 = vpop.permute.xlu0 %2744
        %2746 = vrot.lane.b32.xlu0 %v2507, 32
        %v2747 = vpop.permute.xlu0 %2746
        %2748 = vrot.lane.b32.xlu0 %v2509, 32
        %v2749 = vpop.permute.xlu0 %2748
        %2750 = vrot.lane.b32.xlu0 %v2512, 32
        %v2751 = vpop.permute.xlu0 %2750
        %2752 = vrot.lane.b32.xlu0 %v2514, 32
        %v2753 = vpop.permute.xlu0 %2752
        %2754 = vrot.lane.b32.xlu0 %v2517, 32
        %v2755 = vpop.permute.xlu0 %2754
        %2756 = vrot.lane.b32.xlu0 %v2519, 32
        %v2757 = vpop.permute.xlu0 %2756
        %2758 = vrot.lane.b32.xlu0 %v2522, 32
        %v2759 = vpop.permute.xlu0 %2758
        %2760 = vrot.lane.b32.xlu0 %v2524, 32
        %v2761 = vpop.permute.xlu0 %2760
        %2762 = vrot.lane.b32.xlu0 %v2527, 32
        %v2763 = vpop.permute.xlu0 %2762
        %2764 = vrot.lane.b32.xlu0 %v2529, 32
        %v2765 = vpop.permute.xlu0 %2764
        %2766 = vrot.lane.b32.xlu0 %v2532, 32
        %v2767 = vpop.permute.xlu0 %2766
        %2768 = vrot.lane.b32.xlu0 %v2534, 32
        %v2769 = vpop.permute.xlu0 %2768
        %2770 = vrot.lane.b32.xlu0 %v2537, 32
        %v2771 = vpop.permute.xlu0 %2770
        %2772 = vrot.lane.b32.xlu0 %v2539, 32
        %v2773 = vpop.permute.xlu0 %2772
        %2806 = vrot.lane.b32.xlu0 %v2542, 64
        %v2807 = vpop.permute.xlu0 %2806
        %2808 = vrot.lane.b32.xlu0 %v2544, 64
        %v2809 = vpop.permute.xlu0 %2808
        %2810 = vrot.lane.b32.xlu0 %v2547, 64
        %v2811 = vpop.permute.xlu0 %2810
        %2812 = vrot.lane.b32.xlu0 %v2549, 64
        %v2813 = vpop.permute.xlu0 %2812
        %2814 = vrot.lane.b32.xlu0 %v2552, 64
        %v2815 = vpop.permute.xlu0 %2814
        %2816 = vrot.lane.b32.xlu0 %v2554, 64
        %v2817 = vpop.permute.xlu0 %2816
        %2818 = vrot.lane.b32.xlu0 %v2557, 64
        %v2819 = vpop.permute.xlu0 %2818
        %2820 = vrot.lane.b32.xlu0 %v2559, 64
        %v2821 = vpop.permute.xlu0 %2820
        %2822 = vrot.lane.b32.xlu0 %v2562, 64
        %v2823 = vpop.permute.xlu0 %2822
        %2824 = vrot.lane.b32.xlu0 %v2564, 64
        %v2825 = vpop.permute.xlu0 %2824
        %2826 = vrot.lane.b32.xlu0 %v2567, 64
        %v2827 = vpop.permute.xlu0 %2826
        %2828 = vrot.lane.b32.xlu0 %v2569, 64
        %v2829 = vpop.permute.xlu0 %2828
        %2830 = vrot.lane.b32.xlu0 %v2572, 64
        %v2831 = vpop.permute.xlu0 %2830
        %2832 = vrot.lane.b32.xlu0 %v2574, 64
        %v2833 = vpop.permute.xlu0 %2832
        %2834 = vrot.lane.b32.xlu0 %v2577, 64
        %v2835 = vpop.permute.xlu0 %2834
        %2836 = vrot.lane.b32.xlu0 %v2579, 64
        %v2837 = vpop.permute.xlu0 %2836
        %2838 = vrot.lane.b32.xlu0 %v2582, 64
        %v2839 = vpop.permute.xlu0 %2838
        %2840 = vrot.lane.b32.xlu0 %v2584, 64
        %v2841 = vpop.permute.xlu0 %2840
        %2842 = vrot.lane.b32.xlu0 %v2587, 64
        %v2843 = vpop.permute.xlu0 %2842
        %2844 = vrot.lane.b32.xlu0 %v2589, 64
        %v2845 = vpop.permute.xlu0 %2844
        %2846 = vrot.lane.b32.xlu0 %v2592, 64
        %v2847 = vpop.permute.xlu0 %2846
        %2848 = vrot.lane.b32.xlu0 %v2594, 64
        %v2849 = vpop.permute.xlu0 %2848
        %2850 = vrot.lane.b32.xlu0 %v2597, 64
        %v2851 = vpop.permute.xlu0 %2850
        %2852 = vrot.lane.b32.xlu0 %v2599, 64
        %v2853 = vpop.permute.xlu0 %2852
        %2854 = vrot.lane.b32.xlu0 %v2602, 64
        %v2855 = vpop.permute.xlu0 %2854
        %2856 = vrot.lane.b32.xlu0 %v2604, 64
        %v2857 = vpop.permute.xlu0 %2856
        %2858 = vrot.lane.b32.xlu0 %v2607, 64
        %v2859 = vpop.permute.xlu0 %2858
        %2860 = vrot.lane.b32.xlu0 %v2609, 64
        %v2861 = vpop.permute.xlu0 %2860
        %2862 = vrot.lane.b32.xlu0 %v2612, 64
        %v2863 = vpop.permute.xlu0 %2862
        %2864 = vrot.lane.b32.xlu0 %v2614, 64
        %v2865 = vpop.permute.xlu0 %2864
        %2866 = vrot.lane.b32.xlu0 %v2617, 64
        %v2867 = vpop.permute.xlu0 %2866
        %2868 = vrot.lane.b32.xlu0 %v2619, 64
        %v2869 = vpop.permute.xlu0 %2868
        %2902 = vrot.lane.b32.xlu0 %v2361, 96
        %v2903 = vpop.permute.xlu0 %2902
        %2904 = vrot.lane.b32.xlu0 %v2362, 96
        %v2905 = vpop.permute.xlu0 %2904
        %2906 = vrot.lane.b32.xlu0 %v2364, 96
        %v2907 = vpop.permute.xlu0 %2906
        %2908 = vrot.lane.b32.xlu0 %v2365, 96
        %v2909 = vpop.permute.xlu0 %2908
        %2910 = vrot.lane.b32.xlu0 %v2367, 96
        %v2911 = vpop.permute.xlu0 %2910
        %2912 = vrot.lane.b32.xlu0 %v2368, 96
        %v2913 = vpop.permute.xlu0 %2912
        %2914 = vrot.lane.b32.xlu0 %v2370, 96
        %v2915 = vpop.permute.xlu0 %2914
        %2916 = vrot.lane.b32.xlu0 %v2371, 96
        %v2917 = vpop.permute.xlu0 %2916
        %2918 = vrot.lane.b32.xlu0 %v2373, 96
        %v2919 = vpop.permute.xlu0 %2918
        %2920 = vrot.lane.b32.xlu0 %v2374, 96
        %v2921 = vpop.permute.xlu0 %2920
        %2922 = vrot.lane.b32.xlu0 %v2376, 96
        %v2923 = vpop.permute.xlu0 %2922
        %2924 = vrot.lane.b32.xlu0 %v2377, 96
        %v2925 = vpop.permute.xlu0 %2924
        %2926 = vrot.lane.b32.xlu0 %v2379, 96
        %v2927 = vpop.permute.xlu0 %2926
        %2928 = vrot.lane.b32.xlu0 %v2380, 96
        %v2929 = vpop.permute.xlu0 %2928
        %2930 = vrot.lane.b32.xlu0 %v2382, 96
        %v2931 = vpop.permute.xlu0 %2930
        %2932 = vrot.lane.b32.xlu0 %v2383, 96
        %v2933 = vpop.permute.xlu0 %2932
        %2934 = vrot.lane.b32.xlu0 %v2385, 96
        %v2935 = vpop.permute.xlu0 %2934
        %2936 = vrot.lane.b32.xlu0 %v2386, 96
        %v2937 = vpop.permute.xlu0 %2936
        %2938 = vrot.lane.b32.xlu0 %v2388, 96
        %v2939 = vpop.permute.xlu0 %2938
        %2940 = vrot.lane.b32.xlu0 %v2389, 96
        %v2941 = vpop.permute.xlu0 %2940
        %2942 = vrot.lane.b32.xlu0 %v2391, 96
        %v2943 = vpop.permute.xlu0 %2942
        %2944 = vrot.lane.b32.xlu0 %v2392, 96
        %v2945 = vpop.permute.xlu0 %2944
        %2946 = vrot.lane.b32.xlu0 %v2394, 96
        %v2947 = vpop.permute.xlu0 %2946
        %2948 = vrot.lane.b32.xlu0 %v2395, 96
        %v2949 = vpop.permute.xlu0 %2948
        %2950 = vrot.lane.b32.xlu0 %v2397, 96
        %v2951 = vpop.permute.xlu0 %2950
        %2952 = vrot.lane.b32.xlu0 %v2398, 96
        %v2953 = vpop.permute.xlu0 %2952
        %2954 = vrot.lane.b32.xlu0 %v2400, 96
        %v2955 = vpop.permute.xlu0 %2954
        %2956 = vrot.lane.b32.xlu0 %v2401, 96
        %v2957 = vpop.permute.xlu0 %2956
        %2958 = vrot.lane.b32.xlu0 %v2403, 96
        %v2959 = vpop.permute.xlu0 %2958
        %2960 = vrot.lane.b32.xlu0 %v2404, 96
        %v2961 = vpop.permute.xlu0 %2960
        %2962 = vrot.lane.b32.xlu0 %v2406, 96
        %v2963 = vpop.permute.xlu0 %2962
        %2964 = vrot.lane.b32.xlu0 %v2407, 96
        %v2965 = vpop.permute.xlu0 %2964
        %2998 = vrot.lane.b32.xlu0 %v2547, 32
        %v2999 = vpop.permute.xlu0 %2998
        %3000 = vrot.lane.b32.xlu0 %v2549, 32
        %v3001 = vpop.permute.xlu0 %3000
        %3002 = vrot.lane.b32.xlu0 %v2552, 32
        %v3003 = vpop.permute.xlu0 %3002
        %3004 = vrot.lane.b32.xlu0 %v2554, 32
        %v3005 = vpop.permute.xlu0 %3004
        %3006 = vrot.lane.b32.xlu0 %v2557, 32
        %v3007 = vpop.permute.xlu0 %3006
        %3008 = vrot.lane.b32.xlu0 %v2559, 32
        %v3009 = vpop.permute.xlu0 %3008
        %3010 = vrot.lane.b32.xlu0 %v2562, 32
        %v3011 = vpop.permute.xlu0 %3010
        %3012 = vrot.lane.b32.xlu0 %v2564, 32
        %v3013 = vpop.permute.xlu0 %3012
        %3014 = vrot.lane.b32.xlu0 %v2567, 32
        %v3015 = vpop.permute.xlu0 %3014
        %3016 = vrot.lane.b32.xlu0 %v2569, 32
        %v3017 = vpop.permute.xlu0 %3016
        %3018 = vrot.lane.b32.xlu0 %v2572, 32
        %v3019 = vpop.permute.xlu0 %3018
        %3020 = vrot.lane.b32.xlu0 %v2574, 32
        %v3021 = vpop.permute.xlu0 %3020
        %3022 = vrot.lane.b32.xlu0 %v2577, 32
        %v3023 = vpop.permute.xlu0 %3022
        %3024 = vrot.lane.b32.xlu0 %v2579, 32
        %v3025 = vpop.permute.xlu0 %3024
        %3026 = vrot.lane.b32.xlu0 %v2582, 32
        %v3027 = vpop.permute.xlu0 %3026
        %3028 = vrot.lane.b32.xlu0 %v2584, 32
        %v3029 = vpop.permute.xlu0 %3028
        %3030 = vrot.lane.b32.xlu0 %v2587, 32
        %v3031 = vpop.permute.xlu0 %3030
        %3032 = vrot.lane.b32.xlu0 %v2589, 32
        %v3033 = vpop.permute.xlu0 %3032
        %3034 = vrot.lane.b32.xlu0 %v2592, 32
        %v3035 = vpop.permute.xlu0 %3034
        %3036 = vrot.lane.b32.xlu0 %v2594, 32
        %v3037 = vpop.permute.xlu0 %3036
        %3038 = vrot.lane.b32.xlu0 %v2597, 32
        %v3039 = vpop.permute.xlu0 %3038
        %3040 = vrot.lane.b32.xlu0 %v2599, 32
        %v3041 = vpop.permute.xlu0 %3040
        %3042 = vrot.lane.b32.xlu0 %v2602, 32
        %v3043 = vpop.permute.xlu0 %3042
        %3044 = vrot.lane.b32.xlu0 %v2604, 32
        %v3045 = vpop.permute.xlu0 %3044
        %3046 = vrot.lane.b32.xlu0 %v2607, 32
        %v3047 = vpop.permute.xlu0 %3046
        %3048 = vrot.lane.b32.xlu0 %v2609, 32
        %v3049 = vpop.permute.xlu0 %3048
        %3050 = vrot.lane.b32.xlu0 %v2612, 32
        %v3051 = vpop.permute.xlu0 %3050
        %3052 = vrot.lane.b32.xlu0 %v2614, 32
        %v3053 = vpop.permute.xlu0 %3052
        %3054 = vrot.lane.b32.xlu0 %v2617, 32
        %v3055 = vpop.permute.xlu0 %3054
        %3056 = vrot.lane.b32.xlu0 %v2619, 32
        %v3057 = vpop.permute.xlu0 %3056
        %3058 = vrot.lane.b32.xlu0 %v2662, 32
        %v3059 = vpop.permute.xlu0 %3058
        %3060 = vrot.lane.b32.xlu0 %v2664, 32
        %v3061 = vpop.permute.xlu0 %3060
        %3094 = vrot.lane.b32.xlu0 %v2364, 64
        %v3095 = vpop.permute.xlu0 %3094
        %3096 = vrot.lane.b32.xlu0 %v2365, 64
        %v3097 = vpop.permute.xlu0 %3096
        %3098 = vrot.lane.b32.xlu0 %v2367, 64
        %v3099 = vpop.permute.xlu0 %3098
        %3100 = vrot.lane.b32.xlu0 %v2368, 64
        %v3101 = vpop.permute.xlu0 %3100
        %3102 = vrot.lane.b32.xlu0 %v2370, 64
        %v3103 = vpop.permute.xlu0 %3102
        %3104 = vrot.lane.b32.xlu0 %v2371, 64
        %v3105 = vpop.permute.xlu0 %3104
        %3106 = vrot.lane.b32.xlu0 %v2373, 64
        %v3107 = vpop.permute.xlu0 %3106
        %3108 = vrot.lane.b32.xlu0 %v2374, 64
        %v3109 = vpop.permute.xlu0 %3108
        %3110 = vrot.lane.b32.xlu0 %v2376, 64
        %v3111 = vpop.permute.xlu0 %3110
        %3112 = vrot.lane.b32.xlu0 %v2377, 64
        %v3113 = vpop.permute.xlu0 %3112
        %3114 = vrot.lane.b32.xlu0 %v2379, 64
        %v3115 = vpop.permute.xlu0 %3114
        %3116 = vrot.lane.b32.xlu0 %v2380, 64
        %v3117 = vpop.permute.xlu0 %3116
        %3118 = vrot.lane.b32.xlu0 %v2382, 64
        %v3119 = vpop.permute.xlu0 %3118
        %3120 = vrot.lane.b32.xlu0 %v2383, 64
        %v3121 = vpop.permute.xlu0 %3120
        %3122 = vrot.lane.b32.xlu0 %v2385, 64
        %v3123 = vpop.permute.xlu0 %3122
        %3124 = vrot.lane.b32.xlu0 %v2386, 64
        %v3125 = vpop.permute.xlu0 %3124
        %3126 = vrot.lane.b32.xlu0 %v2388, 64
        %v3127 = vpop.permute.xlu0 %3126
        %3128 = vrot.lane.b32.xlu0 %v2389, 64
        %v3129 = vpop.permute.xlu0 %3128
        %3130 = vrot.lane.b32.xlu0 %v2391, 64
        %v3131 = vpop.permute.xlu0 %3130
        %3132 = vrot.lane.b32.xlu0 %v2392, 64
        %v3133 = vpop.permute.xlu0 %3132
        %3134 = vrot.lane.b32.xlu0 %v2394, 64
        %v3135 = vpop.permute.xlu0 %3134
        %3136 = vrot.lane.b32.xlu0 %v2395, 64
        %v3137 = vpop.permute.xlu0 %3136
        %3138 = vrot.lane.b32.xlu0 %v2397, 64
        %v3139 = vpop.permute.xlu0 %3138
        %3140 = vrot.lane.b32.xlu0 %v2398, 64
        %v3141 = vpop.permute.xlu0 %3140
        %3142 = vrot.lane.b32.xlu0 %v2400, 64
        %v3143 = vpop.permute.xlu0 %3142
        %3144 = vrot.lane.b32.xlu0 %v2401, 64
        %v3145 = vpop.permute.xlu0 %3144
        %3146 = vrot.lane.b32.xlu0 %v2403, 64
        %v3147 = vpop.permute.xlu0 %3146
        %3148 = vrot.lane.b32.xlu0 %v2404, 64
        %v3149 = vpop.permute.xlu0 %3148
        %3150 = vrot.lane.b32.xlu0 %v2406, 64
        %v3151 = vpop.permute.xlu0 %3150
        %3152 = vrot.lane.b32.xlu0 %v2407, 64
        %v3153 = vpop.permute.xlu0 %3152
        %3154 = vrot.lane.b32.xlu0 %v2409, 64
        %v3155 = vpop.permute.xlu0 %3154
        %3156 = vrot.lane.b32.xlu0 %v2410, 64
        %v3157 = vpop.permute.xlu0 %3156
        %3190 = vrot.lane.b32.xlu0 %v2472, 96
        %v3191 = vpop.permute.xlu0 %3190
        %3192 = vrot.lane.b32.xlu0 %v2474, 96
        %v3193 = vpop.permute.xlu0 %3192
        %3194 = vrot.lane.b32.xlu0 %v2477, 96
        %v3195 = vpop.permute.xlu0 %3194
        %3196 = vrot.lane.b32.xlu0 %v2479, 96
        %v3197 = vpop.permute.xlu0 %3196
        %3198 = vrot.lane.b32.xlu0 %v2482, 96
        %v3199 = vpop.permute.xlu0 %3198
        %3200 = vrot.lane.b32.xlu0 %v2484, 96
        %v3201 = vpop.permute.xlu0 %3200
        %3202 = vrot.lane.b32.xlu0 %v2487, 96
        %v3203 = vpop.permute.xlu0 %3202
        %3204 = vrot.lane.b32.xlu0 %v2489, 96
        %v3205 = vpop.permute.xlu0 %3204
        %3206 = vrot.lane.b32.xlu0 %v2492, 96
        %v3207 = vpop.permute.xlu0 %3206
        %3208 = vrot.lane.b32.xlu0 %v2494, 96
        %v3209 = vpop.permute.xlu0 %3208
        %3210 = vrot.lane.b32.xlu0 %v2497, 96
        %v3211 = vpop.permute.xlu0 %3210
        %3212 = vrot.lane.b32.xlu0 %v2499, 96
        %v3213 = vpop.permute.xlu0 %3212
        %3214 = vrot.lane.b32.xlu0 %v2502, 96
        %v3215 = vpop.permute.xlu0 %3214
        %3216 = vrot.lane.b32.xlu0 %v2504, 96
        %v3217 = vpop.permute.xlu0 %3216
        %3218 = vrot.lane.b32.xlu0 %v2507, 96
        %v3219 = vpop.permute.xlu0 %3218
        %3220 = vrot.lane.b32.xlu0 %v2509, 96
        %v3221 = vpop.permute.xlu0 %3220
        %3222 = vrot.lane.b32.xlu0 %v2512, 96
        %v3223 = vpop.permute.xlu0 %3222
        %3224 = vrot.lane.b32.xlu0 %v2514, 96
        %v3225 = vpop.permute.xlu0 %3224
        %3226 = vrot.lane.b32.xlu0 %v2517, 96
        %v3227 = vpop.permute.xlu0 %3226
        %3228 = vrot.lane.b32.xlu0 %v2519, 96
        %v3229 = vpop.permute.xlu0 %3228
        %3230 = vrot.lane.b32.xlu0 %v2522, 96
        %v3231 = vpop.permute.xlu0 %3230
        %3232 = vrot.lane.b32.xlu0 %v2524, 96
        %v3233 = vpop.permute.xlu0 %3232
        %3234 = vrot.lane.b32.xlu0 %v2527, 96
        %v3235 = vpop.permute.xlu0 %3234
        %3236 = vrot.lane.b32.xlu0 %v2529, 96
        %v3237 = vpop.permute.xlu0 %3236
        %3238 = vrot.lane.b32.xlu0 %v2532, 96
        %v3239 = vpop.permute.xlu0 %3238
        %3240 = vrot.lane.b32.xlu0 %v2534, 96
        %v3241 = vpop.permute.xlu0 %3240
        %3242 = vrot.lane.b32.xlu0 %v2537, 96
        %v3243 = vpop.permute.xlu0 %3242
        %3244 = vrot.lane.b32.xlu0 %v2539, 96
        %v3245 = vpop.permute.xlu0 %3244
        %3246 = vrot.lane.b32.xlu0 %v2625, 96
        %v3247 = vpop.permute.xlu0 %3246
        %3248 = vrot.lane.b32.xlu0 %v2627, 96
        %v3249 = vpop.permute.xlu0 %3248
        %3250 = vrot.lane.b32.xlu0 %v2670, 96
        %v3251 = vpop.permute.xlu0 %3250
        %3252 = vrot.lane.b32.xlu0 %v2672, 96
        %v3253 = vpop.permute.xlu0 %3252
        %v3286 = vsel %vm1513, %v2358, %v2711
        %v3287 = vsel %vm1513, %v2359, %v2713
        %v3288 = vsel %vm1513, %v2361, %v2715
        %v3289 = vsel %vm1513, %v2362, %v2717
        %v3290 = vsel %vm1513, %v2364, %v2719
        %v3291 = vsel %vm1513, %v2365, %v2721
        %v3292 = vsel %vm1513, %v2367, %v2723
        %v3293 = vsel %vm1513, %v2368, %v2725
        %v3294 = vsel %vm1513, %v2370, %v2727
        %v3295 = vsel %vm1513, %v2371, %v2729
        %v3296 = vsel %vm1513, %v2373, %v2731
        %v3297 = vsel %vm1513, %v2374, %v2733
        %v3298 = vsel %vm1513, %v2376, %v2735
        %v3299 = vsel %vm1513, %v2377, %v2737
        %v3300 = vsel %vm1513, %v2379, %v2739
        %v3301 = vsel %vm1513, %v2380, %v2741
        %v3302 = vsel %vm1513, %v2382, %v2743
        %v3303 = vsel %vm1513, %v2383, %v2745
        %v3304 = vsel %vm1513, %v2385, %v2747
        %v3305 = vsel %vm1513, %v2386, %v2749
        %v3306 = vsel %vm1513, %v2388, %v2751
        %v3307 = vsel %vm1513, %v2389, %v2753
        %v3308 = vsel %vm1513, %v2391, %v2755
        %v3309 = vsel %vm1513, %v2392, %v2757
        %v3310 = vsel %vm1513, %v2394, %v2759
        %v3311 = vsel %vm1513, %v2395, %v2761
        %v3312 = vsel %vm1513, %v2397, %v2763
        %v3313 = vsel %vm1513, %v2398, %v2765
        %v3314 = vsel %vm1513, %v2400, %v2767
        %v3315 = vsel %vm1513, %v2401, %v2769
        %v3316 = vsel %vm1513, %v2403, %v2771
        %v3317 = vsel %vm1513, %v2404, %v2773
        %vm3318 = vcmask 523264
        %v3319 = vsel %vm3318, %v3286, %v2807
        %v3320 = vsel %vm3318, %v3287, %v2809
        %v3321 = vsel %vm3318, %v3288, %v2811
        %v3322 = vsel %vm3318, %v3289, %v2813
        %v3323 = vsel %vm3318, %v3290, %v2815
        %v3324 = vsel %vm3318, %v3291, %v2817
        %v3325 = vsel %vm3318, %v3292, %v2819
        %v3326 = vsel %vm3318, %v3293, %v2821
        %v3327 = vsel %vm3318, %v3294, %v2823
        %v3328 = vsel %vm3318, %v3295, %v2825
        %v3329 = vsel %vm3318, %v3296, %v2827
        %v3330 = vsel %vm3318, %v3297, %v2829
        %v3331 = vsel %vm3318, %v3298, %v2831
        %v3332 = vsel %vm3318, %v3299, %v2833
        %v3333 = vsel %vm3318, %v3300, %v2835
        %v3334 = vsel %vm3318, %v3301, %v2837
        %v3335 = vsel %vm3318, %v3302, %v2839
        %v3336 = vsel %vm3318, %v3303, %v2841
        %v3337 = vsel %vm3318, %v3304, %v2843
        %v3338 = vsel %vm3318, %v3305, %v2845
        %v3339 = vsel %vm3318, %v3306, %v2847
        %v3340 = vsel %vm3318, %v3307, %v2849
        %v3341 = vsel %vm3318, %v3308, %v2851
        %v3342 = vsel %vm3318, %v3309, %v2853
        %v3343 = vsel %vm3318, %v3310, %v2855
        %v3344 = vsel %vm3318, %v3311, %v2857
        %v3345 = vsel %vm3318, %v3312, %v2859
        %v3346 = vsel %vm3318, %v3313, %v2861
        %v3347 = vsel %vm3318, %v3314, %v2863
        %v3348 = vsel %vm3318, %v3315, %v2865
        %v3349 = vsel %vm3318, %v3316, %v2867
        %v3350 = vsel %vm3318, %v3317, %v2869
        %vm3351 = vcmask 785408
        %v3352 = vsel %vm3351, %v3319, %v2903
        %v3353 = vsel %vm3351, %v3320, %v2905
        %v3354 = vsel %vm3351, %v3321, %v2907
        %v3355 = vsel %vm3351, %v3322, %v2909
        %v3356 = vsel %vm3351, %v3323, %v2911
        %v3357 = vsel %vm3351, %v3324, %v2913
        %v3358 = vsel %vm3351, %v3325, %v2915
        %v3359 = vsel %vm3351, %v3326, %v2917
        %v3360 = vsel %vm3351, %v3327, %v2919
        %v3361 = vsel %vm3351, %v3328, %v2921
        %v3362 = vsel %vm3351, %v3329, %v2923
        %v3363 = vsel %vm3351, %v3330, %v2925
        %v3364 = vsel %vm3351, %v3331, %v2927
        %v3365 = vsel %vm3351, %v3332, %v2929
        %v3366 = vsel %vm3351, %v3333, %v2931
        %v3367 = vsel %vm3351, %v3334, %v2933
        %v3368 = vsel %vm3351, %v3335, %v2935
        %v3369 = vsel %vm3351, %v3336, %v2937
        %v3370 = vsel %vm3351, %v3337, %v2939
        %v3371 = vsel %vm3351, %v3338, %v2941
        %v3372 = vsel %vm3351, %v3339, %v2943
        %v3373 = vsel %vm3351, %v3340, %v2945
        %v3374 = vsel %vm3351, %v3341, %v2947
        %v3375 = vsel %vm3351, %v3342, %v2949
        %v3376 = vsel %vm3351, %v3343, %v2951
        %v3377 = vsel %vm3351, %v3344, %v2953
        %v3378 = vsel %vm3351, %v3345, %v2955
        %v3379 = vsel %vm3351, %v3346, %v2957
        %v3380 = vsel %vm3351, %v3347, %v2959
        %v3381 = vsel %vm3351, %v3348, %v2961
        %v3382 = vsel %vm3351, %v3349, %v2963
        %v3383 = vsel %vm3351, %v3350, %v2965
        %v3384 = vsel %vm1513, %v2467, %v2999
        %v3385 = vsel %vm1513, %v2469, %v3001
        %v3386 = vsel %vm1513, %v2472, %v3003
        %v3387 = vsel %vm1513, %v2474, %v3005
        %v3388 = vsel %vm1513, %v2477, %v3007
        %v3389 = vsel %vm1513, %v2479, %v3009
        %v3390 = vsel %vm1513, %v2482, %v3011
        %v3391 = vsel %vm1513, %v2484, %v3013
        %v3392 = vsel %vm1513, %v2487, %v3015
        %v3393 = vsel %vm1513, %v2489, %v3017
        %v3394 = vsel %vm1513, %v2492, %v3019
        %v3395 = vsel %vm1513, %v2494, %v3021
        %v3396 = vsel %vm1513, %v2497, %v3023
        %v3397 = vsel %vm1513, %v2499, %v3025
        %v3398 = vsel %vm1513, %v2502, %v3027
        %v3399 = vsel %vm1513, %v2504, %v3029
        %v3400 = vsel %vm1513, %v2507, %v3031
        %v3401 = vsel %vm1513, %v2509, %v3033
        %v3402 = vsel %vm1513, %v2512, %v3035
        %v3403 = vsel %vm1513, %v2514, %v3037
        %v3404 = vsel %vm1513, %v2517, %v3039
        %v3405 = vsel %vm1513, %v2519, %v3041
        %v3406 = vsel %vm1513, %v2522, %v3043
        %v3407 = vsel %vm1513, %v2524, %v3045
        %v3408 = vsel %vm1513, %v2527, %v3047
        %v3409 = vsel %vm1513, %v2529, %v3049
        %v3410 = vsel %vm1513, %v2532, %v3051
        %v3411 = vsel %vm1513, %v2534, %v3053
        %v3412 = vsel %vm1513, %v2537, %v3055
        %v3413 = vsel %vm1513, %v2539, %v3057
        %v3414 = vsel %vm1513, %v2625, %v3059
        %v3415 = vsel %vm1513, %v2627, %v3061
        %v3416 = vsel %vm3318, %v3384, %v3095
        %v3417 = vsel %vm3318, %v3385, %v3097
        %v3418 = vsel %vm3318, %v3386, %v3099
        %v3419 = vsel %vm3318, %v3387, %v3101
        %v3420 = vsel %vm3318, %v3388, %v3103
        %v3421 = vsel %vm3318, %v3389, %v3105
        %v3422 = vsel %vm3318, %v3390, %v3107
        %v3423 = vsel %vm3318, %v3391, %v3109
        %v3424 = vsel %vm3318, %v3392, %v3111
        %v3425 = vsel %vm3318, %v3393, %v3113
        %v3426 = vsel %vm3318, %v3394, %v3115
        %v3427 = vsel %vm3318, %v3395, %v3117
        %v3428 = vsel %vm3318, %v3396, %v3119
        %v3429 = vsel %vm3318, %v3397, %v3121
        %v3430 = vsel %vm3318, %v3398, %v3123
        %v3431 = vsel %vm3318, %v3399, %v3125
        %v3432 = vsel %vm3318, %v3400, %v3127
        %v3433 = vsel %vm3318, %v3401, %v3129
        %v3434 = vsel %vm3318, %v3402, %v3131
        %v3435 = vsel %vm3318, %v3403, %v3133
        %v3436 = vsel %vm3318, %v3404, %v3135
        %v3437 = vsel %vm3318, %v3405, %v3137
        %v3438 = vsel %vm3318, %v3406, %v3139
        %v3439 = vsel %vm3318, %v3407, %v3141
        %v3440 = vsel %vm3318, %v3408, %v3143
        %v3441 = vsel %vm3318, %v3409, %v3145
        %v3442 = vsel %vm3318, %v3410, %v3147
        %v3443 = vsel %vm3318, %v3411, %v3149
        %v3444 = vsel %vm3318, %v3412, %v3151
        %v3445 = vsel %vm3318, %v3413, %v3153
        %v3446 = vsel %vm3318, %v3414, %v3155
        %v3447 = vsel %vm3318, %v3415, %v3157
        %v3448 = vsel %vm3351, %v3416, %v3191
        %v3449 = vsel %vm3351, %v3417, %v3193
        %v3450 = vsel %vm3351, %v3418, %v3195
        %v3451 = vsel %vm3351, %v3419, %v3197
        %v3452 = vsel %vm3351, %v3420, %v3199
        %v3453 = vsel %vm3351, %v3421, %v3201
        %v3454 = vsel %vm3351, %v3422, %v3203
        %v3455 = vsel %vm3351, %v3423, %v3205
        %v3456 = vsel %vm3351, %v3424, %v3207
        %v3457 = vsel %vm3351, %v3425, %v3209
        %v3458 = vsel %vm3351, %v3426, %v3211
        %v3459 = vsel %vm3351, %v3427, %v3213
        %v3460 = vsel %vm3351, %v3428, %v3215
        %v3461 = vsel %vm3351, %v3429, %v3217
        %v3462 = vsel %vm3351, %v3430, %v3219
        %v3463 = vsel %vm3351, %v3431, %v3221
        %v3464 = vsel %vm3351, %v3432, %v3223
        %v3465 = vsel %vm3351, %v3433, %v3225
        %v3466 = vsel %vm3351, %v3434, %v3227
        %v3467 = vsel %vm3351, %v3435, %v3229
        %v3468 = vsel %vm3351, %v3436, %v3231
        %v3469 = vsel %vm3351, %v3437, %v3233
        %v3470 = vsel %vm3351, %v3438, %v3235
        %v3471 = vsel %vm3351, %v3439, %v3237
        %v3472 = vsel %vm3351, %v3440, %v3239
        %v3473 = vsel %vm3351, %v3441, %v3241
        %v3474 = vsel %vm3351, %v3442, %v3243
        %v3475 = vsel %vm3351, %v3443, %v3245
        %v3476 = vsel %vm3351, %v3444, %v3247
        %v3477 = vsel %vm3351, %v3445, %v3249
        %v3478 = vsel %vm3351, %v3446, %v3251
        %v3479 = vsel %vm3351, %v3447, %v3253
        %v3480 = vpack.c.bf16 %v3353, %v3352
        %v3481 = vpack.c.bf16 %v3449, %v3448
        %v3482 = vpack.c.bf16 %v2554, %v2552
        %v3483 = vpack.c.bf16 %v3355, %v3354
        %v3484 = vpack.c.bf16 %v3451, %v3450
        %v3485 = vpack.c.bf16 %v2559, %v2557
        %v3486 = vpack.c.bf16 %v3357, %v3356
        %v3487 = vpack.c.bf16 %v3453, %v3452
        %v3488 = vpack.c.bf16 %v2564, %v2562
        %v3489 = vpack.c.bf16 %v3359, %v3358
        %v3490 = vpack.c.bf16 %v3455, %v3454
        %v3491 = vpack.c.bf16 %v2569, %v2567
        %v3492 = vpack.c.bf16 %v3361, %v3360
        %v3493 = vpack.c.bf16 %v3457, %v3456
        %v3494 = vpack.c.bf16 %v2574, %v2572
        %v3495 = vpack.c.bf16 %v3363, %v3362
        %v3496 = vpack.c.bf16 %v3459, %v3458
        %v3497 = vpack.c.bf16 %v2579, %v2577
        %v3498 = vpack.c.bf16 %v3365, %v3364
        %v3499 = vpack.c.bf16 %v3461, %v3460
        %v3500 = vpack.c.bf16 %v2584, %v2582
        %v3501 = vpack.c.bf16 %v3367, %v3366
        %v3502 = vpack.c.bf16 %v3463, %v3462
        %v3503 = vpack.c.bf16 %v2589, %v2587
        %v3504 = vpack.c.bf16 %v3369, %v3368
        %v3505 = vpack.c.bf16 %v3465, %v3464
        %v3506 = vpack.c.bf16 %v2594, %v2592
        %v3507 = vpack.c.bf16 %v3371, %v3370
        %v3508 = vpack.c.bf16 %v3467, %v3466
        %v3509 = vpack.c.bf16 %v2599, %v2597
        %v3510 = vpack.c.bf16 %v3373, %v3372
        %v3511 = vpack.c.bf16 %v3469, %v3468
        %v3512 = vpack.c.bf16 %v2604, %v2602
        %v3513 = vpack.c.bf16 %v3375, %v3374
        %v3514 = vpack.c.bf16 %v3471, %v3470
        %v3515 = vpack.c.bf16 %v2609, %v2607
        %v3516 = vpack.c.bf16 %v3377, %v3376
        %v3517 = vpack.c.bf16 %v3473, %v3472
        %v3518 = vpack.c.bf16 %v2614, %v2612
        %v3519 = vpack.c.bf16 %v3379, %v3378
        %v3520 = vpack.c.bf16 %v3475, %v3474
        %v3521 = vpack.c.bf16 %v2619, %v2617
        %v3522 = vpack.c.bf16 %v3381, %v3380
        %v3523 = vpack.c.bf16 %v3477, %v3476
        %v3524 = vpack.c.bf16 %v2664, %v2662
        %v3525 = vpack.c.bf16 %v3383, %v3382
        %v3526 = vpack.c.bf16 %v3479, %v3478
        %v3527 = vpack.c.bf16 %v2677, %v2675
        %v3528 = vld [vmem:[%s3] sm:$0xf]
        %v3529 = vld [vmem:[%s3 + $0x4] sm:$0xf]
        %v3530 = vld [vmem:[%s3 + $0x8] sm:$0xf]
        %v3531 = vld [vmem:[%s3 + $0xc] sm:$0xf]
        %v3532 = vld [vmem:[%s3 + $0x10] sm:$0xf]
        %v3533 = vld [vmem:[%s3 + $0x14] sm:$0xf]
        %v3534 = vld [vmem:[%s3 + $0x18] sm:$0xf]
        %v3535 = vld [vmem:[%s3 + $0x1c] sm:$0xf]
        %v3536 = vld [vmem:[%s3 + $0x20] sm:$0xf]
        %v3537 = vld [vmem:[%s3 + $0x24] sm:$0xf]
        %v3538 = vld [vmem:[%s3 + $0x28] sm:$0xf]
        %v3539 = vld [vmem:[%s3 + $0x2c] sm:$0xf]
        %v3540 = vld [vmem:[%s3 + $0x30] sm:$0xf]
        %v3541 = vld [vmem:[%s3 + $0x34] sm:$0xf]
        %v3542 = vld [vmem:[%s3 + $0x38] sm:$0xf]
        %v3543 = vld [vmem:[%s3 + $0x3c] sm:$0xf]
        %v3544 = vld [vmem:[%s3 + $0x40] sm:$0xf]
        %v3545 = vld [vmem:[%s3 + $0x44] sm:$0xf]
        %v3546 = vld [vmem:[%s3 + $0x48] sm:$0xf]
        %v3547 = vld [vmem:[%s3 + $0x4c] sm:$0xf]
        %v3548 = vld [vmem:[%s3 + $0x50] sm:$0xf]
        %v3549 = vld [vmem:[%s3 + $0x54] sm:$0xf]
        %v3550 = vld [vmem:[%s3 + $0x58] sm:$0xf]
        %v3551 = vld [vmem:[%s3 + $0x5c] sm:$0xf]
        %v3552 = vld [vmem:[%s3 + $0x60] sm:$0xf]
        %v3553 = vld [vmem:[%s3 + $0x64] sm:$0xf]
        %v3554 = vld [vmem:[%s3 + $0x68] sm:$0xf]
        %v3555 = vld [vmem:[%s3 + $0x6c] sm:$0xf]
        %v3556 = vld [vmem:[%s3 + $0x70] sm:$0xf]
        %v3557 = vld [vmem:[%s3 + $0x74] sm:$0xf]
        %v3558 = vld [vmem:[%s3 + $0x78] sm:$0xf]
        %v3559 = vld [vmem:[%s3 + $0x7c] sm:$0xf]
        %v3560 = vld [vmem:[%s3 + $0x80] sm:$0xf]
        %v3561 = vld [vmem:[%s3 + $0x84] sm:$0xf]
        %v3562 = vld [vmem:[%s3 + $0x88] sm:$0xf]
        %v3563 = vld [vmem:[%s3 + $0x8c] sm:$0xf]
        %v3600 = vunpack.c.l.b16 %v3528
        %v3601 = vunpack.c.l.b16 %v3529
        %v3602 = vunpack.c.l.b16 %v3530
        %v3603 = vunpack.c.l.b16 %v3531
        %v3604 = vunpack.c.l.b16 %v3532
        %v3605 = vunpack.c.l.b16 %v3533
        %v3606 = vunpack.c.l.b16 %v3534
        %v3607 = vunpack.c.l.b16 %v3535
        %v3608 = vunpack.c.l.b16 %v3536
        %v3609 = vunpack.c.l.b16 %v3537
        %v3610 = vunpack.c.l.b16 %v3538
        %v3611 = vunpack.c.l.b16 %v3539
        %v3612 = vunpack.c.l.b16 %v3540
        %v3613 = vunpack.c.l.b16 %v3541
        %v3614 = vunpack.c.l.b16 %v3542
        %v3615 = vunpack.c.l.b16 %v3543
        %v3616 = vunpack.c.l.b16 %v3544
        %v3617 = vunpack.c.l.b16 %v3545
        %v3618 = vunpack.c.l.b16 %v3546
        %v3619 = vunpack.c.l.b16 %v3547
        %v3620 = vunpack.c.l.b16 %v3548
        %v3621 = vunpack.c.l.b16 %v3549
        %v3622 = vunpack.c.l.b16 %v3550
        %v3623 = vunpack.c.l.b16 %v3551
        %v3624 = vunpack.c.l.b16 %v3552
        %v3625 = vunpack.c.l.b16 %v3553
        %v3626 = vunpack.c.l.b16 %v3554
        %v3627 = vunpack.c.l.b16 %v3555
        %v3628 = vunpack.c.l.b16 %v3556
        %v3629 = vunpack.c.l.b16 %v3557
        %v3630 = vunpack.c.l.b16 %v3558
        %v3631 = vunpack.c.l.b16 %v3559
        %v3632 = vunpack.c.l.b16 %v3560
        %v3633 = vunpack.c.l.b16 %v3561
        %v3634 = vunpack.c.l.b16 %v3562
        %v3635 = vunpack.c.l.b16 %v3563
        %v3636 = vpack.c.b16 %v3601, %v3600
        %v3637 = vpack.c.b16 %v3603, %v3602
        %v3638 = vpack.c.b16 %v3605, %v3604
        %v3639 = vpack.c.b16 %v3607, %v3606
        %v3640 = vpack.c.b16 %v3609, %v3608
        %v3641 = vpack.c.b16 %v3611, %v3610
        %v3642 = vpack.c.b16 %v3613, %v3612
        %v3643 = vpack.c.b16 %v3615, %v3614
        %v3644 = vpack.c.b16 %v3617, %v3616
        %v3645 = vpack.c.b16 %v3619, %v3618
        %v3646 = vpack.c.b16 %v3621, %v3620
        %v3647 = vpack.c.b16 %v3623, %v3622
        %v3648 = vpack.c.b16 %v3625, %v3624
        %v3649 = vpack.c.b16 %v3627, %v3626
        %v3650 = vpack.c.b16 %v3629, %v3628
        %v3651 = vpack.c.b16 %v3631, %v3630
        %v3652 = vpack.c.b16 %v3633, %v3632
        %v3653 = vpack.c.b16 %v3635, %v3634
        %v3673 = vsel %vm1513, %v3482, 0
        %v3676 = vsel %vm1513, %v3485, 0
        %v3679 = vsel %vm1513, %v3488, 0
        %v3682 = vsel %vm1513, %v3491, 0
        %v3685 = vsel %vm1513, %v3494, 0
        %v3688 = vsel %vm1513, %v3497, 0
        %v3691 = vsel %vm1513, %v3500, 0
        %v3694 = vsel %vm1513, %v3503, 0
        %v3697 = vsel %vm1513, %v3506, 0
        %v3700 = vsel %vm1513, %v3509, 0
        %v3703 = vsel %vm1513, %v3512, 0
        %v3706 = vsel %vm1513, %v3515, 0
        %v3709 = vsel %vm1513, %v3518, 0
        %v3712 = vsel %vm1513, %v3521, 0
        %v3715 = vsel %vm1513, %v3524, 0
        %v3718 = vsel %vm1513, %v3527, 0
        %3720 = vmatprep.subr.bf16.mxu0 0
        %3721 = vmatpush1.bf16.msra.mxu0 %v3643
        %3722 = vmatprep.subr.bf16.mxu0 0
        %3723 = vmatpush1.bf16.msra.mxu0 %v3642
        %3724 = vmatprep.subr.bf16.mxu0 0
        %3725 = vmatpush1.bf16.msra.mxu0 %v3641
        %3726 = vmatprep.subr.bf16.mxu0 0
        %3727 = vmatpush1.bf16.msra.mxu0 %v3640
        %3728 = vmatprep.subr.bf16.mxu0 0
        %3729 = vmatpush1.bf16.msra.mxu0 %v3639
        %3730 = vmatprep.subr.bf16.mxu0 0
        %3731 = vmatpush1.bf16.msra.mxu0 %v3638
        %3732 = vmatprep.subr.bf16.mxu0 0
        %3733 = vmatpush1.bf16.msra.mxu0 %v3637
        %3734 = vmatprep.subr.bf16.mxu0 0
        %3735 = vmatpush1.bf16.msra.mxu0 %v3636
        %3736 = vmatprep.subr.bf16.mxu0 0
        %3737 = vmatpush2.bf16.msra.mxu0 %v3651
        %3738 = vmatprep.subr.bf16.mxu0 0
        %3739 = vmatpush2.bf16.msra.mxu0 %v3650
        %3740 = vmatprep.subr.bf16.mxu0 0
        %3741 = vmatpush2.bf16.msra.mxu0 %v3649
        %3742 = vmatprep.subr.bf16.mxu0 0
        %3743 = vmatpush2.bf16.msra.mxu0 %v3648
        %3744 = vmatprep.subr.bf16.mxu0 0
        %3745 = vmatpush2.bf16.msra.mxu0 %v3647
        %3746 = vmatprep.subr.bf16.mxu0 0
        %3747 = vmatpush2.bf16.msra.mxu0 %v3646
        %3748 = vmatprep.subr.bf16.mxu0 0
        %3749 = vmatpush2.bf16.msra.mxu0 %v3645
        %3750 = vmatprep.subr.bf16.mxu0 0
        %3751 = vmatpush2.bf16.msra.mxu0 %v3644
        %3752 = vmatprep.mubr.bf16.mxu0 %v3481
        %3753 = vmatmul.mubr.bf16.gmra.mxu0 %v3480
        %v3754 = vpop.f32.mrf.mxu0
        %v3755 = vadd.f32 0.0, %v3754
        %v3756 = vpop.f32.mrf.mxu0
        %v3757 = vpop.f32.mrf.mxu0
        %v3758 = vadd.f32 0.0, %v3757
        %v3759 = vpop.f32.mrf.mxu0
        %3760 = vmatprep.mubr.bf16.mxu0 %v3484
        %3761 = vmatmul.mubr.bf16.gmra.mxu0 %v3483
        %v3762 = vpop.f32.mrf.mxu0
        %v3763 = vadd.f32 0.0, %v3762
        %v3764 = vpop.f32.mrf.mxu0
        %v3765 = vpop.f32.mrf.mxu0
        %v3766 = vadd.f32 0.0, %v3765
        %v3767 = vpop.f32.mrf.mxu0
        %3768 = vmatprep.mubr.bf16.mxu0 %v3487
        %3769 = vmatmul.mubr.bf16.gmra.mxu0 %v3486
        %v3770 = vpop.f32.mrf.mxu0
        %v3771 = vadd.f32 0.0, %v3770
        %v3772 = vpop.f32.mrf.mxu0
        %v3773 = vpop.f32.mrf.mxu0
        %v3774 = vadd.f32 0.0, %v3773
        %v3775 = vpop.f32.mrf.mxu0
        %3776 = vmatprep.mubr.bf16.mxu0 %v3490
        %3777 = vmatmul.mubr.bf16.gmra.mxu0 %v3489
        %v3778 = vpop.f32.mrf.mxu0
        %v3779 = vadd.f32 0.0, %v3778
        %v3780 = vpop.f32.mrf.mxu0
        %v3781 = vpop.f32.mrf.mxu0
        %v3782 = vadd.f32 0.0, %v3781
        %v3783 = vpop.f32.mrf.mxu0
        %3784 = vmatprep.mubr.bf16.mxu0 %v3493
        %3785 = vmatmul.mubr.bf16.gmra.mxu0 %v3492
        %v3786 = vpop.f32.mrf.mxu0
        %v3787 = vadd.f32 0.0, %v3786
        %v3788 = vpop.f32.mrf.mxu0
        %v3789 = vpop.f32.mrf.mxu0
        %v3790 = vadd.f32 0.0, %v3789
        %v3791 = vpop.f32.mrf.mxu0
        %3792 = vmatprep.mubr.bf16.mxu0 %v3496
        %3793 = vmatmul.mubr.bf16.gmra.mxu0 %v3495
        %v3794 = vpop.f32.mrf.mxu0
        %v3795 = vadd.f32 0.0, %v3794
        %v3796 = vpop.f32.mrf.mxu0
        %v3797 = vpop.f32.mrf.mxu0
        %v3798 = vadd.f32 0.0, %v3797
        %v3799 = vpop.f32.mrf.mxu0
        %3800 = vmatprep.mubr.bf16.mxu0 %v3499
        %3801 = vmatmul.mubr.bf16.gmra.mxu0 %v3498
        %v3802 = vpop.f32.mrf.mxu0
        %v3803 = vadd.f32 0.0, %v3802
        %v3804 = vpop.f32.mrf.mxu0
        %v3805 = vpop.f32.mrf.mxu0
        %v3806 = vadd.f32 0.0, %v3805
        %v3807 = vpop.f32.mrf.mxu0
        %3808 = vmatprep.mubr.bf16.mxu0 %v3502
        %3809 = vmatmul.mubr.bf16.gmra.mxu0 %v3501
        %v3810 = vpop.f32.mrf.mxu0
        %v3811 = vadd.f32 0.0, %v3810
        %v3812 = vpop.f32.mrf.mxu0
        %v3813 = vpop.f32.mrf.mxu0
        %v3814 = vadd.f32 0.0, %v3813
        %v3815 = vpop.f32.mrf.mxu0
        %3816 = vmatprep.mubr.bf16.mxu0 %v3505
        %3817 = vmatmul.mubr.bf16.gmra.mxu0 %v3504
        %v3818 = vpop.f32.mrf.mxu0
        %v3819 = vadd.f32 0.0, %v3818
        %v3820 = vpop.f32.mrf.mxu0
        %v3821 = vpop.f32.mrf.mxu0
        %v3822 = vadd.f32 0.0, %v3821
        %v3823 = vpop.f32.mrf.mxu0
        %3824 = vmatprep.mubr.bf16.mxu0 %v3508
        %3825 = vmatmul.mubr.bf16.gmra.mxu0 %v3507
        %v3826 = vpop.f32.mrf.mxu0
        %v3827 = vadd.f32 0.0, %v3826
        %v3828 = vpop.f32.mrf.mxu0
        %v3829 = vpop.f32.mrf.mxu0
        %v3830 = vadd.f32 0.0, %v3829
        %v3831 = vpop.f32.mrf.mxu0
        %3832 = vmatprep.mubr.bf16.mxu0 %v3511
        %3833 = vmatmul.mubr.bf16.gmra.mxu0 %v3510
        %v3834 = vpop.f32.mrf.mxu0
        %v3835 = vadd.f32 0.0, %v3834
        %v3836 = vpop.f32.mrf.mxu0
        %v3837 = vpop.f32.mrf.mxu0
        %v3838 = vadd.f32 0.0, %v3837
        %v3839 = vpop.f32.mrf.mxu0
        %3840 = vmatprep.mubr.bf16.mxu0 %v3514
        %3841 = vmatmul.mubr.bf16.gmra.mxu0 %v3513
        %v3842 = vpop.f32.mrf.mxu0
        %v3843 = vadd.f32 0.0, %v3842
        %v3844 = vpop.f32.mrf.mxu0
        %v3845 = vpop.f32.mrf.mxu0
        %v3846 = vadd.f32 0.0, %v3845
        %v3847 = vpop.f32.mrf.mxu0
        %3848 = vmatprep.mubr.bf16.mxu0 %v3517
        %3849 = vmatmul.mubr.bf16.gmra.mxu0 %v3516
        %v3850 = vpop.f32.mrf.mxu0
        %v3851 = vadd.f32 0.0, %v3850
        %v3852 = vpop.f32.mrf.mxu0
        %v3853 = vpop.f32.mrf.mxu0
        %v3854 = vadd.f32 0.0, %v3853
        %v3855 = vpop.f32.mrf.mxu0
        %3856 = vmatprep.mubr.bf16.mxu0 %v3520
        %3857 = vmatmul.mubr.bf16.gmra.mxu0 %v3519
        %v3858 = vpop.f32.mrf.mxu0
        %v3859 = vadd.f32 0.0, %v3858
        %v3860 = vpop.f32.mrf.mxu0
        %v3861 = vpop.f32.mrf.mxu0
        %v3862 = vadd.f32 0.0, %v3861
        %v3863 = vpop.f32.mrf.mxu0
        %3864 = vmatprep.mubr.bf16.mxu0 %v3523
        %3865 = vmatmul.mubr.bf16.gmra.mxu0 %v3522
        %v3866 = vpop.f32.mrf.mxu0
        %v3867 = vadd.f32 0.0, %v3866
        %v3868 = vpop.f32.mrf.mxu0
        %v3869 = vpop.f32.mrf.mxu0
        %v3870 = vadd.f32 0.0, %v3869
        %v3871 = vpop.f32.mrf.mxu0
        %3872 = vmatprep.mubr.bf16.mxu0 %v3526
        %3873 = vmatmul.mubr.bf16.gmra.mxu0 %v3525
        %v3874 = vpop.f32.mrf.mxu0
        %v3875 = vadd.f32 0.0, %v3874
        %v3876 = vpop.f32.mrf.mxu0
        %v3877 = vpop.f32.mrf.mxu0
        %v3878 = vadd.f32 0.0, %v3877
        %v3879 = vpop.f32.mrf.mxu0
        %3880 = vdwg.mxu0
        %3881 = vmatprep.subr.bf16.mxu0 0
        %3882 = vmatpush1.bf16.msra.mxu0 0
        %3883 = vmatprep.subr.bf16.mxu0 0
        %3884 = vmatpush1.bf16.msra.mxu0 0
        %3885 = vmatprep.subr.bf16.mxu0 0
        %3886 = vmatpush1.bf16.msra.mxu0 0
        %3887 = vmatprep.subr.bf16.mxu0 0
        %3888 = vmatpush1.bf16.msra.mxu0 0
        %3889 = vmatprep.subr.bf16.mxu0 0
        %3890 = vmatpush1.bf16.msra.mxu0 0
        %3891 = vmatprep.subr.bf16.mxu0 0
        %3892 = vmatpush1.bf16.msra.mxu0 0
        %3893 = vmatprep.subr.bf16.mxu0 0
        %3894 = vmatpush1.bf16.msra.mxu0 %v3653
        %3895 = vmatprep.subr.bf16.mxu0 0
        %3896 = vmatpush1.bf16.msra.mxu0 %v3652
        %3897 = vmatprep.subr.bf16.mxu0 0
        %3898 = vmatpush2.bf16.msra.mxu0 0
        %3899 = vmatprep.subr.bf16.mxu0 0
        %3900 = vmatpush2.bf16.msra.mxu0 0
        %3901 = vmatprep.subr.bf16.mxu0 0
        %3902 = vmatpush2.bf16.msra.mxu0 0
        %3903 = vmatprep.subr.bf16.mxu0 0
        %3904 = vmatpush2.bf16.msra.mxu0 0
        %3905 = vmatprep.subr.bf16.mxu0 0
        %3906 = vmatpush2.bf16.msra.mxu0 0
        %3907 = vmatprep.subr.bf16.mxu0 0
        %3908 = vmatpush2.bf16.msra.mxu0 0
        %3909 = vmatprep.subr.bf16.mxu0 0
        %3910 = vmatpush2.bf16.msra.mxu0 0
        %3911 = vmatprep.subr.bf16.mxu0 0
        %3912 = vmatpush2.bf16.msra.mxu0 0
        %3913 = vmatprep.mubr.bf16.mxu0 0
        %3914 = vmatmul.mubr.bf16.gmra.mxu0 %v3673
        %v3915 = vpop.f32.mrf.mxu0
        %v3916 = vadd.f32 %v3755, %v3915
        %v3917 = vpop.f32.mrf.mxu0
        %v3918 = vpop.f32.mrf.mxu0
        %v3919 = vadd.f32 %v3758, %v3918
        %v3920 = vpop.f32.mrf.mxu0
        %3921 = vmatprep.mubr.bf16.mxu0 0
        %3922 = vmatmul.mubr.bf16.gmra.mxu0 %v3676
        %v3923 = vpop.f32.mrf.mxu0
        %v3924 = vadd.f32 %v3763, %v3923
        %v3925 = vpop.f32.mrf.mxu0
        %v3926 = vpop.f32.mrf.mxu0
        %v3927 = vadd.f32 %v3766, %v3926
        %v3928 = vpop.f32.mrf.mxu0
        %3929 = vmatprep.mubr.bf16.mxu0 0
        %3930 = vmatmul.mubr.bf16.gmra.mxu0 %v3679
        %v3931 = vpop.f32.mrf.mxu0
        %v3932 = vadd.f32 %v3771, %v3931
        %v3933 = vpop.f32.mrf.mxu0
        %v3934 = vpop.f32.mrf.mxu0
        %v3935 = vadd.f32 %v3774, %v3934
        %v3936 = vpop.f32.mrf.mxu0
        %3937 = vmatprep.mubr.bf16.mxu0 0
        %3938 = vmatmul.mubr.bf16.gmra.mxu0 %v3682
        %v3939 = vpop.f32.mrf.mxu0
        %v3940 = vadd.f32 %v3779, %v3939
        %v3941 = vpop.f32.mrf.mxu0
        %v3942 = vpop.f32.mrf.mxu0
        %v3943 = vadd.f32 %v3782, %v3942
        %v3944 = vpop.f32.mrf.mxu0
        %3945 = vmatprep.mubr.bf16.mxu0 0
        %3946 = vmatmul.mubr.bf16.gmra.mxu0 %v3685
        %v3947 = vpop.f32.mrf.mxu0
        %v3948 = vadd.f32 %v3787, %v3947
        %v3949 = vpop.f32.mrf.mxu0
        %v3950 = vpop.f32.mrf.mxu0
        %v3951 = vadd.f32 %v3790, %v3950
        %v3952 = vpop.f32.mrf.mxu0
        %3953 = vmatprep.mubr.bf16.mxu0 0
        %3954 = vmatmul.mubr.bf16.gmra.mxu0 %v3688
        %v3955 = vpop.f32.mrf.mxu0
        %v3956 = vadd.f32 %v3795, %v3955
        %v3957 = vpop.f32.mrf.mxu0
        %v3958 = vpop.f32.mrf.mxu0
        %v3959 = vadd.f32 %v3798, %v3958
        %v3960 = vpop.f32.mrf.mxu0
        %3961 = vmatprep.mubr.bf16.mxu0 0
        %3962 = vmatmul.mubr.bf16.gmra.mxu0 %v3691
        %v3963 = vpop.f32.mrf.mxu0
        %v3964 = vadd.f32 %v3803, %v3963
        %v3965 = vpop.f32.mrf.mxu0
        %v3966 = vpop.f32.mrf.mxu0
        %v3967 = vadd.f32 %v3806, %v3966
        %v3968 = vpop.f32.mrf.mxu0
        %3969 = vmatprep.mubr.bf16.mxu0 0
        %3970 = vmatmul.mubr.bf16.gmra.mxu0 %v3694
        %v3971 = vpop.f32.mrf.mxu0
        %v3972 = vadd.f32 %v3811, %v3971
        %v3973 = vpop.f32.mrf.mxu0
        %v3974 = vpop.f32.mrf.mxu0
        %v3975 = vadd.f32 %v3814, %v3974
        %v3976 = vpop.f32.mrf.mxu0
        %3977 = vmatprep.mubr.bf16.mxu0 0
        %3978 = vmatmul.mubr.bf16.gmra.mxu0 %v3697
        %v3979 = vpop.f32.mrf.mxu0
        %v3980 = vadd.f32 %v3819, %v3979
        %v3981 = vpop.f32.mrf.mxu0
        %v3982 = vpop.f32.mrf.mxu0
        %v3983 = vadd.f32 %v3822, %v3982
        %v3984 = vpop.f32.mrf.mxu0
        %3985 = vmatprep.mubr.bf16.mxu0 0
        %3986 = vmatmul.mubr.bf16.gmra.mxu0 %v3700
        %v3987 = vpop.f32.mrf.mxu0
        %v3988 = vadd.f32 %v3827, %v3987
        %v3989 = vpop.f32.mrf.mxu0
        %v3990 = vpop.f32.mrf.mxu0
        %v3991 = vadd.f32 %v3830, %v3990
        %v3992 = vpop.f32.mrf.mxu0
        %3993 = vmatprep.mubr.bf16.mxu0 0
        %3994 = vmatmul.mubr.bf16.gmra.mxu0 %v3703
        %v3995 = vpop.f32.mrf.mxu0
        %v3996 = vadd.f32 %v3835, %v3995
        %v3997 = vpop.f32.mrf.mxu0
        %v3998 = vpop.f32.mrf.mxu0
        %v3999 = vadd.f32 %v3838, %v3998
        %v4000 = vpop.f32.mrf.mxu0
        %4001 = vmatprep.mubr.bf16.mxu0 0
        %4002 = vmatmul.mubr.bf16.gmra.mxu0 %v3706
        %v4003 = vpop.f32.mrf.mxu0
        %v4004 = vadd.f32 %v3843, %v4003
        %v4005 = vpop.f32.mrf.mxu0
        %v4006 = vpop.f32.mrf.mxu0
        %v4007 = vadd.f32 %v3846, %v4006
        %v4008 = vpop.f32.mrf.mxu0
        %4009 = vmatprep.mubr.bf16.mxu0 0
        %4010 = vmatmul.mubr.bf16.gmra.mxu0 %v3709
        %v4011 = vpop.f32.mrf.mxu0
        %v4012 = vadd.f32 %v3851, %v4011
        %v4013 = vpop.f32.mrf.mxu0
        %v4014 = vpop.f32.mrf.mxu0
        %v4015 = vadd.f32 %v3854, %v4014
        %v4016 = vpop.f32.mrf.mxu0
        %4017 = vmatprep.mubr.bf16.mxu0 0
        %4018 = vmatmul.mubr.bf16.gmra.mxu0 %v3712
        %v4019 = vpop.f32.mrf.mxu0
        %v4020 = vadd.f32 %v3859, %v4019
        %v4021 = vpop.f32.mrf.mxu0
        %v4022 = vpop.f32.mrf.mxu0
        %v4023 = vadd.f32 %v3862, %v4022
        %v4024 = vpop.f32.mrf.mxu0
        %4025 = vmatprep.mubr.bf16.mxu0 0
        %4026 = vmatmul.mubr.bf16.gmra.mxu0 %v3715
        %v4027 = vpop.f32.mrf.mxu0
        %v4028 = vadd.f32 %v3867, %v4027
        %v4029 = vpop.f32.mrf.mxu0
        %v4030 = vpop.f32.mrf.mxu0
        %v4031 = vadd.f32 %v3870, %v4030
        %v4032 = vpop.f32.mrf.mxu0
        %4033 = vmatprep.mubr.bf16.mxu0 0
        %4034 = vmatmul.mubr.bf16.gmra.mxu0 %v3718
        %v4035 = vpop.f32.mrf.mxu0
        %v4036 = vadd.f32 %v3875, %v4035
        %v4037 = vpop.f32.mrf.mxu0
        %v4038 = vpop.f32.mrf.mxu0
        %v4039 = vadd.f32 %v3878, %v4038
        %v4040 = vpop.f32.mrf.mxu0
        %4041 = vdwg.mxu0
        %v4042 = vld [vmem:[%s4] sm:$0x1]
        %v4043 = vld [vmem:[%s4 + $0x1] sm:$0x1]
        %v4044 = vld [vmem:[%s4 + $0x2] sm:$0x1]
        %v4045 = vsel %vm1513, %v3916, 0.0
        %v4046 = vsel %vm1513, %v3919, 0.0
        %v4047 = vadd.f32 %v4045, %v4046
        %v4048 = vsel %vm1513, %v3924, 0.0
        %v4049 = vadd.f32 %v4047, %v4048
        %v4050 = vsel %vm1513, %v3927, 0.0
        %v4051 = vadd.f32 %v4049, %v4050
        %v4052 = vsel %vm1513, %v3932, 0.0
        %v4053 = vadd.f32 %v4051, %v4052
        %v4054 = vsel %vm1513, %v3935, 0.0
        %v4055 = vadd.f32 %v4053, %v4054
        %v4056 = vsel %vm1513, %v3940, 0.0
        %v4057 = vadd.f32 %v4055, %v4056
        %v4058 = vsel %vm1513, %v3943, 0.0
        %v4059 = vadd.f32 %v4057, %v4058
        %v4060 = vsel %vm1513, %v3948, 0.0
        %v4061 = vadd.f32 %v4059, %v4060
        %v4062 = vsel %vm1513, %v3951, 0.0
        %v4063 = vadd.f32 %v4061, %v4062
        %v4064 = vsel %vm1513, %v3956, 0.0
        %v4065 = vadd.f32 %v4063, %v4064
        %v4066 = vsel %vm1513, %v3959, 0.0
        %v4067 = vadd.f32 %v4065, %v4066
        %v4068 = vsel %vm1513, %v3964, 0.0
        %v4069 = vadd.f32 %v4067, %v4068
        %v4070 = vsel %vm1513, %v3967, 0.0
        %v4071 = vadd.f32 %v4069, %v4070
        %v4072 = vsel %vm1513, %v3972, 0.0
        %v4073 = vadd.f32 %v4071, %v4072
        %v4074 = vsel %vm1513, %v3975, 0.0
        %v4075 = vadd.f32 %v4073, %v4074
        %v4076 = vsel %vm1513, %v3980, 0.0
        %v4077 = vadd.f32 %v4075, %v4076
        %v4078 = vsel %vm1513, %v3983, 0.0
        %v4079 = vadd.f32 %v4077, %v4078
        %v4080 = vsel %vm1513, %v3988, 0.0
        %v4081 = vadd.f32 %v4079, %v4080
        %v4082 = vsel %vm1513, %v3991, 0.0
        %v4083 = vadd.f32 %v4081, %v4082
        %v4084 = vsel %vm1513, %v3996, 0.0
        %v4085 = vadd.f32 %v4083, %v4084
        %v4086 = vsel %vm1513, %v3999, 0.0
        %v4087 = vadd.f32 %v4085, %v4086
        %v4088 = vsel %vm1513, %v4004, 0.0
        %v4089 = vadd.f32 %v4087, %v4088
        %v4090 = vsel %vm1513, %v4007, 0.0
        %v4091 = vadd.f32 %v4089, %v4090
        %v4092 = vsel %vm1513, %v4012, 0.0
        %v4093 = vadd.f32 %v4091, %v4092
        %v4094 = vsel %vm1513, %v4015, 0.0
        %v4095 = vadd.f32 %v4093, %v4094
        %v4096 = vsel %vm1513, %v4020, 0.0
        %v4097 = vadd.f32 %v4095, %v4096
        %v4098 = vsel %vm1513, %v4023, 0.0
        %v4099 = vadd.f32 %v4097, %v4098
        %v4100 = vsel %vm1513, %v4028, 0.0
        %v4101 = vadd.f32 %v4099, %v4100
        %v4102 = vsel %vm1513, %v4031, 0.0
        %v4103 = vadd.f32 %v4101, %v4102
        %v4104 = vsel %vm1513, %v4036, 0.0
        %v4105 = vadd.f32 %v4103, %v4104
        %v4106 = vsel %vm1513, %v4039, 0.0
        %v4107 = vadd.f32 %v4105, %v4106
        %v4108 = vrot.slane %v4107, 4
        %v4109 = vadd.f32 %v4107, %v4108
        %v4110 = vrot.slane %v4109, 2
        %v4111 = vadd.f32 %v4109, %v4110
        %v4112 = vrot.slane %v4111, 1
        %v4113 = vadd.f32 %v4111, %v4112
        %v4114 = vmul.f32 %v3916, %v3916
        %v4115 = vmul.f32 %v3919, %v3919
        %v4116 = vmul.f32 %v3924, %v3924
        %v4117 = vmul.f32 %v3927, %v3927
        %v4118 = vmul.f32 %v3932, %v3932
        %v4119 = vmul.f32 %v3935, %v3935
        %v4120 = vmul.f32 %v3940, %v3940
        %v4121 = vmul.f32 %v3943, %v3943
        %v4122 = vmul.f32 %v3948, %v3948
        %v4123 = vmul.f32 %v3951, %v3951
        %v4124 = vmul.f32 %v3956, %v3956
        %v4125 = vmul.f32 %v3959, %v3959
        %v4126 = vmul.f32 %v3964, %v3964
        %v4127 = vmul.f32 %v3967, %v3967
        %v4128 = vmul.f32 %v3972, %v3972
        %v4129 = vmul.f32 %v3975, %v3975
        %v4130 = vmul.f32 %v3980, %v3980
        %v4131 = vmul.f32 %v3983, %v3983
        %v4132 = vmul.f32 %v3988, %v3988
        %v4133 = vmul.f32 %v3991, %v3991
        %v4134 = vmul.f32 %v3996, %v3996
        %v4135 = vmul.f32 %v3999, %v3999
        %v4136 = vmul.f32 %v4004, %v4004
        %v4137 = vmul.f32 %v4007, %v4007
        %v4138 = vmul.f32 %v4012, %v4012
        %v4139 = vmul.f32 %v4015, %v4015
        %v4140 = vmul.f32 %v4020, %v4020
        %v4141 = vmul.f32 %v4023, %v4023
        %v4142 = vmul.f32 %v4028, %v4028
        %v4143 = vmul.f32 %v4031, %v4031
        %v4144 = vmul.f32 %v4036, %v4036
        %v4145 = vmul.f32 %v4039, %v4039
        %v4146 = vsel %vm1513, %v4114, 0.0
        %v4147 = vsel %vm1513, %v4115, 0.0
        %v4148 = vadd.f32 %v4146, %v4147
        %v4149 = vsel %vm1513, %v4116, 0.0
        %v4150 = vadd.f32 %v4148, %v4149
        %v4151 = vsel %vm1513, %v4117, 0.0
        %v4152 = vadd.f32 %v4150, %v4151
        %v4153 = vsel %vm1513, %v4118, 0.0
        %v4154 = vadd.f32 %v4152, %v4153
        %v4155 = vsel %vm1513, %v4119, 0.0
        %v4156 = vadd.f32 %v4154, %v4155
        %v4157 = vsel %vm1513, %v4120, 0.0
        %v4158 = vadd.f32 %v4156, %v4157
        %v4159 = vsel %vm1513, %v4121, 0.0
        %v4160 = vadd.f32 %v4158, %v4159
        %v4161 = vsel %vm1513, %v4122, 0.0
        %v4162 = vadd.f32 %v4160, %v4161
        %v4163 = vsel %vm1513, %v4123, 0.0
        %v4164 = vadd.f32 %v4162, %v4163
        %v4165 = vsel %vm1513, %v4124, 0.0
        %v4166 = vadd.f32 %v4164, %v4165
        %v4167 = vsel %vm1513, %v4125, 0.0
        %v4168 = vadd.f32 %v4166, %v4167
        %v4169 = vsel %vm1513, %v4126, 0.0
        %v4170 = vadd.f32 %v4168, %v4169
        %v4171 = vsel %vm1513, %v4127, 0.0
        %v4172 = vadd.f32 %v4170, %v4171
        %v4173 = vsel %vm1513, %v4128, 0.0
        %v4174 = vadd.f32 %v4172, %v4173
        %v4175 = vsel %vm1513, %v4129, 0.0
        %v4176 = vadd.f32 %v4174, %v4175
        %v4177 = vsel %vm1513, %v4130, 0.0
        %v4178 = vadd.f32 %v4176, %v4177
        %v4179 = vsel %vm1513, %v4131, 0.0
        %v4180 = vadd.f32 %v4178, %v4179
        %v4181 = vsel %vm1513, %v4132, 0.0
        %v4182 = vadd.f32 %v4180, %v4181
        %v4183 = vsel %vm1513, %v4133, 0.0
        %v4184 = vadd.f32 %v4182, %v4183
        %v4185 = vsel %vm1513, %v4134, 0.0
        %v4186 = vadd.f32 %v4184, %v4185
        %v4187 = vsel %vm1513, %v4135, 0.0
        %v4188 = vadd.f32 %v4186, %v4187
        %v4189 = vsel %vm1513, %v4136, 0.0
        %v4190 = vadd.f32 %v4188, %v4189
        %v4191 = vsel %vm1513, %v4137, 0.0
        %v4192 = vadd.f32 %v4190, %v4191
        %v4193 = vsel %vm1513, %v4138, 0.0
        %v4194 = vadd.f32 %v4192, %v4193
        %v4195 = vsel %vm1513, %v4139, 0.0
        %v4196 = vadd.f32 %v4194, %v4195
        %v4197 = vsel %vm1513, %v4140, 0.0
        %v4198 = vadd.f32 %v4196, %v4197
        %v4199 = vsel %vm1513, %v4141, 0.0
        %v4200 = vadd.f32 %v4198, %v4199
        %v4201 = vsel %vm1513, %v4142, 0.0
        %v4202 = vadd.f32 %v4200, %v4201
        %v4203 = vsel %vm1513, %v4143, 0.0
        %v4204 = vadd.f32 %v4202, %v4203
        %v4205 = vsel %vm1513, %v4144, 0.0
        %v4206 = vadd.f32 %v4204, %v4205
        %v4207 = vsel %vm1513, %v4145, 0.0
        %v4208 = vadd.f32 %v4206, %v4207
        %v4209 = vrot.slane %v4208, 4
        %v4210 = vadd.f32 %v4208, %v4209
        %v4211 = vrot.slane %v4210, 2
        %v4212 = vadd.f32 %v4210, %v4211
        %v4213 = vrot.slane %v4212, 1
        %v4214 = vadd.f32 %v4212, %v4213
        %v4215 = vmul.f32 %v4042, 256.0
        %v4216 = vadd.f32 %v4113, %v4215
        %v4217 = vmul.f32 %v4042, 2.0
        %v4218 = vmul.f32 %v4217, %v4113
        %v4219 = vadd.f32 %v4214, %v4218
        %v4220 = vmul.f32 %v4042, %v4042
        %v4221 = vmul.f32 %v4220, 256.0
        %v4222 = vadd.f32 %v4219, %v4221
        %v4223 = vsel %vm1977, %v4216, 0.0
        %4224 = vadd.xlane.f32.xlu0 %v4223
        %v4225 = vpop.xlane.xlu0 %4224
        %4227 = vrot.lane.b32.xlu0 %v4216, 120
        %v4228 = vpop.permute.xlu0 %4227
        %v4230 = vsel %vm1977, %v4228, 0.0
        %4231 = vadd.xlane.f32.xlu0 %v4230
        %v4232 = vpop.xlane.xlu0 %4231
        %4233 = vrot.lane.b32.xlu0 %v4216, 112
        %v4234 = vpop.permute.xlu0 %4233
        %v4236 = vsel %vm1977, %v4234, 0.0
        %4237 = vadd.xlane.f32.xlu0 %v4236
        %v4238 = vpop.xlane.xlu0 %4237
        %4239 = vrot.lane.b32.xlu0 %v4216, 104
        %v4240 = vpop.permute.xlu0 %4239
        %v4242 = vsel %vm1977, %v4240, 0.0
        %4243 = vadd.xlane.f32.xlu0 %v4242
        %v4244 = vpop.xlane.xlu0 %4243
        %v4245 = vsel %vm1315, %v4225, %v4232
        %v4246 = vsel %vm1381, %v4245, %v4238
        %v4247 = vsel %vm1447, %v4246, %v4244
        %v4248 = vmul.f32 %v4247, 0.00048828125
        %v4249 = vsel %vm1977, %v4222, 0.0
        %4250 = vadd.xlane.f32.xlu0 %v4249
        %v4251 = vpop.xlane.xlu0 %4250
        %4253 = vrot.lane.b32.xlu0 %v4222, 120
        %v4254 = vpop.permute.xlu0 %4253
        %v4256 = vsel %vm1977, %v4254, 0.0
        %4257 = vadd.xlane.f32.xlu0 %v4256
        %v4258 = vpop.xlane.xlu0 %4257
        %4259 = vrot.lane.b32.xlu0 %v4222, 112
        %v4260 = vpop.permute.xlu0 %4259
        %v4262 = vsel %vm1977, %v4260, 0.0
        %4263 = vadd.xlane.f32.xlu0 %v4262
        %v4264 = vpop.xlane.xlu0 %4263
        %4265 = vrot.lane.b32.xlu0 %v4222, 104
        %v4266 = vpop.permute.xlu0 %4265
        %v4268 = vsel %vm1977, %v4266, 0.0
        %4269 = vadd.xlane.f32.xlu0 %v4268
        %v4270 = vpop.xlane.xlu0 %4269
        %v4271 = vsel %vm1315, %v4251, %v4258
        %v4272 = vsel %vm1381, %v4271, %v4264
        %v4273 = vsel %vm1447, %v4272, %v4270
        %v4274 = vmul.f32 %v4273, 0.00048828125
        %v4275 = vmul.f32 %v4248, %v4248
        %v4276 = vsub.f32 %v4274, %v4275
        %v4277 = vadd.f32 %v4276, 1e-05
        %v4278 = vrsqrt.pop %v4277
        %v4279 = vmul.f32 %v4043, %v4278
        %v4280 = vsub.f32 %v4042, %v4248
        %v4281 = vmul.f32 %v4280, %v4279
        %v4282 = vadd.f32 %v4044, %v4281
        %v4283 = vlaneseq
        %v4284 = vshrl.u32 %v4283, 7
        %v4285 = vsub.s32 0, %v4284
        %v4286 = vrot.slane %v4279, %v4285
        %v4287 = vmul.f32 %v3916, %v4286
        %v4288 = vmul.f32 %v3919, %v4286
        %v4289 = vmul.f32 %v3924, %v4286
        %v4290 = vmul.f32 %v3927, %v4286
        %v4291 = vmul.f32 %v3932, %v4286
        %v4292 = vmul.f32 %v3935, %v4286
        %v4293 = vmul.f32 %v3940, %v4286
        %v4294 = vmul.f32 %v3943, %v4286
        %v4295 = vmul.f32 %v3948, %v4286
        %v4296 = vmul.f32 %v3951, %v4286
        %v4297 = vmul.f32 %v3956, %v4286
        %v4298 = vmul.f32 %v3959, %v4286
        %v4299 = vmul.f32 %v3964, %v4286
        %v4300 = vmul.f32 %v3967, %v4286
        %v4301 = vmul.f32 %v3972, %v4286
        %v4302 = vmul.f32 %v3975, %v4286
        %v4303 = vmul.f32 %v3980, %v4286
        %v4304 = vmul.f32 %v3983, %v4286
        %v4305 = vmul.f32 %v3988, %v4286
        %v4306 = vmul.f32 %v3991, %v4286
        %v4307 = vmul.f32 %v3996, %v4286
        %v4308 = vmul.f32 %v3999, %v4286
        %v4309 = vmul.f32 %v4004, %v4286
        %v4310 = vmul.f32 %v4007, %v4286
        %v4311 = vmul.f32 %v4012, %v4286
        %v4312 = vmul.f32 %v4015, %v4286
        %v4313 = vmul.f32 %v4020, %v4286
        %v4314 = vmul.f32 %v4023, %v4286
        %v4315 = vmul.f32 %v4028, %v4286
        %v4316 = vmul.f32 %v4031, %v4286
        %v4317 = vmul.f32 %v4036, %v4286
        %v4318 = vmul.f32 %v4039, %v4286
        %v4319 = vlaneseq
        %v4320 = vshrl.u32 %v4319, 7
        %v4321 = vsub.s32 0, %v4320
        %v4322 = vrot.slane %v4282, %v4321
        %v4323 = vadd.f32 %v4287, %v4322
        %v4324 = vadd.f32 %v4288, %v4322
        %v4325 = vadd.f32 %v4289, %v4322
        %v4326 = vadd.f32 %v4290, %v4322
        %v4327 = vadd.f32 %v4291, %v4322
        %v4328 = vadd.f32 %v4292, %v4322
        %v4329 = vadd.f32 %v4293, %v4322
        %v4330 = vadd.f32 %v4294, %v4322
        %v4331 = vadd.f32 %v4295, %v4322
        %v4332 = vadd.f32 %v4296, %v4322
        %v4333 = vadd.f32 %v4297, %v4322
        %v4334 = vadd.f32 %v4298, %v4322
        %v4335 = vadd.f32 %v4299, %v4322
        %v4336 = vadd.f32 %v4300, %v4322
        %v4337 = vadd.f32 %v4301, %v4322
        %v4338 = vadd.f32 %v4302, %v4322
        %v4339 = vadd.f32 %v4303, %v4322
        %v4340 = vadd.f32 %v4304, %v4322
        %v4341 = vadd.f32 %v4305, %v4322
        %v4342 = vadd.f32 %v4306, %v4322
        %v4343 = vadd.f32 %v4307, %v4322
        %v4344 = vadd.f32 %v4308, %v4322
        %v4345 = vadd.f32 %v4309, %v4322
        %v4346 = vadd.f32 %v4310, %v4322
        %v4347 = vadd.f32 %v4311, %v4322
        %v4348 = vadd.f32 %v4312, %v4322
        %v4349 = vadd.f32 %v4313, %v4322
        %v4350 = vadd.f32 %v4314, %v4322
        %v4351 = vadd.f32 %v4315, %v4322
        %v4352 = vadd.f32 %v4316, %v4322
        %v4353 = vadd.f32 %v4317, %v4322
        %v4354 = vadd.f32 %v4318, %v4322
        %v4355 = vmul.f32 %v4323, 0.5
        %v4356 = vmul.f32 %v4324, 0.5
        %v4357 = vmul.f32 %v4325, 0.5
        %v4358 = vmul.f32 %v4326, 0.5
        %v4359 = vmul.f32 %v4327, 0.5
        %v4360 = vmul.f32 %v4328, 0.5
        %v4361 = vmul.f32 %v4329, 0.5
        %v4362 = vmul.f32 %v4330, 0.5
        %v4363 = vmul.f32 %v4331, 0.5
        %v4364 = vmul.f32 %v4332, 0.5
        %v4365 = vmul.f32 %v4333, 0.5
        %v4366 = vmul.f32 %v4334, 0.5
        %v4367 = vmul.f32 %v4335, 0.5
        %v4368 = vmul.f32 %v4336, 0.5
        %v4369 = vmul.f32 %v4337, 0.5
        %v4370 = vmul.f32 %v4338, 0.5
        %v4371 = vmul.f32 %v4339, 0.5
        %v4372 = vmul.f32 %v4340, 0.5
        %v4373 = vmul.f32 %v4341, 0.5
        %v4374 = vmul.f32 %v4342, 0.5
        %v4375 = vmul.f32 %v4343, 0.5
        %v4376 = vmul.f32 %v4344, 0.5
        %v4377 = vmul.f32 %v4345, 0.5
        %v4378 = vmul.f32 %v4346, 0.5
        %v4379 = vmul.f32 %v4347, 0.5
        %v4380 = vmul.f32 %v4348, 0.5
        %v4381 = vmul.f32 %v4349, 0.5
        %v4382 = vmul.f32 %v4350, 0.5
        %v4383 = vmul.f32 %v4351, 0.5
        %v4384 = vmul.f32 %v4352, 0.5
        %v4385 = vmul.f32 %v4353, 0.5
        %v4386 = vmul.f32 %v4354, 0.5
        %v4387 = vmul.f32 %v4323, 0.70710677
        %v4388 = vmul.f32 %v4324, 0.70710677
        %v4389 = vmul.f32 %v4325, 0.70710677
        %v4390 = vmul.f32 %v4326, 0.70710677
        %v4391 = vmul.f32 %v4327, 0.70710677
        %v4392 = vmul.f32 %v4328, 0.70710677
        %v4393 = vmul.f32 %v4329, 0.70710677
        %v4394 = vmul.f32 %v4330, 0.70710677
        %v4395 = vmul.f32 %v4331, 0.70710677
        %v4396 = vmul.f32 %v4332, 0.70710677
        %v4397 = vmul.f32 %v4333, 0.70710677
        %v4398 = vmul.f32 %v4334, 0.70710677
        %v4399 = vmul.f32 %v4335, 0.70710677
        %v4400 = vmul.f32 %v4336, 0.70710677
        %v4401 = vmul.f32 %v4337, 0.70710677
        %v4402 = vmul.f32 %v4338, 0.70710677
        %v4403 = vmul.f32 %v4339, 0.70710677
        %v4404 = vmul.f32 %v4340, 0.70710677
        %v4405 = vmul.f32 %v4341, 0.70710677
        %v4406 = vmul.f32 %v4342, 0.70710677
        %v4407 = vmul.f32 %v4343, 0.70710677
        %v4408 = vmul.f32 %v4344, 0.70710677
        %v4409 = vmul.f32 %v4345, 0.70710677
        %v4410 = vmul.f32 %v4346, 0.70710677
        %v4411 = vmul.f32 %v4347, 0.70710677
        %v4412 = vmul.f32 %v4348, 0.70710677
        %v4413 = vmul.f32 %v4349, 0.70710677
        %v4414 = vmul.f32 %v4350, 0.70710677
        %v4415 = vmul.f32 %v4351, 0.70710677
        %v4416 = vmul.f32 %v4352, 0.70710677
        %v4417 = vmul.f32 %v4353, 0.70710677
        %v4418 = vmul.f32 %v4354, 0.70710677
        %v4419 = verf.f32.pop %v4387
        %v4420 = verf.f32.pop %v4388
        %v4421 = verf.f32.pop %v4389
        %v4422 = verf.f32.pop %v4390
        %v4423 = verf.f32.pop %v4391
        %v4424 = verf.f32.pop %v4392
        %v4425 = verf.f32.pop %v4393
        %v4426 = verf.f32.pop %v4394
        %v4427 = verf.f32.pop %v4395
        %v4428 = verf.f32.pop %v4396
        %v4429 = verf.f32.pop %v4397
        %v4430 = verf.f32.pop %v4398
        %v4431 = verf.f32.pop %v4399
        %v4432 = verf.f32.pop %v4400
        %v4433 = verf.f32.pop %v4401
        %v4434 = verf.f32.pop %v4402
        %v4435 = verf.f32.pop %v4403
        %v4436 = verf.f32.pop %v4404
        %v4437 = verf.f32.pop %v4405
        %v4438 = verf.f32.pop %v4406
        %v4439 = verf.f32.pop %v4407
        %v4440 = verf.f32.pop %v4408
        %v4441 = verf.f32.pop %v4409
        %v4442 = verf.f32.pop %v4410
        %v4443 = verf.f32.pop %v4411
        %v4444 = verf.f32.pop %v4412
        %v4445 = verf.f32.pop %v4413
        %v4446 = verf.f32.pop %v4414
        %v4447 = verf.f32.pop %v4415
        %v4448 = verf.f32.pop %v4416
        %v4449 = verf.f32.pop %v4417
        %v4450 = verf.f32.pop %v4418
        %v4451 = vadd.f32 %v4419, 1.0
        %v4452 = vadd.f32 %v4420, 1.0
        %v4453 = vadd.f32 %v4421, 1.0
        %v4454 = vadd.f32 %v4422, 1.0
        %v4455 = vadd.f32 %v4423, 1.0
        %v4456 = vadd.f32 %v4424, 1.0
        %v4457 = vadd.f32 %v4425, 1.0
        %v4458 = vadd.f32 %v4426, 1.0
        %v4459 = vadd.f32 %v4427, 1.0
        %v4460 = vadd.f32 %v4428, 1.0
        %v4461 = vadd.f32 %v4429, 1.0
        %v4462 = vadd.f32 %v4430, 1.0
        %v4463 = vadd.f32 %v4431, 1.0
        %v4464 = vadd.f32 %v4432, 1.0
        %v4465 = vadd.f32 %v4433, 1.0
        %v4466 = vadd.f32 %v4434, 1.0
        %v4467 = vadd.f32 %v4435, 1.0
        %v4468 = vadd.f32 %v4436, 1.0
        %v4469 = vadd.f32 %v4437, 1.0
        %v4470 = vadd.f32 %v4438, 1.0
        %v4471 = vadd.f32 %v4439, 1.0
        %v4472 = vadd.f32 %v4440, 1.0
        %v4473 = vadd.f32 %v4441, 1.0
        %v4474 = vadd.f32 %v4442, 1.0
        %v4475 = vadd.f32 %v4443, 1.0
        %v4476 = vadd.f32 %v4444, 1.0
        %v4477 = vadd.f32 %v4445, 1.0
        %v4478 = vadd.f32 %v4446, 1.0
        %v4479 = vadd.f32 %v4447, 1.0
        %v4480 = vadd.f32 %v4448, 1.0
        %v4481 = vadd.f32 %v4449, 1.0
        %v4482 = vadd.f32 %v4450, 1.0
        %v4483 = vmul.f32 %v4355, %v4451
        %v4484 = vmul.f32 %v4356, %v4452
        %v4485 = vmul.f32 %v4357, %v4453
        %v4486 = vmul.f32 %v4358, %v4454
        %v4487 = vmul.f32 %v4359, %v4455
        %v4488 = vmul.f32 %v4360, %v4456
        %v4489 = vmul.f32 %v4361, %v4457
        %v4490 = vmul.f32 %v4362, %v4458
        %v4491 = vmul.f32 %v4363, %v4459
        %v4492 = vmul.f32 %v4364, %v4460
        %v4493 = vmul.f32 %v4365, %v4461
        %v4494 = vmul.f32 %v4366, %v4462
        %v4495 = vmul.f32 %v4367, %v4463
        %v4496 = vmul.f32 %v4368, %v4464
        %v4497 = vmul.f32 %v4369, %v4465
        %v4498 = vmul.f32 %v4370, %v4466
        %v4499 = vmul.f32 %v4371, %v4467
        %v4500 = vmul.f32 %v4372, %v4468
        %v4501 = vmul.f32 %v4373, %v4469
        %v4502 = vmul.f32 %v4374, %v4470
        %v4503 = vmul.f32 %v4375, %v4471
        %v4504 = vmul.f32 %v4376, %v4472
        %v4505 = vmul.f32 %v4377, %v4473
        %v4506 = vmul.f32 %v4378, %v4474
        %v4507 = vmul.f32 %v4379, %v4475
        %v4508 = vmul.f32 %v4380, %v4476
        %v4509 = vmul.f32 %v4381, %v4477
        %v4510 = vmul.f32 %v4382, %v4478
        %v4511 = vmul.f32 %v4383, %v4479
        %v4512 = vmul.f32 %v4384, %v4480
        %v4513 = vmul.f32 %v4385, %v4481
        %v4514 = vmul.f32 %v4386, %v4482
        %4515 = vst.msk [vmem:[%s217] sm:$0xff] %vm1513, %v4483
        %4516 = vst.msk [vmem:[%s217 + $0x8] sm:$0xff] %vm1513, %v4484
        %4517 = vst.msk [vmem:[%s217 + $0x10] sm:$0xff] %vm1513, %v4485
        %4518 = vst.msk [vmem:[%s217 + $0x18] sm:$0xff] %vm1513, %v4486
        %4519 = vst.msk [vmem:[%s217 + $0x20] sm:$0xff] %vm1513, %v4487
        %4520 = vst.msk [vmem:[%s217 + $0x28] sm:$0xff] %vm1513, %v4488
        %4521 = vst.msk [vmem:[%s217 + $0x30] sm:$0xff] %vm1513, %v4489
        %4522 = vst.msk [vmem:[%s217 + $0x38] sm:$0xff] %vm1513, %v4490
        %4523 = vst.msk [vmem:[%s217 + $0x40] sm:$0xff] %vm1513, %v4491
        %4524 = vst.msk [vmem:[%s217 + $0x48] sm:$0xff] %vm1513, %v4492
        %4525 = vst.msk [vmem:[%s217 + $0x50] sm:$0xff] %vm1513, %v4493
        %4526 = vst.msk [vmem:[%s217 + $0x58] sm:$0xff] %vm1513, %v4494
        %4527 = vst.msk [vmem:[%s217 + $0x60] sm:$0xff] %vm1513, %v4495
        %4528 = vst.msk [vmem:[%s217 + $0x68] sm:$0xff] %vm1513, %v4496
        %4529 = vst.msk [vmem:[%s217 + $0x70] sm:$0xff] %vm1513, %v4497
        %4530 = vst.msk [vmem:[%s217 + $0x78] sm:$0xff] %vm1513, %v4498
        %4531 = vst.msk [vmem:[%s217 + $0x80] sm:$0xff] %vm1513, %v4499
        %4532 = vst.msk [vmem:[%s217 + $0x88] sm:$0xff] %vm1513, %v4500
        %4533 = vst.msk [vmem:[%s217 + $0x90] sm:$0xff] %vm1513, %v4501
        %4534 = vst.msk [vmem:[%s217 + $0x98] sm:$0xff] %vm1513, %v4502
        %4535 = vst.msk [vmem:[%s217 + $0xa0] sm:$0xff] %vm1513, %v4503
        %4536 = vst.msk [vmem:[%s217 + $0xa8] sm:$0xff] %vm1513, %v4504
        %4537 = vst.msk [vmem:[%s217 + $0xb0] sm:$0xff] %vm1513, %v4505
        %4538 = vst.msk [vmem:[%s217 + $0xb8] sm:$0xff] %vm1513, %v4506
        %4539 = vst.msk [vmem:[%s217 + $0xc0] sm:$0xff] %vm1513, %v4507
        %4540 = vst.msk [vmem:[%s217 + $0xc8] sm:$0xff] %vm1513, %v4508
        %4541 = vst.msk [vmem:[%s217 + $0xd0] sm:$0xff] %vm1513, %v4509
        %4542 = vst.msk [vmem:[%s217 + $0xd8] sm:$0xff] %vm1513, %v4510
        %4543 = vst.msk [vmem:[%s217 + $0xe0] sm:$0xff] %vm1513, %v4511
        %4544 = vst.msk [vmem:[%s217 + $0xe8] sm:$0xff] %vm1513, %v4512
        %4545 = vst.msk [vmem:[%s217 + $0xf0] sm:$0xff] %vm1513, %v4513
        %4546 = vst.msk [vmem:[%s217 + $0xf8] sm:$0xff] %vm1513, %v4514
        %s4547 = sand.u32 %s137, 1
        %s4548 = scalar_lea.sflag [#allocation4], %s4547
        %s4549 = sand.u32 %s137, 1
        %s4550 = smul.addr %s4549, 256
        %s4551 = scalar_lea.vmem [#allocation3], %s4550
        // Predicated region
        $region41: #{double_conv_forward.1} parent=39 // pred_check
          %p4552 = pneg %p147
        $region42: #{double_conv_forward.1} parent=39 // pred_check_branch
          %4554 = sbr.rel (%p4552) target = $region44
        $region43: #{double_conv_forward.1} parent=39 // pred_region
          %s4556 = ssub.s32 4096, 4096
          %4557 = vsyncadd %s4548, %s4556
          %s4558 = smul.addr %s19, 32
          %s4559 = smul.addr %s4558, 128
          %s4560 = scalar_lea.hbm %s5, %s4559
          %s4561 = sshll.u32 %s4551, 4
          %s4562 = int_to_ptr.vmem [resolvable:$true] %s4561
          %4567 = dma.vmem_to_hbm [thread:$0]  %s4562, 4096, %s4560, %s4548, 128, 128, 8
        $region44: #{double_conv_forward.1} parent=39 // pred_fallthru
          _
      $region40: #{double_conv_forward.1} parent=5 // pred_fallthru
        _
      %p4568 = scmp.le.s32.totalorder 2, %s14
      // Predicated region
      $region45: #{double_conv_forward.1} parent=5 // pred_check
        %p4569 = pneg %p4568
      $region46: #{double_conv_forward.1} parent=5 // pred_check_branch
        %4571 = sbr.rel (%p4569) target = $region48
      $region47: #{double_conv_forward.1} parent=5 // pred_region
        %s4572 = ssub.s32 %s14, 2
        // Predicated region
        $region49: #{double_conv_forward.1} parent=47 // pred_check
          %p4573 = pneg %p153
        $region50: #{double_conv_forward.1} parent=47 // pred_check_branch
          %4575 = sbr.rel (%p4573) target = $region52
        $region51: #{double_conv_forward.1} parent=47 // pred_region
          %s4576 = sand.u32 %s138, 1
          %s4577 = scalar_lea.sflag [#allocation4], %s4576
          %s4578 = sand.u32 %s138, 1
          %s4579 = smul.addr %s4578, 256
          %s4580 = scalar_lea.vmem [#allocation3], %s4579
          %4581 = dma.done %s4577, 4096
        $region52: #{double_conv_forward.1} parent=47 // pred_fallthru
          _
      $region48: #{double_conv_forward.1} parent=5 // pred_fallthru
        _
    $region6: #{double_conv_forward.1} parent=1 // loop_footer
      %s18 = sadd.s32 1, %s14
    $region7: #{double_conv_forward.1} parent=1 // loop_footer_branch
      %13 = sbr.rel target = $region3
    $region8: #{double_conv_forward.1} parent=1 // loop_exit
      _
    %4582 = vsyncpa [#allocation4], 1
    %s4583 = scalar_lea.sflag [#allocation4], 1
    %4584 = vsyncpa %s4583, 1

</llo_original>
